<compile_context>
chip_gen: v6e
topology: v6e:2x2x1
jax: 0.10.0
libtpu: 0.0.40
codegen_flags: <defaults>
</compile_context>

<pallas_src>
import jax
import jax.numpy as jnp
import numpy as np
from jax import lax
from jax.experimental import pallas as pl
from jax.experimental.pallas import tpu as pltpu

NUM_ANN_INDICES = 15
NUM_PATCHES = 25
KERNEL_SIZE = 4
STRIDE = 2
PAD = KERNEL_SIZE // 2 - 1                        # = 1
COUT_TOTAL = NUM_ANN_INDICES + 3 * NUM_PATCHES    # 90
NUM_PHASES = 4                                    # (ry, rx) in {0,1}^2
CP = 96                                           # per-phase padded channels (90 -> 96)
OUT_COLS = NUM_PHASES * CP                        # 384 = 3 * 128 (lane-dense store)

# Transposed-conv tap table.  Output row 2p+ry is
#   sum over (oy, ky) in _PHASE_TAPS[ry] of x_pad[p + oy] @ W[ky, :]
# where x_pad has a 1-pixel zero halo (x_pad[p+1] == x[p]).  Same for columns.
_PHASE_TAPS = {
    0: ((1, 1), (0, 3)),   # out row 2p  : x[p] @ W[ky=1] + x[p-1] @ W[ky=3]
    1: ((1, 2), (2, 0)),   # out row 2p+1: x[p] @ W[ky=2] + x[p+1] @ W[ky=0]
}


def _enumerate_taps():
    taps = []
    for ry in (0, 1):
        for rx in (0, 1):
            phase = ry * 2 + rx
            for oy, ky in _PHASE_TAPS[ry]:
                for ox, kx in _PHASE_TAPS[rx]:
                    taps.append((len(taps), phase, oy, ox, ky, kx))
    return tuple(taps)


_TAPS = _enumerate_taps()                         # the 16 non-zero tap products
_OFFSET_TO_TAPS = {}                              # (oy, ox) -> [(phase, tap_id)]
for _tid, _phase, _oy, _ox, _ky, _kx in _TAPS:
    _OFFSET_TO_TAPS.setdefault((_oy, _ox), []).append((_phase, _tid))


def _single_buffer_kwargs():
    """pipeline_mode=pl.Buffered(1) for grid-invariant operands, if the running
    Pallas supports it (probed with a tiny copy kernel; falls back to default
    double-buffering otherwise)."""
    try:
        kw = dict(pipeline_mode=pl.Buffered(1))

        def _probe(x_ref, o_ref):
            o_ref[...] = x_ref[...]

        x = jnp.zeros((8, 128), jnp.float32)
        y = pl.pallas_call(
            _probe,
            out_shape=jax.ShapeDtypeStruct((8, 128), jnp.float32),
            grid=(1,),
            in_specs=[pl.BlockSpec((8, 128), lambda i: (0, 0), **kw)],
            out_specs=pl.BlockSpec((8, 128), lambda i: (0, 0)),
        )(x)
        jax.block_until_ready(y)
        return kw
    except Exception:
        return {}


_SINGLE_BUF = _single_buffer_kwargs()


def _deconv_kernel(x_main_ref, x_halo_ref, w_ref, b_ref, o_ref, xbuf):
    """One (batch, row-block) grid step.

    x_main_ref: [1, TB,  W+2, Cin]  padded-input rows [r*TB, r*TB+TB)   (bf16)
    x_halo_ref: [1, 2,   W+2, Cin]  padded-input rows [(r+1)*TB, +2)    (bf16)
    w_ref     : [16, Cin, CP]       one [Cin, 96] weight slab per non-zero tap
    b_ref     : [1, OUT_COLS]       bias broadcast over the 4 phases    (f32)
    o_ref     : [1, TB*W, OUT_COLS] phase-major fused output block      (f32)
    xbuf      : [TB+2, W+2, Cin]    VMEM scratch: main block + halo stitched
    """
    tb = x_main_ref.shape[1]
    iw = x_main_ref.shape[2] - 2
    cin = x_main_ref.shape[3]

    # Stitch the 2-row bottom halo under the main block so every shifted
    # window is one contiguous read.
    # TODO(synk): fold the 1-pixel zero halo in here too (masked edge rows)
    # and drop the wrapper-side jnp.pad HBM round trip (review item 9a).
    xbuf[0:tb, :, :] = x_main_ref[0]
    xbuf[tb:tb + 2, :, :] = x_halo_ref[0]

    # Accumulating per-tap MXU dots on shifted windows: no im2col LHS is
    # materialized and no zero (offset, phase) weight rows are pushed through
    # the MXU -- exactly the 16 useful tap products, f32 accumulation.
    accs = [None] * NUM_PHASES
    for oy in range(3):
        for ox in range(3):
            win = xbuf[oy:oy + tb, ox:ox + iw, :].reshape(tb * iw, cin)
            for phase, tid in _OFFSET_TO_TAPS[(oy, ox)]:
                d = jnp.dot(win, w_ref[tid],
                            preferred_element_type=jnp.float32)
                accs[phase] = d if accs[phase] is None else accs[phase] + d
    # TODO(synk): on v6e/v7x (256-wide MXU N) group column-adjacent phases per
    # offset into one wider dot (N=192/384) to cut MXU passes ~16 -> ~12.

    # Single lane-dense store (384 = 3*128 lanes); bias added once.
    o_ref[0] = jnp.concatenate(accs, axis=-1) + b_ref[...]


def _pick_row_block(h):
    """Largest even divisor of H that is <= 8.  Kept small so the unit test
    exercises the row-block grid; production sizes TB from the VMEM budget."""
    for tb in range(min(h, 8), 1, -1):
        if tb % 2 == 0 and h % tb == 0:
            return tb
    raise ValueError(f"H={h} must be even for the row-blocked kernel")


def pack_params(w_all, b_all):
    """Host-side, one-time packing of the fused ConvTranspose2d parameters.

    w_all: [Cin, 90, 4, 4] (PyTorch ConvTranspose2d layout), b_all: [90].
    Returns (w_packed [16, Cin, CP] bf16, b_packed [1, 384] f32).
    Done with numpy outside jit so no scatter/transpose work re-runs on device
    every forward (review item 8).
    """
    w_np = np.asarray(w_all, np.float32)
    b_np = np.asarray(b_all, np.float32)
    cin, cout = w_np.shape[0], w_np.shape[1]
    wp = np.zeros((len(_TAPS), cin, CP), np.float32)
    for tid, _phase, _oy, _ox, ky, kx in _TAPS:
        wp[tid, :, :cout] = w_np[:, :, ky, kx]
    bp = np.zeros((NUM_PHASES, CP), np.float32)
    bp[:, :cout] = b_np[None, :]
    return (jnp.asarray(wp, dtype=jnp.bfloat16),
            jnp.asarray(bp.reshape(1, OUT_COLS), dtype=jnp.float32))


def _fused_conv_transpose(x_nchw, w_packed, b_packed):
    """Fused stride-2, k=4, p=1 transposed conv of all four heads (NCHW -> NCHW)."""
    n, cin, h, w = x_nchw.shape
    if h % 2 != 0:
        raise ValueError("row-blocked kernel requires even H")
    tb = _pick_row_block(h)
    if (tb * w) % 8 != 0:          # keep the output block sublane-aligned
        tb = h                      # fall back to a single row block per image
    r_blocks = h // tb
    half_tb = tb // 2

    # Glue: NCHW -> NHWC (bf16, channels on lanes) with a 1-pixel zero halo.
    # TODO(synk): accept/return NHWC end-to-end and fold the halo into the
    # kernel to drop these extra HBM round trips (review item 9).
    # TODO(synk): at tiny Cin (test Cin=4) lanes are ~3% occupied; fold W into
    # lanes or pad Cin in HBM if small-Cin deployments matter (review item 10).
    x_nhwc = jnp.transpose(x_nchw, (0, 2, 3, 1)).astype(jnp.bfloat16)
    x_pad = jnp.pad(x_nhwc, ((0, 0), (1, 1), (1, 1), (0, 0)))

    out = pl.pallas_call(
        _deconv_kernel,
        out_shape=jax.ShapeDtypeStruct((n, h * w, OUT_COLS), jnp.float32),
        grid_spec=pltpu.PrefetchScalarGridSpec(
            num_scalar_prefetch=0,
            grid=(n, r_blocks),
            in_specs=[
                # Main TB-row slab of the padded input (auto double-buffered).
                pl.BlockSpec((1, tb, w + 2, cin), lambda b, r: (b, r, 0, 0)),
                # 2-row bottom halo = the first rows of the next slab.
                pl.BlockSpec((1, 2, w + 2, cin),
                             lambda b, r: (b, (r + 1) * half_tb, 0, 0)),
                # Grid-invariant packed weights / bias: single-buffered when
                # the running Pallas supports pipeline_mode (review item 7).
                pl.BlockSpec((len(_TAPS), cin, CP), lambda b, r: (0, 0, 0),
                             **_SINGLE_BUF),
                pl.BlockSpec((1, OUT_COLS), lambda b, r: (0, 0), **_SINGLE_BUF),
            ],
            out_specs=pl.BlockSpec((1, tb * w, OUT_COLS),
                                   lambda b, r: (b, r, 0)),
            scratch_shapes=[pltpu.VMEM((tb + 2, w + 2, cin), jnp.bfloat16)],
        ),
        compiler_params=pltpu.CompilerParams(
            dimension_semantics=("parallel", "parallel"),
            # <= 48 MiB: safe on v7x (64 MiB physical VMEM); the row-blocked
            # tiles never need more, so the same cap is fine on v5e/v6e
            # (128 MiB physical).  (review item 5)
            vmem_limit_bytes=48 * 1024 * 1024),
    )(x_pad, x_pad, w_packed, b_packed)

    # Glue: de-interleave phases (columns are phase-major: (ry*2+rx)*CP + c),
    # slice the padded channels back to 90, and return NCHW f32.
    # TODO(synk): emit bf16 / keep NHWC here if downstream tolerance allows.
    out = out.reshape(n, h, w, 2, 2, CP)            # [n, p, q, ry, rx, c]
    out = jnp.transpose(out, (0, 1, 3, 2, 4, 5))    # [n, p, ry, q, rx, c]
    out = out.reshape(n, 2 * h, 2 * w, CP)[..., :COUT_TOTAL]
    return jnp.transpose(out, (0, 3, 1, 2))         # NCHW


def init_params(key, input_channels):
    """Deterministic synthetic parameters (shapes match the PyTorch module)."""
    dims_out = [NUM_ANN_INDICES, NUM_PATCHES, NUM_PATCHES, NUM_PATCHES]
    ws, bs = [], []
    for i, d_out in enumerate(dims_out):
        kw, kb = jax.random.split(jax.random.fold_in(key, i))
        ws.append(0.02 * jax.random.normal(
            kw, (input_channels, d_out, KERNEL_SIZE, KERNEL_SIZE), jnp.float32))
        bs.append(0.01 * jax.random.normal(kb, (d_out,), jnp.float32))
    return ws, bs


@jax.jit
def densepose_predictor(x_nchw, w_packed, b_packed):
    """Returns (ann_index_lowres, index_uv_lowres, u_lowres, v_lowres) in NCHW."""
    out_all = _fused_conv_transpose(x_nchw, w_packed, b_packed)
    c0 = NUM_ANN_INDICES
    c1 = c0 + NUM_PATCHES
    c2 = c1 + NUM_PATCHES
    return (out_all[:, :c0], out_all[:, c0:c1],
            out_all[:, c1:c2], out_all[:, c2:])


def _reference(x_nchw, w_all, b_all):
    """Pure-JAX f32 reference: ConvTranspose2d == lhs-dilated conv, flipped kernel."""
    w_conv = jnp.transpose(w_all, (1, 0, 2, 3))[:, :, ::-1, ::-1]  # OIHW
    y = lax.conv_general_dilated(
        x_nchw.astype(jnp.float32), w_conv,
        window_strides=(1, 1),
        padding=((KERNEL_SIZE - 1 - PAD,) * 2, (KERNEL_SIZE - 1 - PAD,) * 2),
        lhs_dilation=(STRIDE, STRIDE),
        dimension_numbers=("NCHW", "OIHW", "NCHW"))
    return y + b_all[None, :, None, None]


if __name__ == "__main__":
    key = jax.random.PRNGKey(0)
    N, C_IN, H, W = 2, 4, 16, 16

    k_x, k_p = jax.random.split(key)
    x = jax.random.normal(k_x, (N, C_IN, H, W), jnp.float32)

    ws, bs = init_params(k_p, C_IN)
    w_all = jnp.concatenate(ws, axis=1)     # [C_in, 90, 4, 4]
    b_all = jnp.concatenate(bs, axis=0)     # [90]

    # Packed once on host, outside the jitted forward (review item 8).
    w_packed, b_packed = pack_params(w_all, b_all)

    outs = densepose_predictor(x, w_packed, b_packed)
    outs = jax.block_until_ready(outs)

    # Sanity check against the f32 reference (bf16 inputs -> looser tolerance).
    ref_all = _reference(x, w_all, b_all)
    got_all = jnp.concatenate(outs, axis=1)
    np.testing.assert_allclose(np.asarray(got_all), np.asarray(ref_all),
                               rtol=2e-2, atol=2e-2)

    expected_shapes = [(N, 15, 2 * H, 2 * W)] + [(N, 25, 2 * H, 2 * W)] * 3
    assert [tuple(o.shape) for o in outs] == expected_shapes

    print("KERNEL_OK")
</pallas_src>

<mosaic_0001>
module attributes {stable_mosaic.version = 11 : i64} {
  func.func @_probe(%arg0: i32, %arg1: memref<8x128xf32, #tpu.memory_space<vmem>>, %arg2: memref<8x128xf32, #tpu.memory_space<vmem>>) attributes {dimension_semantics = [#tpu.dimension_semantics<arbitrary>], iteration_bounds = array<i64: 1>, scalar_prefetch = 0 : i64, scratch_operands = 0 : i64, tpu.core_type = #tpu.core_type<tc>, window_params = [{pipeline_mode = #tpu.pipeline_mode<synchronous>, transform_indices = @transform_0, window_bounds = array<i64: 8, 128>}, {pipeline_mode = #tpu.pipeline_mode<synchronous>, transform_indices = @transform_1, window_bounds = array<i64: 8, 128>}]} {
    %c0 = arith.constant 0 : index
    %c0_0 = arith.constant 0 : index
    %0 = vector.load %arg1[%c0, %c0_0] : memref<8x128xf32, #tpu.memory_space<vmem>>, vector<8x128xf32>
    %c0_1 = arith.constant 0 : index
    %c0_2 = arith.constant 0 : index
    %1 = vector.load %arg2[%c0_1, %c0_2] : memref<8x128xf32, #tpu.memory_space<vmem>>, vector<8x128xf32>
    tpu.vector_store %arg2[%c0_1, %c0_2], %0 {strides = array<i32>} : memref<8x128xf32, #tpu.memory_space<vmem>>, vector<8x128xf32>,
    return
  }
  func.func @transform_0(%arg0: i32) -> (i32, i32) {
    %c0_i32 = arith.constant 0 : i32
    %c0_i32_0 = arith.constant 0 : i32
    %c0_i32_1 = arith.constant 0 : i32
    return %c0_i32, %c0_i32_0 : i32, i32
  }
  func.func @transform_1(%arg0: i32) -> (i32, i32) {
    %c0_i32 = arith.constant 0 : i32
    %c0_i32_0 = arith.constant 0 : i32
    %c0_i32_1 = arith.constant 0 : i32
    return %c0_i32, %c0_i32_0 : i32, i32
  }
}

module attributes {stable_mosaic.version = 11 : i64} {
  func.func @_deconv_kernel(%arg0: i32, %arg1: i32, %arg2: memref<1x8x18x4xbf16, #tpu.memory_space<vmem>>, %arg3: memref<1x2x18x4xbf16, #tpu.memory_space<vmem>>, %arg4: memref<16x4x96xbf16, #tpu.memory_space<vmem>>, %arg5: memref<1x384xf32, #tpu.memory_space<vmem>>, %arg6: memref<1x128x384xf32, #tpu.memory_space<vmem>>, %arg7: memref<10x18x4xbf16, #tpu.memory_space<vmem>>) attributes {dimension_semantics = [#tpu.dimension_semantics<parallel>, #tpu.dimension_semantics<parallel>], iteration_bounds = array<i64: 2, 2>, scalar_prefetch = 0 : i64, scratch_operands = 1 : i64, tpu.core_type = #tpu.core_type<tc>, window_params = [{transform_indices = @transform_0, window_bounds = array<i64: 1, 8, 18, 4>}, {transform_indices = @transform_1, window_bounds = array<i64: 1, 2, 18, 4>}, {pipeline_mode = #tpu.pipeline_mode<synchronous>, transform_indices = @transform_2, window_bounds = array<i64: 16, 4, 96>}, {pipeline_mode = #tpu.pipeline_mode<synchronous>, transform_indices = @transform_3, window_bounds = array<i64: 1, 384>}, {transform_indices = @transform_4, window_bounds = array<i64: 1, 128, 384>}]} {
    %c0 = arith.constant 0 : index
    %c0_0 = arith.constant 0 : index
    %c0_1 = arith.constant 0 : index
    %c0_2 = arith.constant 0 : index
    %0 = vector.load %arg2[%c0, %c0_0, %c0_1, %c0_2] : memref<1x8x18x4xbf16, #tpu.memory_space<vmem>>, vector<1x8x18x4xbf16>
    %1 = vector.shape_cast %0 : vector<1x8x18x4xbf16> to vector<8x18x4xbf16>
    %c0_3 = arith.constant 0 : index
    %c0_4 = arith.constant 0 : index
    %c0_5 = arith.constant 0 : index
    %2 = vector.load %arg7[%c0_3, %c0_4, %c0_5] : memref<10x18x4xbf16, #tpu.memory_space<vmem>>, vector<8x18x4xbf16>
    tpu.vector_store %arg7[%c0_3, %c0_4, %c0_5], %1 {strides = array<i32>} : memref<10x18x4xbf16, #tpu.memory_space<vmem>>, vector<8x18x4xbf16>,
    %c0_6 = arith.constant 0 : index
    %c0_7 = arith.constant 0 : index
    %c0_8 = arith.constant 0 : index
    %c0_9 = arith.constant 0 : index
    %3 = vector.load %arg3[%c0_6, %c0_7, %c0_8, %c0_9] : memref<1x2x18x4xbf16, #tpu.memory_space<vmem>>, vector<1x2x18x4xbf16>
    %4 = vector.shape_cast %3 : vector<1x2x18x4xbf16> to vector<2x18x4xbf16>
    %c8 = arith.constant 8 : index
    %c0_10 = arith.constant 0 : index
    %c0_11 = arith.constant 0 : index
    %5 = vector.load %arg7[%c8, %c0_10, %c0_11] : memref<10x18x4xbf16, #tpu.memory_space<vmem>>, vector<2x18x4xbf16>
    tpu.vector_store %arg7[%c8, %c0_10, %c0_11], %4 {strides = array<i32>} : memref<10x18x4xbf16, #tpu.memory_space<vmem>>, vector<2x18x4xbf16>,
    %c0_12 = arith.constant 0 : index
    %c0_13 = arith.constant 0 : index
    %c0_14 = arith.constant 0 : index
    %6 = vector.load %arg7[%c0_12, %c0_13, %c0_14] : memref<10x18x4xbf16, #tpu.memory_space<vmem>>, vector<8x16x4xbf16>
    %7 = vector.shape_cast %6 : vector<8x16x4xbf16> to vector<128x4xbf16>
    %c3 = arith.constant 3 : index
    %c0_15 = arith.constant 0 : index
    %c0_16 = arith.constant 0 : index
    %8 = vector.load %arg4[%c3, %c0_15, %c0_16] : memref<16x4x96xbf16, #tpu.memory_space<vmem>>, vector<1x4x96xbf16>
    %9 = vector.shape_cast %8 : vector<1x4x96xbf16> to vector<4x96xbf16>
    %cst = arith.constant dense<0.000000e+00> : vector<128x96xf32>
    %10 = tpu.matmul %7, %9, %cst {dimension_numbers = #tpu.dot_dimension_numbers<[1], [0], [0], [1], [0, 0, 1, 1], [], []>} : vector<128x4xbf16>, vector<4x96xbf16>, vector<128x96xf32> -> vector<128x96xf32>
    %c0_17 = arith.constant 0 : index
    %c1 = arith.constant 1 : index
    %c0_18 = arith.constant 0 : index
    %11 = vector.load %arg7[%c0_17, %c1, %c0_18] : memref<10x18x4xbf16, #tpu.memory_space<vmem>>, vector<8x16x4xbf16>
    %12 = vector.shape_cast %11 : vector<8x16x4xbf16> to vector<128x4xbf16>
    %c2 = arith.constant 2 : index
    %c0_19 = arith.constant 0 : index
    %c0_20 = arith.constant 0 : index
    %13 = vector.load %arg4[%c2, %c0_19, %c0_20] : memref<16x4x96xbf16, #tpu.memory_space<vmem>>, vector<1x4x96xbf16>
    %14 = vector.shape_cast %13 : vector<1x4x96xbf16> to vector<4x96xbf16>
    %cst_21 = arith.constant dense<0.000000e+00> : vector<128x96xf32>
    %15 = tpu.matmul %12, %14, %cst_21 {dimension_numbers = #tpu.dot_dimension_numbers<[1], [0], [0], [1], [0, 0, 1, 1], [], []>} : vector<128x4xbf16>, vector<4x96xbf16>, vector<128x96xf32> -> vector<128x96xf32>
    %16 = arith.addf %10, %15 : vector<128x96xf32>
    %c6 = arith.constant 6 : index
    %c0_22 = arith.constant 0 : index
    %c0_23 = arith.constant 0 : index
    %17 = vector.load %arg4[%c6, %c0_22, %c0_23] : memref<16x4x96xbf16, #tpu.memory_space<vmem>>, vector<1x4x96xbf16>
    %18 = vector.shape_cast %17 : vector<1x4x96xbf16> to vector<4x96xbf16>
    %cst_24 = arith.constant dense<0.000000e+00> : vector<128x96xf32>
    %19 = tpu.matmul %12, %18, %cst_24 {dimension_numbers = #tpu.dot_dimension_numbers<[1], [0], [0], [1], [0, 0, 1, 1], [], []>} : vector<128x4xbf16>, vector<4x96xbf16>, vector<128x96xf32> -> vector<128x96xf32>
    %c0_25 = arith.constant 0 : index
    %c2_26 = arith.constant 2 : index
    %c0_27 = arith.constant 0 : index
    %20 = vector.load %arg7[%c0_25, %c2_26, %c0_27] : memref<10x18x4xbf16, #tpu.memory_space<vmem>>, vector<8x16x4xbf16>
    %21 = vector.shape_cast %20 : vector<8x16x4xbf16> to vector<128x4xbf16>
    %c7 = arith.constant 7 : index
    %c0_28 = arith.constant 0 : index
    %c0_29 = arith.constant 0 : index
    %22 = vector.load %arg4[%c7, %c0_28, %c0_29] : memref<16x4x96xbf16, #tpu.memory_space<vmem>>, vector<1x4x96xbf16>
    %23 = vector.shape_cast %22 : vector<1x4x96xbf16> to vector<4x96xbf16>
    %cst_30 = arith.constant dense<0.000000e+00> : vector<128x96xf32>
    %24 = tpu.matmul %21, %23, %cst_30 {dimension_numbers = #tpu.dot_dimension_numbers<[1], [0], [0], [1], [0, 0, 1, 1], [], []>} : vector<128x4xbf16>, vector<4x96xbf16>, vector<128x96xf32> -> vector<128x96xf32>
    %25 = arith.addf %19, %24 : vector<128x96xf32>
    %c1_31 = arith.constant 1 : index
    %c0_32 = arith.constant 0 : index
    %c0_33 = arith.constant 0 : index
    %26 = vector.load %arg7[%c1_31, %c0_32, %c0_33] : memref<10x18x4xbf16, #tpu.memory_space<vmem>>, vector<8x16x4xbf16>
    %27 = vector.shape_cast %26 : vector<8x16x4xbf16> to vector<128x4xbf16>
    %c1_34 = arith.constant 1 : index
    %c0_35 = arith.constant 0 : index
    %c0_36 = arith.constant 0 : index
    %28 = vector.load %arg4[%c1_34, %c0_35, %c0_36] : memref<16x4x96xbf16, #tpu.memory_space<vmem>>, vector<1x4x96xbf16>
    %29 = vector.shape_cast %28 : vector<1x4x96xbf16> to vector<4x96xbf16>
    %cst_37 = arith.constant dense<0.000000e+00> : vector<128x96xf32>
    %30 = tpu.matmul %27, %29, %cst_37 {dimension_numbers = #tpu.dot_dimension_numbers<[1], [0], [0], [1], [0, 0, 1, 1], [], []>} : vector<128x4xbf16>, vector<4x96xbf16>, vector<128x96xf32> -> vector<128x96xf32>
    %31 = arith.addf %16, %30 : vector<128x96xf32>
    %c9 = arith.constant 9 : index
    %c0_38 = arith.constant 0 : index
    %c0_39 = arith.constant 0 : index
    %32 = vector.load %arg4[%c9, %c0_38, %c0_39] : memref<16x4x96xbf16, #tpu.memory_space<vmem>>, vector<1x4x96xbf16>
    %33 = vector.shape_cast %32 : vector<1x4x96xbf16> to vector<4x96xbf16>
    %cst_40 = arith.constant dense<0.000000e+00> : vector<128x96xf32>
    %34 = tpu.matmul %27, %33, %cst_40 {dimension_numbers = #tpu.dot_dimension_numbers<[1], [0], [0], [1], [0, 0, 1, 1], [], []>} : vector<128x4xbf16>, vector<4x96xbf16>, vector<128x96xf32> -> vector<128x96xf32>
    %c1_41 = arith.constant 1 : index
    %c1_42 = arith.constant 1 : index
    %c0_43 = arith.constant 0 : index
    %35 = vector.load %arg7[%c1_41, %c1_42, %c0_43] : memref<10x18x4xbf16, #tpu.memory_space<vmem>>, vector<8x16x4xbf16>
    %36 = vector.shape_cast %35 : vector<8x16x4xbf16> to vector<128x4xbf16>
    %c0_44 = arith.constant 0 : index
    %c0_45 = arith.constant 0 : index
    %c0_46 = arith.constant 0 : index
    %37 = vector.load %arg4[%c0_44, %c0_45, %c0_46] : memref<16x4x96xbf16, #tpu.memory_space<vmem>>, vector<1x4x96xbf16>
    %38 = vector.shape_cast %37 : vector<1x4x96xbf16> to vector<4x96xbf16>
    %cst_47 = arith.constant dense<0.000000e+00> : vector<128x96xf32>
    %39 = tpu.matmul %36, %38, %cst_47 {dimension_numbers = #tpu.dot_dimension_numbers<[1], [0], [0], [1], [0, 0, 1, 1], [], []>} : vector<128x4xbf16>, vector<4x96xbf16>, vector<128x96xf32> -> vector<128x96xf32>
    %40 = arith.addf %31, %39 : vector<128x96xf32>
    %c4 = arith.constant 4 : index
    %c0_48 = arith.constant 0 : index
    %c0_49 = arith.constant 0 : index
    %41 = vector.load %arg4[%c4, %c0_48, %c0_49] : memref<16x4x96xbf16, #tpu.memory_space<vmem>>, vector<1x4x96xbf16>
    %42 = vector.shape_cast %41 : vector<1x4x96xbf16> to vector<4x96xbf16>
    %cst_50 = arith.constant dense<0.000000e+00> : vector<128x96xf32>
    %43 = tpu.matmul %36, %42, %cst_50 {dimension_numbers = #tpu.dot_dimension_numbers<[1], [0], [0], [1], [0, 0, 1, 1], [], []>} : vector<128x4xbf16>, vector<4x96xbf16>, vector<128x96xf32> -> vector<128x96xf32>
    %44 = arith.addf %25, %43 : vector<128x96xf32>
    %c8_51 = arith.constant 8 : index
    %c0_52 = arith.constant 0 : index
    %c0_53 = arith.constant 0 : index
    %45 = vector.load %arg4[%c8_51, %c0_52, %c0_53] : memref<16x4x96xbf16, #tpu.memory_space<vmem>>, vector<1x4x96xbf16>
    %46 = vector.shape_cast %45 : vector<1x4x96xbf16> to vector<4x96xbf16>
    %cst_54 = arith.constant dense<0.000000e+00> : vector<128x96xf32>
    %47 = tpu.matmul %36, %46, %cst_54 {dimension_numbers = #tpu.dot_dimension_numbers<[1], [0], [0], [1], [0, 0, 1, 1], [], []>} : vector<128x4xbf16>, vector<4x96xbf16>, vector<128x96xf32> -> vector<128x96xf32>
    %48 = arith.addf %34, %47 : vector<128x96xf32>
    %c12 = arith.constant 12 : index
    %c0_55 = arith.constant 0 : index
    %c0_56 = arith.constant 0 : index
    %49 = vector.load %arg4[%c12, %c0_55, %c0_56] : memref<16x4x96xbf16, #tpu.memory_space<vmem>>, vector<1x4x96xbf16>
    %50 = vector.shape_cast %49 : vector<1x4x96xbf16> to vector<4x96xbf16>
    %cst_57 = arith.constant dense<0.000000e+00> : vector<128x96xf32>
    %51 = tpu.matmul %36, %50, %cst_57 {dimension_numbers = #tpu.dot_dimension_numbers<[1], [0], [0], [1], [0, 0, 1, 1], [], []>} : vector<128x4xbf16>, vector<4x96xbf16>, vector<128x96xf32> -> vector<128x96xf32>
    %c1_58 = arith.constant 1 : index
    %c2_59 = arith.constant 2 : index
    %c0_60 = arith.constant 0 : index
    %52 = vector.load %arg7[%c1_58, %c2_59, %c0_60] : memref<10x18x4xbf16, #tpu.memory_space<vmem>>, vector<8x16x4xbf16>
    %53 = vector.shape_cast %52 : vector<8x16x4xbf16> to vector<128x4xbf16>
    %c5 = arith.constant 5 : index
    %c0_61 = arith.constant 0 : index
    %c0_62 = arith.constant 0 : index
    %54 = vector.load %arg4[%c5, %c0_61, %c0_62] : memref<16x4x96xbf16, #tpu.memory_space<vmem>>, vector<1x4x96xbf16>
    %55 = vector.shape_cast %54 : vector<1x4x96xbf16> to vector<4x96xbf16>
    %cst_63 = arith.constant dense<0.000000e+00> : vector<128x96xf32>
    %56 = tpu.matmul %53, %55, %cst_63 {dimension_numbers = #tpu.dot_dimension_numbers<[1], [0], [0], [1], [0, 0, 1, 1], [], []>} : vector<128x4xbf16>, vector<4x96xbf16>, vector<128x96xf32> -> vector<128x96xf32>
    %57 = arith.addf %44, %56 : vector<128x96xf32>
    %c13 = arith.constant 13 : index
    %c0_64 = arith.constant 0 : index
    %c0_65 = arith.constant 0 : index
    %58 = vector.load %arg4[%c13, %c0_64, %c0_65] : memref<16x4x96xbf16, #tpu.memory_space<vmem>>, vector<1x4x96xbf16>
    %59 = vector.shape_cast %58 : vector<1x4x96xbf16> to vector<4x96xbf16>
    %cst_66 = arith.constant dense<0.000000e+00> : vector<128x96xf32>
    %60 = tpu.matmul %53, %59, %cst_66 {dimension_numbers = #tpu.dot_dimension_numbers<[1], [0], [0], [1], [0, 0, 1, 1], [], []>} : vector<128x4xbf16>, vector<4x96xbf16>, vector<128x96xf32> -> vector<128x96xf32>
    %61 = arith.addf %51, %60 : vector<128x96xf32>
    %c2_67 = arith.constant 2 : index
    %c0_68 = arith.constant 0 : index
    %c0_69 = arith.constant 0 : index
    %62 = vector.load %arg7[%c2_67, %c0_68, %c0_69] : memref<10x18x4xbf16, #tpu.memory_space<vmem>>, vector<8x16x4xbf16>
    %63 = vector.shape_cast %62 : vector<8x16x4xbf16> to vector<128x4xbf16>
    %c11 = arith.constant 11 : index
    %c0_70 = arith.constant 0 : index
    %c0_71 = arith.constant 0 : index
    %64 = vector.load %arg4[%c11, %c0_70, %c0_71] : memref<16x4x96xbf16, #tpu.memory_space<vmem>>, vector<1x4x96xbf16>
    %65 = vector.shape_cast %64 : vector<1x4x96xbf16> to vector<4x96xbf16>
    %cst_72 = arith.constant dense<0.000000e+00> : vector<128x96xf32>
    %66 = tpu.matmul %63, %65, %cst_72 {dimension_numbers = #tpu.dot_dimension_numbers<[1], [0], [0], [1], [0, 0, 1, 1], [], []>} : vector<128x4xbf16>, vector<4x96xbf16>, vector<128x96xf32> -> vector<128x96xf32>
    %67 = arith.addf %48, %66 : vector<128x96xf32>
    %c2_73 = arith.constant 2 : index
    %c1_74 = arith.constant 1 : index
    %c0_75 = arith.constant 0 : index
    %68 = vector.load %arg7[%c2_73, %c1_74, %c0_75] : memref<10x18x4xbf16, #tpu.memory_space<vmem>>, vector<8x16x4xbf16>
    %69 = vector.shape_cast %68 : vector<8x16x4xbf16> to vector<128x4xbf16>
    %c10 = arith.constant 10 : index
    %c0_76 = arith.constant 0 : index
    %c0_77 = arith.constant 0 : index
    %70 = vector.load %arg4[%c10, %c0_76, %c0_77] : memref<16x4x96xbf16, #tpu.memory_space<vmem>>, vector<1x4x96xbf16>
    %71 = vector.shape_cast %70 : vector<1x4x96xbf16> to vector<4x96xbf16>
    %cst_78 = arith.constant dense<0.000000e+00> : vector<128x96xf32>
    %72 = tpu.matmul %69, %71, %cst_78 {dimension_numbers = #tpu.dot_dimension_numbers<[1], [0], [0], [1], [0, 0, 1, 1], [], []>} : vector<128x4xbf16>, vector<4x96xbf16>, vector<128x96xf32> -> vector<128x96xf32>
    %73 = arith.addf %67, %72 : vector<128x96xf32>
    %c14 = arith.constant 14 : index
    %c0_79 = arith.constant 0 : index
    %c0_80 = arith.constant 0 : index
    %74 = vector.load %arg4[%c14, %c0_79, %c0_80] : memref<16x4x96xbf16, #tpu.memory_space<vmem>>, vector<1x4x96xbf16>
    %75 = vector.shape_cast %74 : vector<1x4x96xbf16> to vector<4x96xbf16>
    %cst_81 = arith.constant dense<0.000000e+00> : vector<128x96xf32>
    %76 = tpu.matmul %69, %75, %cst_81 {dimension_numbers = #tpu.dot_dimension_numbers<[1], [0], [0], [1], [0, 0, 1, 1], [], []>} : vector<128x4xbf16>, vector<4x96xbf16>, vector<128x96xf32> -> vector<128x96xf32>
    %77 = arith.addf %61, %76 : vector<128x96xf32>
    %c2_82 = arith.constant 2 : index
    %c2_83 = arith.constant 2 : index
    %c0_84 = arith.constant 0 : index
    %78 = vector.load %arg7[%c2_82, %c2_83, %c0_84] : memref<10x18x4xbf16, #tpu.memory_space<vmem>>, vector<8x16x4xbf16>
    %79 = vector.shape_cast %78 : vector<8x16x4xbf16> to vector<128x4xbf16>
    %c15 = arith.constant 15 : index
    %c0_85 = arith.constant 0 : index
    %c0_86 = arith.constant 0 : index
    %80 = vector.load %arg4[%c15, %c0_85, %c0_86] : memref<16x4x96xbf16, #tpu.memory_space<vmem>>, vector<1x4x96xbf16>
    %81 = vector.shape_cast %80 : vector<1x4x96xbf16> to vector<4x96xbf16>
    %cst_87 = arith.constant dense<0.000000e+00> : vector<128x96xf32>
    %82 = tpu.matmul %79, %81, %cst_87 {dimension_numbers = #tpu.dot_dimension_numbers<[1], [0], [0], [1], [0, 0, 1, 1], [], []>} : vector<128x4xbf16>, vector<4x96xbf16>, vector<128x96xf32> -> vector<128x96xf32>
    %83 = arith.addf %77, %82 : vector<128x96xf32>
    %84 = tpu.concatenate %40, %57, %73, %83 in 1 : vector<128x96xf32>, vector<128x96xf32>, vector<128x96xf32>, vector<128x96xf32> -> vector<128x384xf32>
    %c0_88 = arith.constant 0 : index
    %c0_89 = arith.constant 0 : index
    %85 = vector.load %arg5[%c0_88, %c0_89] : memref<1x384xf32, #tpu.memory_space<vmem>>, vector<1x384xf32>
    %86 = vector.broadcast %85 : vector<1x384xf32> to vector<128x384xf32>
    %87 = arith.addf %84, %86 : vector<128x384xf32>
    %c0_90 = arith.constant 0 : index
    %c0_91 = arith.constant 0 : index
    %c0_92 = arith.constant 0 : index
    %88 = vector.load %arg6[%c0_90, %c0_91, %c0_92] : memref<1x128x384xf32, #tpu.memory_space<vmem>>, vector<1x128x384xf32>
    %89 = vector.shape_cast %88 : vector<1x128x384xf32> to vector<128x384xf32>
    %90 = vector.shape_cast %87 : vector<128x384xf32> to vector<1x128x384xf32>
    tpu.vector_store %arg6[%c0_90, %c0_91, %c0_92], %90 {strides = array<i32>} : memref<1x128x384xf32, #tpu.memory_space<vmem>>, vector<1x128x384xf32>,
    return
  }
  func.func @transform_0(%arg0: i32, %arg1: i32) -> (i32, i32, i32, i32) {
    %c0_i32 = arith.constant 0 : i32
    %c0_i32_0 = arith.constant 0 : i32
    %c0_i32_1 = arith.constant 0 : i32
    return %arg0, %arg1, %c0_i32, %c0_i32_0 : i32, i32, i32, i32
  }
  func.func @transform_1(%arg0: i32, %arg1: i32) -> (i32, i32, i32, i32) {
    %c1_i32 = arith.constant 1 : i32
    %0 = arith.addi %arg1, %c1_i32 : i32
    %c4_i32 = arith.constant 4 : i32
    %1 = arith.muli %0, %c4_i32 : i32
    %c0_i32 = arith.constant 0 : i32
    %c0_i32_0 = arith.constant 0 : i32
    %c0_i32_1 = arith.constant 0 : i32
    return %arg0, %1, %c0_i32, %c0_i32_0 : i32, i32, i32, i32
  }
  func.func @transform_2(%arg0: i32, %arg1: i32) -> (i32, i32, i32) {
    %c0_i32 = arith.constant 0 : i32
    %c0_i32_0 = arith.constant 0 : i32
    %c0_i32_1 = arith.constant 0 : i32
    %c0_i32_2 = arith.constant 0 : i32
    return %c0_i32, %c0_i32_0, %c0_i32_1 : i32, i32, i32
  }
  func.func @transform_3(%arg0: i32, %arg1: i32) -> (i32, i32) {
    %c0_i32 = arith.constant 0 : i32
    %c0_i32_0 = arith.constant 0 : i32
    %c0_i32_1 = arith.constant 0 : i32
    return %c0_i32, %c0_i32_0 : i32, i32
  }
  func.func @transform_4(%arg0: i32, %arg1: i32) -> (i32, i32, i32) {
    %c0_i32 = arith.constant 0 : i32
    %c0_i32_0 = arith.constant 0 : i32
    return %arg0, %arg1, %c0_i32 : i32, i32, i32
  }
}

</mosaic_0001>

<llo_original>
// kernel: tpu_custom_call.1
$region0: #{tpu_custom_call.1}
  #allocation0 [shape = 'u32[]', space=smem, size = 0x4, offset = 0x4, fixed_abs, tag = 'smem constant byte address 0x4 - core index']
  #allocation1 [shape = 'u32[144,128]{1,0:T(1,128)}', space=vmem, size = 0x12000, scoped, tag = 'internal scratch']
  %s0 = inlined_call_operand.hbm [shape: f32[8,128], index: 0, kind: input, shape index: {}]
  %s1 = inlined_call_operand.hbm [shape: f32[8,128], index: 1, kind: output, shape index: {}]
  %s2 = sld [smem:[#allocation0]]
  $region18: #{tpu_custom_call.1} parent=0
    _
  %s4 = ssub.s32 1, %s2
  %s5 = scalar_select 0, %s4, %s2
  $region1: #{tpu_custom_call.1} parent=0
    #allocation2 [shape = 'u8[4096]{0}', space=vmem, size = 0x1000, scoped, tag = 'input window, operand 0, single buffered']
    #allocation3 [shape = 's32[1]{0}', space=sflag, size = 0x4, scoped, tag = 'scoped memory for tpu_custom_call.1']
    #allocation4 [shape = 's32[1]{0}', space=sflag, size = 0x4, scoped, tag = 'scoped memory for tpu_custom_call.1']
    #allocation5 [shape = 'u8[4096]{0}', space=vmem, size = 0x1000, scoped, tag = 'output window, operand 0, single buffered']
    %6 = vsyncpa [#allocation3], 0
    %7 = vsyncpa [#allocation4], 0
    // Predicated region
    $region2: #{tpu_custom_call.1} parent=1 // pred_check
      _
    $region3: #{tpu_custom_call.1} parent=1 // pred_check_branch
      %9 = sbr.rel (0) target = $region5
    $region4: #{tpu_custom_call.1} parent=1 // pred_region
      %s11 = ssub.s32 128, 128
      %12 = vsyncadd [#allocation3], %s11
      %s14 = sshll.u32 [#allocation2], 4
      %s15 = int_to_ptr.vmem [resolvable:$true] %s14
      %17 = dma.hbm_to_vmem [thread:$0]  %s0, 128, %s15, [#allocation3]
    $region5: #{tpu_custom_call.1} parent=1 // pred_fallthru
      _
    // Predicated region
    $region6: #{tpu_custom_call.1} parent=1 // pred_check
      _
    $region7: #{tpu_custom_call.1} parent=1 // pred_check_branch
      %19 = sbr.rel (0) target = $region9
    $region8: #{tpu_custom_call.1} parent=1 // pred_region
      %20 = dma.done [#allocation3], 128
    $region9: #{tpu_custom_call.1} parent=1 // pred_fallthru
      _
    %v21 = vld [vmem:[#allocation2] sm:$0xff]
    %22 = vst [vmem:[#allocation5] sm:$0xff] %v21
    // Predicated region
    $region10: #{tpu_custom_call.1} parent=1 // pred_check
      _
    $region11: #{tpu_custom_call.1} parent=1 // pred_check_branch
      %24 = sbr.rel (0) target = $region13
    $region12: #{tpu_custom_call.1} parent=1 // pred_region
      %s26 = ssub.s32 128, 128
      %27 = vsyncadd [#allocation4], %s26
      %s29 = sshll.u32 [#allocation5], 4
      %s30 = int_to_ptr.vmem [resolvable:$true] %s29
      %32 = dma.vmem_to_hbm [thread:$0]  %s30, 128, %s1, [#allocation4]
    $region13: #{tpu_custom_call.1} parent=1 // pred_fallthru
      _
    // Predicated region
    $region14: #{tpu_custom_call.1} parent=1 // pred_check
      _
    $region15: #{tpu_custom_call.1} parent=1 // pred_check_branch
      %34 = sbr.rel (0) target = $region17
    $region16: #{tpu_custom_call.1} parent=1 // pred_region
      %35 = dma.done [#allocation4], 128
    $region17: #{tpu_custom_call.1} parent=1 // pred_fallthru
      _
    %36 = vsyncpa [#allocation3], 1
    %37 = vsyncpa [#allocation4], 1

// kernel: densepose_predictor.1
$region0: #{densepose_predictor.1}
  #allocation0 [shape = 'u32[]', space=smem, size = 0x4, offset = 0x4, fixed_abs, tag = 'smem constant byte address 0x4 - core index']
  #allocation1 [shape = 'u32[144,128]{1,0:T(1,128)}', space=vmem, size = 0x12000, scoped, tag = 'internal scratch']
  #allocation2 [shape = 'bf16[10,18,4]{2,1,0:T(8,128)(2,1)}', space=vmem, size = 0xf000, scoped, tag = 'scratch operand']
  %s0 = inlined_call_operand.vmem [shape: bf16[2,18,18,4], index: 0, kind: input, shape index: {}, may-alias: {0,1}]
  %s1 = inlined_call_operand.vmem [shape: bf16[2,18,18,4], index: 1, kind: input, shape index: {}, may-alias: {0,1}]
  %s2 = inlined_call_operand.vmem [shape: bf16[16,4,96], index: 2, kind: input, shape index: {}]
  %s3 = inlined_call_operand.vmem [shape: f32[1,384], index: 3, kind: input, shape index: {}]
  %s4 = inlined_call_operand.vmem [shape: f32[2,256,384], index: 4, kind: output, shape index: {}]
  %s5 = sld [smem:[#allocation0]]
  $region49: #{densepose_predictor.1} parent=0
    _
  %s7 = ssub.s32 1, %s5
  %s8 = scalar_select 0, %s7, %s5
  loop: start=0, step=1, limit=6
  $region2: #{densepose_predictor.1} parent=0 // loop_pre_header
    _
  $region3: #{densepose_predictor.1} parent=0 // loop_header
    %s10 = sphi 0, %s14
    %p11 = scmp.ge.s32.totalorder %s10, 6
    %s17 = sphi 0, %s29
    %s18 = sphi 0, %s25
    %s19 = sphi 0, %s17
    %s20 = sphi 0, %s18
    %s21 = sphi 0, %s19
    %s22 = sphi 0, %s20
    %s34 = sphi 0, %s36
    %s37 = sphi 0, %s34
    %s38 = sphi 0, %s37
    %s54 = sphi 0, %s38
    %s66 = sphi 0, %s68
    %s69 = sphi 0, %s66
    %s70 = sphi 0, %s69
    %s86 = sphi 0, %s70
    %s90 = sphi 0, %s90
    %s92 = sphi 0, %s90
    %s93 = sphi 0, %s92
    %s107 = sphi 0, %s93
    %s111 = sphi 0, %s111
    %s113 = sphi 0, %s111
    %s114 = sphi 0, %s113
    %s128 = sphi 0, %s114
    %s136 = sphi 0, %s138
    %s139 = sphi 0, %s136
    %s140 = sphi 0, %s139
    %s156 = sphi 0, %s140
  $region4: #{densepose_predictor.1} parent=0 // loop_header_branch
    %13 = sbr.rel (%p11) target = $region8
  $region5: #{densepose_predictor.1} parent=0 // loop_body
    %s15 = ssub.s32 %s10, 1
    %s16 = ssub.s32 %s10, 2
    %s23 = sadd.s32 1, %s18
    %p24 = scmp.ge.s32.totalorder %s23, 2
    %s25 = scalar_select %p24, 0, %s23
    %s26 = sadd.s32 1, %s17
    %s27 = scalar_select %p24, %s26, %s17
    %p28 = scmp.ge.s32.totalorder %s27, 2
    %s29 = scalar_select %p28, 0, %s27
    %s30 = ssub.s32 %s17, %s29
    %s31 = ssub.s32 %s18, %s25
    %s32 = sor.u32 %s30, %s31
    %p33 = scmp.eq.s32.totalorder %s32, 0
    %s35 = sadd.s32 %s34, 1
    %s36 = scalar_select %p33, %s34, %s35
    %p39 = pneg %p33
    %p40 = scmp.eq.s32.totalorder %s10, 3
    %p41 = por %p39, %p40
    %p42 = scmp.ne.s32.totalorder %s34, %s37
    %p43 = scmp.eq.s32.totalorder %s10, 0
    %p44 = por %p42, %p43
    %p45 = scmp.ne.s32.totalorder %s34, %s37
    %p46 = scmp.eq.s32.totalorder %s15, 3
    %p47 = por %p45, %p46
    %p48 = scmp.ne.s32.totalorder %s37, %s38
    %p49 = scmp.eq.s32.totalorder %s15, 0
    %p50 = por %p48, %p49
    %p51 = scmp.ne.s32.totalorder %s37, %s38
    %p52 = scmp.eq.s32.totalorder %s16, 3
    %p53 = por %p51, %p52
    %p55 = scmp.ne.s32.totalorder %s38, %s54
    %p56 = scmp.eq.s32.totalorder %s16, 0
    %p57 = por %p55, %p56
    %s58 = sadd.s32 %s18, 1
    %s59 = smul.u32 %s58, 4
    %s60 = sadd.s32 %s25, 1
    %s61 = smul.u32 %s60, 4
    %s62 = ssub.s32 %s17, %s29
    %s63 = ssub.s32 %s59, %s61
    %s64 = sor.u32 %s62, %s63
    %p65 = scmp.eq.s32.totalorder %s64, 0
    %s67 = sadd.s32 %s66, 1
    %s68 = scalar_select %p65, %s66, %s67
    %p71 = pneg %p65
    %p72 = scmp.eq.s32.totalorder %s10, 3
    %p73 = por %p71, %p72
    %p74 = scmp.ne.s32.totalorder %s66, %s69
    %p75 = scmp.eq.s32.totalorder %s10, 0
    %p76 = por %p74, %p75
    %p77 = scmp.ne.s32.totalorder %s66, %s69
    %p78 = scmp.eq.s32.totalorder %s15, 3
    %p79 = por %p77, %p78
    %p80 = scmp.ne.s32.totalorder %s69, %s70
    %p81 = scmp.eq.s32.totalorder %s15, 0
    %p82 = por %p80, %p81
    %p83 = scmp.ne.s32.totalorder %s69, %s70
    %p84 = scmp.eq.s32.totalorder %s16, 3
    %p85 = por %p83, %p84
    %p87 = scmp.ne.s32.totalorder %s70, %s86
    %p88 = scmp.eq.s32.totalorder %s16, 0
    %p89 = por %p87, %p88
    %s91 = sadd.s32 %s90, 1
    %p94 = scmp.eq.s32.totalorder %s10, 3
    %p95 = scmp.ne.s32.totalorder %s90, %s92
    %p96 = scmp.eq.s32.totalorder %s10, 0
    %p97 = por %p95, %p96
    %p98 = scmp.ne.s32.totalorder %s90, %s92
    %p99 = scmp.eq.s32.totalorder %s15, 3
    %p100 = por %p98, %p99
    %p101 = scmp.ne.s32.totalorder %s92, %s93
    %p102 = scmp.eq.s32.totalorder %s15, 0
    %p103 = por %p101, %p102
    %p104 = scmp.ne.s32.totalorder %s92, %s93
    %p105 = scmp.eq.s32.totalorder %s16, 3
    %p106 = por %p104, %p105
    %p108 = scmp.ne.s32.totalorder %s93, %s107
    %p109 = scmp.eq.s32.totalorder %s16, 0
    %p110 = por %p108, %p109
    %s112 = sadd.s32 %s111, 1
    %p115 = scmp.eq.s32.totalorder %s10, 3
    %p116 = scmp.ne.s32.totalorder %s111, %s113
    %p117 = scmp.eq.s32.totalorder %s10, 0
    %p118 = por %p116, %p117
    %p119 = scmp.ne.s32.totalorder %s111, %s113
    %p120 = scmp.eq.s32.totalorder %s15, 3
    %p121 = por %p119, %p120
    %p122 = scmp.ne.s32.totalorder %s113, %s114
    %p123 = scmp.eq.s32.totalorder %s15, 0
    %p124 = por %p122, %p123
    %p125 = scmp.ne.s32.totalorder %s113, %s114
    %p126 = scmp.eq.s32.totalorder %s16, 3
    %p127 = por %p125, %p126
    %p129 = scmp.ne.s32.totalorder %s114, %s128
    %p130 = scmp.eq.s32.totalorder %s16, 0
    %p131 = por %p129, %p130
    %s132 = ssub.s32 %s17, %s29
    %s133 = ssub.s32 %s18, %s25
    %s134 = sor.u32 %s132, %s133
    %p135 = scmp.eq.s32.totalorder %s134, 0
    %s137 = sadd.s32 %s136, 1
    %s138 = scalar_select %p135, %s136, %s137
    %p141 = pneg %p135
    %p142 = scmp.eq.s32.totalorder %s10, 3
    %p143 = por %p141, %p142
    %p144 = scmp.ne.s32.totalorder %s136, %s139
    %p145 = scmp.eq.s32.totalorder %s10, 0
    %p146 = por %p144, %p145
    %p147 = scmp.ne.s32.totalorder %s136, %s139
    %p148 = scmp.eq.s32.totalorder %s15, 3
    %p149 = por %p147, %p148
    %p150 = scmp.ne.s32.totalorder %s139, %s140
    %p151 = scmp.eq.s32.totalorder %s15, 0
    %p152 = por %p150, %p151
    %p153 = scmp.ne.s32.totalorder %s139, %s140
    %p154 = scmp.eq.s32.totalorder %s16, 3
    %p155 = por %p153, %p154
    %p157 = scmp.ne.s32.totalorder %s140, %s156
    %p158 = scmp.eq.s32.totalorder %s16, 0
    %p159 = por %p157, %p158
    %p160 = scmp.le.s32.totalorder 1, %s10
    %p161 = scmp.lt.s32.totalorder %s10, 5
    %p162 = pnand %p160, %p161
    %p163 = pneg %p162
    // Predicated region
    $region9: #{densepose_predictor.1} parent=5 // pred_check
      _
    $region10: #{densepose_predictor.1} parent=5 // pred_check_branch
      %165 = sbr.rel (%p162) target = $region12
    $region11: #{densepose_predictor.1} parent=5 // pred_region
      %s166 = ssub.s32 %s10, 1
      // Predicated region
      $region13: #{densepose_predictor.1} parent=11 // pred_check
        %p167 = pneg %p103
      $region14: #{densepose_predictor.1} parent=11 // pred_check_branch
        %169 = sbr.rel (%p167) target = $region16
      $region15: #{densepose_predictor.1} parent=11 // pred_region
        _
      $region16: #{densepose_predictor.1} parent=11 // pred_fallthru
        _
      // Predicated region
      $region17: #{densepose_predictor.1} parent=11 // pred_check
        %p170 = pneg %p124
      $region18: #{densepose_predictor.1} parent=11 // pred_check_branch
        %172 = sbr.rel (%p170) target = $region20
      $region19: #{densepose_predictor.1} parent=11 // pred_region
        _
      $region20: #{densepose_predictor.1} parent=11 // pred_fallthru
        _
    $region12: #{densepose_predictor.1} parent=5 // pred_fallthru
      _
    %p173 = scmp.lt.s32.totalorder %s10, 4
    // Predicated region
    $region21: #{densepose_predictor.1} parent=5 // pred_check
      %p174 = pneg %p173
    $region22: #{densepose_predictor.1} parent=5 // pred_check_branch
      %176 = sbr.rel (%p174) target = $region24
    $region23: #{densepose_predictor.1} parent=5 // pred_region
      // Predicated region
      $region25: #{densepose_predictor.1} parent=23 // pred_check
        %p177 = pneg %p44
      $region26: #{densepose_predictor.1} parent=23 // pred_check_branch
        %179 = sbr.rel (%p177) target = $region28
      $region27: #{densepose_predictor.1} parent=23 // pred_region
        %s180 = smul.u32 8, %s18
        %s181 = ssub.s32 18, %s180
        %p182 = scmp.lt.s32.totalorder %s181, 8
        %s183 = scalar_select %p182, %s181, 8
        %s184 = smul.u32 64, %s183
        %s185 = smul.u32 %s184, 3
        %p186 = scmp.lt.s32.totalorder %s17, 1
        %s187 = scalar_select %p186, %s17, 1
        %p188 = scmp.lt.s32.totalorder %s180, 17
        %s189 = scalar_select %p188, %s180, 17
        %s190 = smul.addr %s189, 3
        %s191 = smul.addr %s187, 54
        %s192 = sadd.s32 %s190, %s191
        %s193 = smul.addr %s192, 4
        %s194 = scalar_lea.vmem %s0, %s193
        %s195 = smul.u32 8, %s18
        %s196 = ssub.s32 18, %s195
        %p197 = scmp.lt.s32.totalorder %s196, 8
        %s198 = scalar_select %p197, %s196, 8
        %s199 = smul.u32 64, %s198
        %s200 = smul.u32 %s199, 3
      $region28: #{densepose_predictor.1} parent=23 // pred_fallthru
        _
      // Predicated region
      $region29: #{densepose_predictor.1} parent=23 // pred_check
        %p201 = pneg %p76
      $region30: #{densepose_predictor.1} parent=23 // pred_check_branch
        %203 = sbr.rel (%p201) target = $region32
      $region31: #{densepose_predictor.1} parent=23 // pred_region
        %s204 = sadd.s32 %s18, 1
        %s205 = smul.u32 %s204, 4
        %s206 = smul.u32 2, %s205
        %p207 = scmp.lt.s32.totalorder %s17, 1
        %s208 = scalar_select %p207, %s17, 1
        %p209 = scmp.lt.s32.totalorder %s206, 17
        %s210 = scalar_select %p209, %s206, 17
        %s211 = smul.addr %s210, 3
        %s212 = smul.addr %s208, 54
        %s213 = sadd.s32 %s211, %s212
        %s214 = smul.addr %s213, 4
        %s215 = scalar_lea.vmem %s1, %s214
        %s216 = sadd.s32 %s18, 1
        %s217 = smul.u32 %s216, 4
        %s218 = smul.u32 2, %s217
      $region32: #{densepose_predictor.1} parent=23 // pred_fallthru
        _
    $region24: #{densepose_predictor.1} parent=5 // pred_fallthru
      _
    %p219 = scmp.le.s32.totalorder 1, %s10
    %p220 = scmp.lt.s32.totalorder %s10, 5
    %p221 = pnand %p219, %p220
    %p222 = pneg %p221
    // Predicated region
    $region33: #{densepose_predictor.1} parent=5 // pred_check
      _
    $region34: #{densepose_predictor.1} parent=5 // pred_check_branch
      %224 = sbr.rel (%p221) target = $region36
    $region35: #{densepose_predictor.1} parent=5 // pred_region
      %s225 = ssub.s32 %s10, 1
      %s226 = smul.u32 8, %s20
      %s227 = ssub.s32 18, %s226
      %p228 = scmp.lt.s32.totalorder %s227, 8
      %s229 = scalar_select %p228, %s227, 8
      %s230 = smul.u32 64, %s229
      %s231 = smul.u32 %s230, 3
      %p232 = scmp.lt.s32.totalorder %s19, 1
      %s233 = scalar_select %p232, %s19, 1
      %p234 = scmp.lt.s32.totalorder %s226, 17
      %s235 = scalar_select %p234, %s226, 17
      %s236 = smul.addr %s235, 3
      %s237 = smul.addr %s233, 54
      %s238 = sadd.s32 %s236, %s237
      %s239 = smul.addr %s238, 4
      %s240 = scalar_lea.vmem %s0, %s239
      %p241 = pneg %p50
      %p242 = pneg %p47
      %s243 = sadd.s32 %s20, 1
      %s244 = smul.u32 %s243, 4
      %s245 = smul.u32 2, %s244
      %p246 = scmp.lt.s32.totalorder %s19, 1
      %s247 = scalar_select %p246, %s19, 1
      %p248 = scmp.lt.s32.totalorder %s245, 17
      %s249 = scalar_select %p248, %s245, 17
      %s250 = smul.addr %s249, 3
      %s251 = smul.addr %s247, 54
      %s252 = sadd.s32 %s250, %s251
      %s253 = smul.addr %s252, 4
      %s254 = scalar_lea.vmem %s1, %s253
      %p255 = pneg %p82
      %p256 = pneg %p79
      %p257 = pneg %p103
      %p258 = pneg %p100
      %p259 = pneg %p124
      %p260 = pneg %p121
      %p261 = pneg %p152
      %p262 = pneg %p149
      %s263 = smul.u32 16, %s20
      %p264 = scmp.lt.s32.totalorder %s19, 1
      %s265 = scalar_select %p264, %s19, 1
      %p266 = scmp.lt.s32.totalorder %s263, 31
      %s267 = scalar_select %p266, %s263, 31
      %s268 = smul.addr %s267, 3
      %s269 = smul.addr %s265, 96
      %s270 = sadd.s32 %s268, %s269
      %s271 = smul.addr %s270, 8
      %s272 = scalar_lea.vmem %s4, %s271
      %s273 = smul.u32 8, %s20
      %s274 = ssub.s32 18, %s273
      %p275 = scmp.lt.s32.totalorder %s274, 8
      %s276 = scalar_select %p275, %s274, 8
      %s277 = smul.u32 64, %s276
      %s278 = smul.u32 %s277, 3
      %p279 = scmp.lt.s32.totalorder %s19, 1
      %s280 = scalar_select %p279, %s19, 1
      %p281 = scmp.lt.s32.totalorder %s273, 17
      %s282 = scalar_select %p281, %s273, 17
      %s283 = smul.addr %s282, 3
      %s284 = smul.addr %s280, 54
      %s285 = sadd.s32 %s283, %s284
      %s286 = smul.addr %s285, 4
      %s287 = scalar_lea.vmem %s0, %s286
      %s288 = smul.u32 8, %s20
      %s289 = ssub.s32 18, %s288
      %p290 = scmp.lt.s32.totalorder %s289, 8
      %s291 = scalar_select %p290, %s289, 8
      %s292 = smul.u32 64, %s291
      %s293 = smul.u32 %s292, 3
      %s294 = sadd.s32 %s20, 1
      %s295 = smul.u32 %s294, 4
      %s296 = smul.u32 2, %s295
      %p297 = scmp.lt.s32.totalorder %s19, 1
      %s298 = scalar_select %p297, %s19, 1
      %p299 = scmp.lt.s32.totalorder %s296, 17
      %s300 = scalar_select %p299, %s296, 17
      %s301 = smul.addr %s300, 3
      %s302 = smul.addr %s298, 54
      %s303 = sadd.s32 %s301, %s302
      %s304 = smul.addr %s303, 4
      %s305 = scalar_lea.vmem %s1, %s304
      %s306 = sadd.s32 %s20, 1
      %s307 = smul.u32 %s306, 4
      %s308 = smul.u32 2, %s307
      %s309 = smul.u32 16, %s20
      %p310 = scmp.lt.s32.totalorder %s19, 1
      %s311 = scalar_select %p310, %s19, 1
      %p312 = scmp.lt.s32.totalorder %s309, 31
      %s313 = scalar_select %p312, %s309, 31
      %s314 = smul.addr %s313, 3
      %s315 = smul.addr %s311, 96
      %s316 = sadd.s32 %s314, %s315
      %s317 = smul.addr %s316, 8
      %s318 = scalar_lea.vmem %s4, %s317
      %s319 = smul.u32 16, %s20
      %v321 = vld [vmem:[%s287] sm:$0xf]
      %v322 = vld [vmem:[%s287 + $0x4] sm:$0xf]
      %v323 = vld [vmem:[%s287 + $0x8] sm:$0x1]
      %v324 = vld [vmem:[%s287 + $0xc] sm:$0xf]
      %v325 = vld [vmem:[%s287 + $0x10] sm:$0xf]
      %v326 = vld [vmem:[%s287 + $0x14] sm:$0x1]
      %v327 = vld [vmem:[%s287 + $0x18] sm:$0xf]
      %v328 = vld [vmem:[%s287 + $0x1c] sm:$0xf]
      %v329 = vld [vmem:[%s287 + $0x20] sm:$0x1]
      %v330 = vld [vmem:[%s287 + $0x24] sm:$0xf]
      %v331 = vld [vmem:[%s287 + $0x28] sm:$0xf]
      %v332 = vld [vmem:[%s287 + $0x2c] sm:$0x1]
      %v333 = vld [vmem:[%s287 + $0x30] sm:$0xf]
      %v334 = vld [vmem:[%s287 + $0x34] sm:$0xf]
      %v335 = vld [vmem:[%s287 + $0x38] sm:$0x1]
      %v336 = vld [vmem:[%s287 + $0x3c] sm:$0xf]
      %v337 = vld [vmem:[%s287 + $0x40] sm:$0xf]
      %v338 = vld [vmem:[%s287 + $0x44] sm:$0x1]
      %v339 = vld [vmem:[%s287 + $0x48] sm:$0xf]
      %v340 = vld [vmem:[%s287 + $0x4c] sm:$0xf]
      %v341 = vld [vmem:[%s287 + $0x50] sm:$0x1]
      %v342 = vld [vmem:[%s287 + $0x54] sm:$0xf]
      %v343 = vld [vmem:[%s287 + $0x58] sm:$0xf]
      %v344 = vld [vmem:[%s287 + $0x5c] sm:$0x1]
      %vm345 = vcmask 27648
      %346 = vst.msk [vmem:[#allocation2] sm:$0xf] %vm345, %v321
      %347 = vst.msk [vmem:[#allocation2 + $0x4] sm:$0xf] %vm345, %v322
      %vm348 = vcmask 24576
      %349 = vst.msk [vmem:[#allocation2 + $0x8] sm:$0x1] %vm348, %v323
      %350 = vst.msk [vmem:[#allocation2 + $0xc] sm:$0xf] %vm345, %v324
      %351 = vst.msk [vmem:[#allocation2 + $0x10] sm:$0xf] %vm345, %v325
      %352 = vst.msk [vmem:[#allocation2 + $0x14] sm:$0x1] %vm348, %v326
      %353 = vst.msk [vmem:[#allocation2 + $0x18] sm:$0xf] %vm345, %v327
      %354 = vst.msk [vmem:[#allocation2 + $0x1c] sm:$0xf] %vm345, %v328
      %355 = vst.msk [vmem:[#allocation2 + $0x20] sm:$0x1] %vm348, %v329
      %356 = vst.msk [vmem:[#allocation2 + $0x24] sm:$0xf] %vm345, %v330
      %357 = vst.msk [vmem:[#allocation2 + $0x28] sm:$0xf] %vm345, %v331
      %358 = vst.msk [vmem:[#allocation2 + $0x2c] sm:$0x1] %vm348, %v332
      %359 = vst.msk [vmem:[#allocation2 + $0x30] sm:$0xf] %vm345, %v333
      %360 = vst.msk [vmem:[#allocation2 + $0x34] sm:$0xf] %vm345, %v334
      %361 = vst.msk [vmem:[#allocation2 + $0x38] sm:$0x1] %vm348, %v335
      %362 = vst.msk [vmem:[#allocation2 + $0x3c] sm:$0xf] %vm345, %v336
      %363 = vst.msk [vmem:[#allocation2 + $0x40] sm:$0xf] %vm345, %v337
      %364 = vst.msk [vmem:[#allocation2 + $0x44] sm:$0x1] %vm348, %v338
      %365 = vst.msk [vmem:[#allocation2 + $0x48] sm:$0xf] %vm345, %v339
      %366 = vst.msk [vmem:[#allocation2 + $0x4c] sm:$0xf] %vm345, %v340
      %367 = vst.msk [vmem:[#allocation2 + $0x50] sm:$0x1] %vm348, %v341
      %368 = vst.msk [vmem:[#allocation2 + $0x54] sm:$0xf] %vm345, %v342
      %369 = vst.msk [vmem:[#allocation2 + $0x58] sm:$0xf] %vm345, %v343
      %370 = vst.msk [vmem:[#allocation2 + $0x5c] sm:$0x1] %vm348, %v344
      %v371 = vld [vmem:[%s305] sm:$0xf]
      %v372 = vld [vmem:[%s305 + $0x4] sm:$0xf]
      %v373 = vld [vmem:[%s305 + $0x8] sm:$0x1]
      %v374 = vld [vmem:[%s305 + $0xc] sm:$0xf]
      %v375 = vld [vmem:[%s305 + $0x10] sm:$0xf]
      %v376 = vld [vmem:[%s305 + $0x14] sm:$0x1]
      %s377 = scalar_lea.vmem [#allocation2], 96
      %378 = vst.msk [vmem:[%s377] sm:$0xf] %vm345, %v371
      %379 = vst.msk [vmem:[%s377 + $0x4] sm:$0xf] %vm345, %v372
      %380 = vst.msk [vmem:[%s377 + $0x8] sm:$0x1] %vm348, %v373
      %381 = vst.msk [vmem:[%s377 + $0xc] sm:$0xf] %vm345, %v374
      %382 = vst.msk [vmem:[%s377 + $0x10] sm:$0xf] %vm345, %v375
      %383 = vst.msk [vmem:[%s377 + $0x14] sm:$0x1] %vm348, %v376
      %v384 = vld [vmem:[#allocation2] sm:$0xf]
      %v385 = vld [vmem:[#allocation2 + $0x4] sm:$0xf]
      %v386 = vld [vmem:[#allocation2 + $0xc] sm:$0xf]
      %v387 = vld [vmem:[#allocation2 + $0x10] sm:$0xf]
      %v388 = vld [vmem:[#allocation2 + $0x18] sm:$0xf]
      %v389 = vld [vmem:[#allocation2 + $0x1c] sm:$0xf]
      %v390 = vld [vmem:[#allocation2 + $0x24] sm:$0xf]
      %v391 = vld [vmem:[#allocation2 + $0x28] sm:$0xf]
      %v392 = vld [vmem:[#allocation2 + $0x30] sm:$0xf]
      %v393 = vld [vmem:[#allocation2 + $0x34] sm:$0xf]
      %v394 = vld [vmem:[#allocation2 + $0x3c] sm:$0xf]
      %v395 = vld [vmem:[#allocation2 + $0x40] sm:$0xf]
      %v396 = vld [vmem:[#allocation2 + $0x48] sm:$0xf]
      %v397 = vld [vmem:[#allocation2 + $0x4c] sm:$0xf]
      %v398 = vld [vmem:[#allocation2 + $0x54] sm:$0xf]
      %v399 = vld [vmem:[#allocation2 + $0x58] sm:$0xf]
      %s400 = scalar_lea.vmem %s2, 6
      %v401 = vld [vmem:[%s400] sm:$0x3]
      %v402 = vld [vmem:[#allocation2 + $0x8] sm:$0x1]
      %v403 = vld [vmem:[#allocation2 + $0x14] sm:$0x1]
      %v404 = vld [vmem:[#allocation2 + $0x20] sm:$0x1]
      %v405 = vld [vmem:[#allocation2 + $0x2c] sm:$0x1]
      %v406 = vld [vmem:[#allocation2 + $0x38] sm:$0x1]
      %v407 = vld [vmem:[#allocation2 + $0x44] sm:$0x1]
      %v408 = vld [vmem:[#allocation2 + $0x50] sm:$0x1]
      %v409 = vld [vmem:[#allocation2 + $0x5c] sm:$0x1]
      %vm410 = vsmask.f32 3328
      %vm411 = vsmask.f32 7440
      %vm412 = vmor %vm410, %vm411
      %v414 = vshrl.u32 %v384, 16
      %v416 = vrot.slane %v414, 4
      %v417 = vshll.u32 %v384, 16
      %v419 = vrot.slane %v417, 5
      %v420 = vor.u32 %v416, %v419
      %v421 = vrot.slane %v420, 4
      %v423 = vshll.u32 %v385, 16
      %v425 = vrot.slane %v423, 5
      %v426 = vsel %vm412, %v421, %v425
      %v427 = vshrl.u32 %v385, 16
      %v429 = vrot.slane %v427, 4
      %v430 = vor.u32 %v429, %v425
      %v431 = vrot.slane %v430, 4
      %v433 = vshll.u32 %v402, 16
      %v435 = vrot.slane %v433, 5
      %v436 = vsel %vm412, %v431, %v435
      %v438 = vshrl.u32 %v386, 16
      %v440 = vrot.slane %v438, 4
      %v441 = vshll.u32 %v386, 16
      %v443 = vrot.slane %v441, 5
      %v444 = vor.u32 %v440, %v443
      %v445 = vrot.slane %v444, 4
      %v447 = vshll.u32 %v387, 16
      %v449 = vrot.slane %v447, 5
      %v450 = vsel %vm412, %v445, %v449
      %v451 = vshrl.u32 %v387, 16
      %v453 = vrot.slane %v451, 4
      %v454 = vor.u32 %v453, %v449
      %v455 = vrot.slane %v454, 4
      %v457 = vshll.u32 %v403, 16
      %v459 = vrot.slane %v457, 5
      %v460 = vsel %vm412, %v455, %v459
      %v462 = vshrl.u32 %v388, 16
      %v464 = vrot.slane %v462, 4
      %v465 = vshll.u32 %v388, 16
      %v467 = vrot.slane %v465, 5
      %v468 = vor.u32 %v464, %v467
      %v469 = vrot.slane %v468, 4
      %v471 = vshll.u32 %v389, 16
      %v473 = vrot.slane %v471, 5
      %v474 = vsel %vm412, %v469, %v473
      %v475 = vshrl.u32 %v389, 16
      %v477 = vrot.slane %v475, 4
      %v478 = vor.u32 %v477, %v473
      %v479 = vrot.slane %v478, 4
      %v481 = vshll.u32 %v404, 16
      %v483 = vrot.slane %v481, 5
      %v484 = vsel %vm412, %v479, %v483
      %v486 = vshrl.u32 %v390, 16
      %v488 = vrot.slane %v486, 4
      %v489 = vshll.u32 %v390, 16
      %v491 = vrot.slane %v489, 5
      %v492 = vor.u32 %v488, %v491
      %v493 = vrot.slane %v492, 4
      %v495 = vshll.u32 %v391, 16
      %v497 = vrot.slane %v495, 5
      %v498 = vsel %vm412, %v493, %v497
      %v499 = vshrl.u32 %v391, 16
      %v501 = vrot.slane %v499, 4
      %v502 = vor.u32 %v501, %v497
      %v503 = vrot.slane %v502, 4
      %v505 = vshll.u32 %v405, 16
      %v507 = vrot.slane %v505, 5
      %v508 = vsel %vm412, %v503, %v507
      %v510 = vshrl.u32 %v392, 16
      %v512 = vrot.slane %v510, 4
      %v513 = vshll.u32 %v392, 16
      %v515 = vrot.slane %v513, 5
      %v516 = vor.u32 %v512, %v515
      %v517 = vrot.slane %v516, 4
      %v519 = vshll.u32 %v393, 16
      %v521 = vrot.slane %v519, 5
      %v522 = vsel %vm412, %v517, %v521
      %v523 = vshrl.u32 %v393, 16
      %v525 = vrot.slane %v523, 4
      %v526 = vor.u32 %v525, %v521
      %v527 = vrot.slane %v526, 4
      %v529 = vshll.u32 %v406, 16
      %v531 = vrot.slane %v529, 5
      %v532 = vsel %vm412, %v527, %v531
      %v534 = vshrl.u32 %v394, 16
      %v536 = vrot.slane %v534, 4
      %v537 = vshll.u32 %v394, 16
      %v539 = vrot.slane %v537, 5
      %v540 = vor.u32 %v536, %v539
      %v541 = vrot.slane %v540, 4
      %v543 = vshll.u32 %v395, 16
      %v545 = vrot.slane %v543, 5
      %v546 = vsel %vm412, %v541, %v545
      %v547 = vshrl.u32 %v395, 16
      %v549 = vrot.slane %v547, 4
      %v550 = vor.u32 %v549, %v545
      %v551 = vrot.slane %v550, 4
      %v553 = vshll.u32 %v407, 16
      %v555 = vrot.slane %v553, 5
      %v556 = vsel %vm412, %v551, %v555
      %v558 = vshrl.u32 %v396, 16
      %v560 = vrot.slane %v558, 4
      %v561 = vshll.u32 %v396, 16
      %v563 = vrot.slane %v561, 5
      %v564 = vor.u32 %v560, %v563
      %v565 = vrot.slane %v564, 4
      %v567 = vshll.u32 %v397, 16
      %v569 = vrot.slane %v567, 5
      %v570 = vsel %vm412, %v565, %v569
      %v571 = vshrl.u32 %v397, 16
      %v573 = vrot.slane %v571, 4
      %v574 = vor.u32 %v573, %v569
      %v575 = vrot.slane %v574, 4
      %v577 = vshll.u32 %v408, 16
      %v579 = vrot.slane %v577, 5
      %v580 = vsel %vm412, %v575, %v579
      %v582 = vshrl.u32 %v398, 16
      %v584 = vrot.slane %v582, 4
      %v585 = vshll.u32 %v398, 16
      %v587 = vrot.slane %v585, 5
      %v588 = vor.u32 %v584, %v587
      %v589 = vrot.slane %v588, 4
      %v591 = vshll.u32 %v399, 16
      %v593 = vrot.slane %v591, 5
      %v594 = vsel %vm412, %v589, %v593
      %v595 = vshrl.u32 %v399, 16
      %v597 = vrot.slane %v595, 4
      %v598 = vor.u32 %v597, %v593
      %v599 = vrot.slane %v598, 4
      %v601 = vshll.u32 %v409, 16
      %v603 = vrot.slane %v601, 5
      %v604 = vsel %vm412, %v599, %v603
      %s605 = scalar_lea.vmem %s2, 4
      %v606 = vld [vmem:[%s605] sm:$0x3]
      %v607 = vunpack.c.l.b16 %v426
      %v608 = vunpack.c.l.b16 %v436
      %v609 = vunpack.c.l.b16 %v450
      %v610 = vunpack.c.l.b16 %v460
      %v611 = vunpack.c.l.b16 %v474
      %v612 = vunpack.c.l.b16 %v484
      %v613 = vunpack.c.l.b16 %v498
      %v614 = vunpack.c.l.b16 %v508
      %v615 = vunpack.c.l.b16 %v522
      %v616 = vunpack.c.l.b16 %v532
      %v617 = vunpack.c.l.b16 %v546
      %v618 = vunpack.c.l.b16 %v556
      %v619 = vunpack.c.l.b16 %v570
      %v620 = vunpack.c.l.b16 %v580
      %v621 = vunpack.c.l.b16 %v594
      %v622 = vunpack.c.l.b16 %v604
      %v623 = vpack.c.b16 %v608, %v607
      %v624 = vpack.c.b16 %v610, %v609
      %v625 = vpack.c.b16 %v612, %v611
      %v626 = vpack.c.b16 %v614, %v613
      %v627 = vpack.c.b16 %v616, %v615
      %v628 = vpack.c.b16 %v618, %v617
      %v629 = vpack.c.b16 %v620, %v619
      %v630 = vpack.c.b16 %v622, %v621
      %vm631 = vcmask 31744
      %v633 = vsel %vm631, %v623, 0
      %v636 = vsel %vm631, %v624, 0
      %v639 = vsel %vm631, %v625, 0
      %v642 = vsel %vm631, %v626, 0
      %v645 = vsel %vm631, %v627, 0
      %v648 = vsel %vm631, %v628, 0
      %v651 = vsel %vm631, %v629, 0
      %v654 = vsel %vm631, %v630, 0
      %vm656 = vcmask 1041408
      %v658 = vsel %vm656, %v606, 0
      %660 = vmatprep.subr.bf16.mxu0 0
      %661 = vmatpush1.bf16.msra.mxu0 0
      %662 = vmatprep.subr.bf16.mxu0 0
      %663 = vmatpush1.bf16.msra.mxu0 0
      %664 = vmatprep.subr.bf16.mxu0 0
      %665 = vmatpush1.bf16.msra.mxu0 0
      %666 = vmatprep.subr.bf16.mxu0 0
      %667 = vmatpush1.bf16.msra.mxu0 0
      %668 = vmatprep.subr.bf16.mxu0 0
      %669 = vmatpush1.bf16.msra.mxu0 0
      %670 = vmatprep.subr.bf16.mxu0 0
      %671 = vmatpush1.bf16.msra.mxu0 0
      %672 = vmatprep.subr.bf16.mxu0 0
      %673 = vmatpush1.bf16.msra.mxu0 0
      %674 = vmatprep.subr.bf16.mxu0 0
      %675 = vmatpush1.bf16.msra.mxu0 %v658
      %676 = vmatprep.subr.bf16.mxu0 0
      %677 = vmatpush2.bf16.msra.mxu0 0
      %678 = vmatprep.subr.bf16.mxu0 0
      %679 = vmatpush2.bf16.msra.mxu0 0
      %680 = vmatprep.subr.bf16.mxu0 0
      %681 = vmatpush2.bf16.msra.mxu0 0
      %682 = vmatprep.subr.bf16.mxu0 0
      %683 = vmatpush2.bf16.msra.mxu0 0
      %684 = vmatprep.subr.bf16.mxu0 0
      %685 = vmatpush2.bf16.msra.mxu0 0
      %686 = vmatprep.subr.bf16.mxu0 0
      %687 = vmatpush2.bf16.msra.mxu0 0
      %688 = vmatprep.subr.bf16.mxu0 0
      %689 = vmatpush2.bf16.msra.mxu0 0
      %690 = vmatprep.subr.bf16.mxu0 0
      %691 = vmatpush2.bf16.msra.mxu0 0
      %692 = vmatprep.mubr.bf16.mxu0 0
      %693 = vmatmul.mubr.bf16.gmra.mxu0 %v633
      %v694 = vpop.f32.mrf.mxu0
      %v695 = vadd.f32 0.0, %v694
      %v696 = vpop.f32.mrf.mxu0
      %v697 = vpop.f32.mrf.mxu0
      %v698 = vadd.f32 0.0, %v697
      %v699 = vpop.f32.mrf.mxu0
      %700 = vmatprep.mubr.bf16.mxu0 0
      %701 = vmatmul.mubr.bf16.gmra.mxu0 %v636
      %v702 = vpop.f32.mrf.mxu0
      %v703 = vadd.f32 0.0, %v702
      %v704 = vpop.f32.mrf.mxu0
      %v705 = vpop.f32.mrf.mxu0
      %v706 = vadd.f32 0.0, %v705
      %v707 = vpop.f32.mrf.mxu0
      %708 = vmatprep.mubr.bf16.mxu0 0
      %709 = vmatmul.mubr.bf16.gmra.mxu0 %v639
      %v710 = vpop.f32.mrf.mxu0
      %v711 = vadd.f32 0.0, %v710
      %v712 = vpop.f32.mrf.mxu0
      %v713 = vpop.f32.mrf.mxu0
      %v714 = vadd.f32 0.0, %v713
      %v715 = vpop.f32.mrf.mxu0
      %716 = vmatprep.mubr.bf16.mxu0 0
      %717 = vmatmul.mubr.bf16.gmra.mxu0 %v642
      %v718 = vpop.f32.mrf.mxu0
      %v719 = vadd.f32 0.0, %v718
      %v720 = vpop.f32.mrf.mxu0
      %v721 = vpop.f32.mrf.mxu0
      %v722 = vadd.f32 0.0, %v721
      %v723 = vpop.f32.mrf.mxu0
      %724 = vmatprep.mubr.bf16.mxu0 0
      %725 = vmatmul.mubr.bf16.gmra.mxu0 %v645
      %v726 = vpop.f32.mrf.mxu0
      %v727 = vadd.f32 0.0, %v726
      %v728 = vpop.f32.mrf.mxu0
      %v729 = vpop.f32.mrf.mxu0
      %v730 = vadd.f32 0.0, %v729
      %v731 = vpop.f32.mrf.mxu0
      %732 = vmatprep.mubr.bf16.mxu0 0
      %733 = vmatmul.mubr.bf16.gmra.mxu0 %v648
      %v734 = vpop.f32.mrf.mxu0
      %v735 = vadd.f32 0.0, %v734
      %v736 = vpop.f32.mrf.mxu0
      %v737 = vpop.f32.mrf.mxu0
      %v738 = vadd.f32 0.0, %v737
      %v739 = vpop.f32.mrf.mxu0
      %740 = vmatprep.mubr.bf16.mxu0 0
      %741 = vmatmul.mubr.bf16.gmra.mxu0 %v651
      %v742 = vpop.f32.mrf.mxu0
      %v743 = vadd.f32 0.0, %v742
      %v744 = vpop.f32.mrf.mxu0
      %v745 = vpop.f32.mrf.mxu0
      %v746 = vadd.f32 0.0, %v745
      %v747 = vpop.f32.mrf.mxu0
      %748 = vmatprep.mubr.bf16.mxu0 0
      %749 = vmatmul.mubr.bf16.gmra.mxu0 %v654
      %v750 = vpop.f32.mrf.mxu0
      %v751 = vadd.f32 0.0, %v750
      %v752 = vpop.f32.mrf.mxu0
      %v753 = vpop.f32.mrf.mxu0
      %v754 = vadd.f32 0.0, %v753
      %v755 = vpop.f32.mrf.mxu0
      %756 = vdwg.mxu0
      %v773 = vunpack.c.l.b16 %v384
      %v774 = vunpack.c.l.b16 %v385
      %v775 = vunpack.c.l.b16 %v386
      %v776 = vunpack.c.l.b16 %v387
      %v777 = vunpack.c.l.b16 %v388
      %v778 = vunpack.c.l.b16 %v389
      %v779 = vunpack.c.l.b16 %v390
      %v780 = vunpack.c.l.b16 %v391
      %v781 = vunpack.c.l.b16 %v392
      %v782 = vunpack.c.l.b16 %v393
      %v783 = vunpack.c.l.b16 %v394
      %v784 = vunpack.c.l.b16 %v395
      %v785 = vunpack.c.l.b16 %v396
      %v786 = vunpack.c.l.b16 %v397
      %v787 = vunpack.c.l.b16 %v398
      %v788 = vunpack.c.l.b16 %v399
      %v789 = vpack.c.b16 %v774, %v773
      %v790 = vpack.c.b16 %v776, %v775
      %v791 = vpack.c.b16 %v778, %v777
      %v792 = vpack.c.b16 %v780, %v779
      %v793 = vpack.c.b16 %v782, %v781
      %v794 = vpack.c.b16 %v784, %v783
      %v795 = vpack.c.b16 %v786, %v785
      %v796 = vpack.c.b16 %v788, %v787
      %v798 = vsel %vm631, %v789, 0
      %v801 = vsel %vm631, %v790, 0
      %v804 = vsel %vm631, %v791, 0
      %v807 = vsel %vm631, %v792, 0
      %v810 = vsel %vm631, %v793, 0
      %v813 = vsel %vm631, %v794, 0
      %v816 = vsel %vm631, %v795, 0
      %v819 = vsel %vm631, %v796, 0
      %v822 = vsel %vm656, %v401, 0
      %824 = vmatprep.subr.bf16.mxu0 0
      %825 = vmatpush1.bf16.msra.mxu0 0
      %826 = vmatprep.subr.bf16.mxu0 0
      %827 = vmatpush1.bf16.msra.mxu0 0
      %828 = vmatprep.subr.bf16.mxu0 0
      %829 = vmatpush1.bf16.msra.mxu0 0
      %830 = vmatprep.subr.bf16.mxu0 0
      %831 = vmatpush1.bf16.msra.mxu0 0
      %832 = vmatprep.subr.bf16.mxu0 0
      %833 = vmatpush1.bf16.msra.mxu0 0
      %834 = vmatprep.subr.bf16.mxu0 0
      %835 = vmatpush1.bf16.msra.mxu0 0
      %836 = vmatprep.subr.bf16.mxu0 0
      %837 = vmatpush1.bf16.msra.mxu0 0
      %838 = vmatprep.subr.bf16.mxu0 0
      %839 = vmatpush1.bf16.msra.mxu0 %v822
      %840 = vmatprep.subr.bf16.mxu0 0
      %841 = vmatpush2.bf16.msra.mxu0 0
      %842 = vmatprep.subr.bf16.mxu0 0
      %843 = vmatpush2.bf16.msra.mxu0 0
      %844 = vmatprep.subr.bf16.mxu0 0
      %845 = vmatpush2.bf16.msra.mxu0 0
      %846 = vmatprep.subr.bf16.mxu0 0
      %847 = vmatpush2.bf16.msra.mxu0 0
      %848 = vmatprep.subr.bf16.mxu0 0
      %849 = vmatpush2.bf16.msra.mxu0 0
      %850 = vmatprep.subr.bf16.mxu0 0
      %851 = vmatpush2.bf16.msra.mxu0 0
      %852 = vmatprep.subr.bf16.mxu0 0
      %853 = vmatpush2.bf16.msra.mxu0 0
      %854 = vmatprep.subr.bf16.mxu0 0
      %855 = vmatpush2.bf16.msra.mxu0 0
      %856 = vmatprep.mubr.bf16.mxu0 0
      %857 = vmatmul.mubr.bf16.gmra.mxu0 %v798
      %v858 = vpop.f32.mrf.mxu0
      %v859 = vadd.f32 %v695, %v858
      %v860 = vpop.f32.mrf.mxu0
      %v861 = vpop.f32.mrf.mxu0
      %v862 = vadd.f32 %v698, %v861
      %v863 = vpop.f32.mrf.mxu0
      %864 = vmatprep.mubr.bf16.mxu0 0
      %865 = vmatmul.mubr.bf16.gmra.mxu0 %v801
      %v866 = vpop.f32.mrf.mxu0
      %v867 = vadd.f32 %v703, %v866
      %v868 = vpop.f32.mrf.mxu0
      %v869 = vpop.f32.mrf.mxu0
      %v870 = vadd.f32 %v706, %v869
      %v871 = vpop.f32.mrf.mxu0
      %872 = vmatprep.mubr.bf16.mxu0 0
      %873 = vmatmul.mubr.bf16.gmra.mxu0 %v804
      %v874 = vpop.f32.mrf.mxu0
      %v875 = vadd.f32 %v711, %v874
      %v876 = vpop.f32.mrf.mxu0
      %v877 = vpop.f32.mrf.mxu0
      %v878 = vadd.f32 %v714, %v877
      %v879 = vpop.f32.mrf.mxu0
      %880 = vmatprep.mubr.bf16.mxu0 0
      %881 = vmatmul.mubr.bf16.gmra.mxu0 %v807
      %v882 = vpop.f32.mrf.mxu0
      %v883 = vadd.f32 %v719, %v882
      %v884 = vpop.f32.mrf.mxu0
      %v885 = vpop.f32.mrf.mxu0
      %v886 = vadd.f32 %v722, %v885
      %v887 = vpop.f32.mrf.mxu0
      %888 = vmatprep.mubr.bf16.mxu0 0
      %889 = vmatmul.mubr.bf16.gmra.mxu0 %v810
      %v890 = vpop.f32.mrf.mxu0
      %v891 = vadd.f32 %v727, %v890
      %v892 = vpop.f32.mrf.mxu0
      %v893 = vpop.f32.mrf.mxu0
      %v894 = vadd.f32 %v730, %v893
      %v895 = vpop.f32.mrf.mxu0
      %896 = vmatprep.mubr.bf16.mxu0 0
      %897 = vmatmul.mubr.bf16.gmra.mxu0 %v813
      %v898 = vpop.f32.mrf.mxu0
      %v899 = vadd.f32 %v735, %v898
      %v900 = vpop.f32.mrf.mxu0
      %v901 = vpop.f32.mrf.mxu0
      %v902 = vadd.f32 %v738, %v901
      %v903 = vpop.f32.mrf.mxu0
      %904 = vmatprep.mubr.bf16.mxu0 0
      %905 = vmatmul.mubr.bf16.gmra.mxu0 %v816
      %v906 = vpop.f32.mrf.mxu0
      %v907 = vadd.f32 %v743, %v906
      %v908 = vpop.f32.mrf.mxu0
      %v909 = vpop.f32.mrf.mxu0
      %v910 = vadd.f32 %v746, %v909
      %v911 = vpop.f32.mrf.mxu0
      %912 = vmatprep.mubr.bf16.mxu0 0
      %913 = vmatmul.mubr.bf16.gmra.mxu0 %v819
      %v914 = vpop.f32.mrf.mxu0
      %v915 = vadd.f32 %v751, %v914
      %v916 = vpop.f32.mrf.mxu0
      %v917 = vpop.f32.mrf.mxu0
      %v918 = vadd.f32 %v754, %v917
      %v919 = vpop.f32.mrf.mxu0
      %920 = vdwg.mxu0
      %s921 = scalar_lea.vmem %s2, 12
      %v922 = vld [vmem:[%s921] sm:$0x3]
      %v923 = vld [vmem:[#allocation2] sm:$0xe]
      %v924 = vld [vmem:[#allocation2 + $0xc] sm:$0xe]
      %v925 = vld [vmem:[#allocation2 + $0x18] sm:$0xe]
      %v926 = vld [vmem:[#allocation2 + $0x24] sm:$0xe]
      %v927 = vld [vmem:[#allocation2 + $0x30] sm:$0xe]
      %v928 = vld [vmem:[#allocation2 + $0x3c] sm:$0xe]
      %v929 = vld [vmem:[#allocation2 + $0x48] sm:$0xe]
      %v930 = vld [vmem:[#allocation2 + $0x54] sm:$0xe]
      %vm947 = vcmask 1042432
      %vm948 = vcmask 1046532
      %vm949 = vmor %vm947, %vm948
      %v950 = vrot.slane %v923, 5
      %v951 = vrot.slane %v950, 4
      %v952 = vrot.slane %v385, 5
      %v953 = vsel %vm949, %v951, %v952
      %v954 = vrot.slane %v952, 4
      %v955 = vrot.slane %v402, 5
      %v956 = vsel %vm949, %v954, %v955
      %v957 = vrot.slane %v924, 5
      %v958 = vrot.slane %v957, 4
      %v959 = vrot.slane %v387, 5
      %v960 = vsel %vm949, %v958, %v959
      %v961 = vrot.slane %v959, 4
      %v962 = vrot.slane %v403, 5
      %v963 = vsel %vm949, %v961, %v962
      %v964 = vrot.slane %v925, 5
      %v965 = vrot.slane %v964, 4
      %v966 = vrot.slane %v389, 5
      %v967 = vsel %vm949, %v965, %v966
      %v968 = vrot.slane %v966, 4
      %v969 = vrot.slane %v404, 5
      %v970 = vsel %vm949, %v968, %v969
      %v971 = vrot.slane %v926, 5
      %v972 = vrot.slane %v971, 4
      %v973 = vrot.slane %v391, 5
      %v974 = vsel %vm949, %v972, %v973
      %v975 = vrot.slane %v973, 4
      %v976 = vrot.slane %v405, 5
      %v977 = vsel %vm949, %v975, %v976
      %v978 = vrot.slane %v927, 5
      %v979 = vrot.slane %v978, 4
      %v980 = vrot.slane %v393, 5
      %v981 = vsel %vm949, %v979, %v980
      %v982 = vrot.slane %v980, 4
      %v983 = vrot.slane %v406, 5
      %v984 = vsel %vm949, %v982, %v983
      %v985 = vrot.slane %v928, 5
      %v986 = vrot.slane %v985, 4
      %v987 = vrot.slane %v395, 5
      %v988 = vsel %vm949, %v986, %v987
      %v989 = vrot.slane %v987, 4
      %v990 = vrot.slane %v407, 5
      %v991 = vsel %vm949, %v989, %v990
      %v992 = vrot.slane %v929, 5
      %v993 = vrot.slane %v992, 4
      %v994 = vrot.slane %v397, 5
      %v995 = vsel %vm949, %v993, %v994
      %v996 = vrot.slane %v994, 4
      %v997 = vrot.slane %v408, 5
      %v998 = vsel %vm949, %v996, %v997
      %v999 = vrot.slane %v930, 5
      %v1000 = vrot.slane %v999, 4
      %v1001 = vrot.slane %v399, 5
      %v1002 = vsel %vm949, %v1000, %v1001
      %v1003 = vrot.slane %v1001, 4
      %v1004 = vrot.slane %v409, 5
      %v1005 = vsel %vm949, %v1003, %v1004
      %s1006 = scalar_lea.vmem %s2, 14
      %v1007 = vld [vmem:[%s1006] sm:$0x3]
      %v1008 = vunpack.c.l.b16 %v953
      %v1009 = vunpack.c.l.b16 %v956
      %v1010 = vunpack.c.l.b16 %v960
      %v1011 = vunpack.c.l.b16 %v963
      %v1012 = vunpack.c.l.b16 %v967
      %v1013 = vunpack.c.l.b16 %v970
      %v1014 = vunpack.c.l.b16 %v974
      %v1015 = vunpack.c.l.b16 %v977
      %v1016 = vunpack.c.l.b16 %v981
      %v1017 = vunpack.c.l.b16 %v984
      %v1018 = vunpack.c.l.b16 %v988
      %v1019 = vunpack.c.l.b16 %v991
      %v1020 = vunpack.c.l.b16 %v995
      %v1021 = vunpack.c.l.b16 %v998
      %v1022 = vunpack.c.l.b16 %v1002
      %v1023 = vunpack.c.l.b16 %v1005
      %v1024 = vpack.c.b16 %v1009, %v1008
      %v1025 = vpack.c.b16 %v1011, %v1010
      %v1026 = vpack.c.b16 %v1013, %v1012
      %v1027 = vpack.c.b16 %v1015, %v1014
      %v1028 = vpack.c.b16 %v1017, %v1016
      %v1029 = vpack.c.b16 %v1019, %v1018
      %v1030 = vpack.c.b16 %v1021, %v1020
      %v1031 = vpack.c.b16 %v1023, %v1022
      %v1033 = vsel %vm631, %v1024, 0
      %v1036 = vsel %vm631, %v1025, 0
      %v1039 = vsel %vm631, %v1026, 0
      %v1042 = vsel %vm631, %v1027, 0
      %v1045 = vsel %vm631, %v1028, 0
      %v1048 = vsel %vm631, %v1029, 0
      %v1051 = vsel %vm631, %v1030, 0
      %v1054 = vsel %vm631, %v1031, 0
      %v1057 = vsel %vm656, %v1007, 0
      %1059 = vmatprep.subr.bf16.mxu0 0
      %1060 = vmatpush1.bf16.msra.mxu0 0
      %1061 = vmatprep.subr.bf16.mxu0 0
      %1062 = vmatpush1.bf16.msra.mxu0 0
      %1063 = vmatprep.subr.bf16.mxu0 0
      %1064 = vmatpush1.bf16.msra.mxu0 0
      %1065 = vmatprep.subr.bf16.mxu0 0
      %1066 = vmatpush1.bf16.msra.mxu0 0
      %1067 = vmatprep.subr.bf16.mxu0 0
      %1068 = vmatpush1.bf16.msra.mxu0 0
      %1069 = vmatprep.subr.bf16.mxu0 0
      %1070 = vmatpush1.bf16.msra.mxu0 0
      %1071 = vmatprep.subr.bf16.mxu0 0
      %1072 = vmatpush1.bf16.msra.mxu0 0
      %1073 = vmatprep.subr.bf16.mxu0 0
      %1074 = vmatpush1.bf16.msra.mxu0 %v1057
      %1075 = vmatprep.subr.bf16.mxu0 0
      %1076 = vmatpush2.bf16.msra.mxu0 0
      %1077 = vmatprep.subr.bf16.mxu0 0
      %1078 = vmatpush2.bf16.msra.mxu0 0
      %1079 = vmatprep.subr.bf16.mxu0 0
      %1080 = vmatpush2.bf16.msra.mxu0 0
      %1081 = vmatprep.subr.bf16.mxu0 0
      %1082 = vmatpush2.bf16.msra.mxu0 0
      %1083 = vmatprep.subr.bf16.mxu0 0
      %1084 = vmatpush2.bf16.msra.mxu0 0
      %1085 = vmatprep.subr.bf16.mxu0 0
      %1086 = vmatpush2.bf16.msra.mxu0 0
      %1087 = vmatprep.subr.bf16.mxu0 0
      %1088 = vmatpush2.bf16.msra.mxu0 0
      %1089 = vmatprep.subr.bf16.mxu0 0
      %1090 = vmatpush2.bf16.msra.mxu0 0
      %1091 = vmatprep.mubr.bf16.mxu0 0
      %1092 = vmatmul.mubr.bf16.gmra.mxu0 %v1033
      %v1093 = vpop.f32.mrf.mxu0
      %v1094 = vadd.f32 0.0, %v1093
      %v1095 = vpop.f32.mrf.mxu0
      %v1096 = vpop.f32.mrf.mxu0
      %v1097 = vadd.f32 0.0, %v1096
      %v1098 = vpop.f32.mrf.mxu0
      %1099 = vmatprep.mubr.bf16.mxu0 0
      %1100 = vmatmul.mubr.bf16.gmra.mxu0 %v1036
      %v1101 = vpop.f32.mrf.mxu0
      %v1102 = vadd.f32 0.0, %v1101
      %v1103 = vpop.f32.mrf.mxu0
      %v1104 = vpop.f32.mrf.mxu0
      %v1105 = vadd.f32 0.0, %v1104
      %v1106 = vpop.f32.mrf.mxu0
      %1107 = vmatprep.mubr.bf16.mxu0 0
      %1108 = vmatmul.mubr.bf16.gmra.mxu0 %v1039
      %v1109 = vpop.f32.mrf.mxu0
      %v1110 = vadd.f32 0.0, %v1109
      %v1111 = vpop.f32.mrf.mxu0
      %v1112 = vpop.f32.mrf.mxu0
      %v1113 = vadd.f32 0.0, %v1112
      %v1114 = vpop.f32.mrf.mxu0
      %1115 = vmatprep.mubr.bf16.mxu0 0
      %1116 = vmatmul.mubr.bf16.gmra.mxu0 %v1042
      %v1117 = vpop.f32.mrf.mxu0
      %v1118 = vadd.f32 0.0, %v1117
      %v1119 = vpop.f32.mrf.mxu0
      %v1120 = vpop.f32.mrf.mxu0
      %v1121 = vadd.f32 0.0, %v1120
      %v1122 = vpop.f32.mrf.mxu0
      %1123 = vmatprep.mubr.bf16.mxu0 0
      %1124 = vmatmul.mubr.bf16.gmra.mxu0 %v1045
      %v1125 = vpop.f32.mrf.mxu0
      %v1126 = vadd.f32 0.0, %v1125
      %v1127 = vpop.f32.mrf.mxu0
      %v1128 = vpop.f32.mrf.mxu0
      %v1129 = vadd.f32 0.0, %v1128
      %v1130 = vpop.f32.mrf.mxu0
      %1131 = vmatprep.mubr.bf16.mxu0 0
      %1132 = vmatmul.mubr.bf16.gmra.mxu0 %v1048
      %v1133 = vpop.f32.mrf.mxu0
      %v1134 = vadd.f32 0.0, %v1133
      %v1135 = vpop.f32.mrf.mxu0
      %v1136 = vpop.f32.mrf.mxu0
      %v1137 = vadd.f32 0.0, %v1136
      %v1138 = vpop.f32.mrf.mxu0
      %1139 = vmatprep.mubr.bf16.mxu0 0
      %1140 = vmatmul.mubr.bf16.gmra.mxu0 %v1051
      %v1141 = vpop.f32.mrf.mxu0
      %v1142 = vadd.f32 0.0, %v1141
      %v1143 = vpop.f32.mrf.mxu0
      %v1144 = vpop.f32.mrf.mxu0
      %v1145 = vadd.f32 0.0, %v1144
      %v1146 = vpop.f32.mrf.mxu0
      %1147 = vmatprep.mubr.bf16.mxu0 0
      %1148 = vmatmul.mubr.bf16.gmra.mxu0 %v1054
      %v1149 = vpop.f32.mrf.mxu0
      %v1150 = vadd.f32 0.0, %v1149
      %v1151 = vpop.f32.mrf.mxu0
      %v1152 = vpop.f32.mrf.mxu0
      %v1153 = vadd.f32 0.0, %v1152
      %v1154 = vpop.f32.mrf.mxu0
      %1155 = vdwg.mxu0
      %v1157 = vsel %vm656, %v922, 0
      %1159 = vmatprep.subr.bf16.mxu0 0
      %1160 = vmatpush1.bf16.msra.mxu0 0
      %1161 = vmatprep.subr.bf16.mxu0 0
      %1162 = vmatpush1.bf16.msra.mxu0 0
      %1163 = vmatprep.subr.bf16.mxu0 0
      %1164 = vmatpush1.bf16.msra.mxu0 0
      %1165 = vmatprep.subr.bf16.mxu0 0
      %1166 = vmatpush1.bf16.msra.mxu0 0
      %1167 = vmatprep.subr.bf16.mxu0 0
      %1168 = vmatpush1.bf16.msra.mxu0 0
      %1169 = vmatprep.subr.bf16.mxu0 0
      %1170 = vmatpush1.bf16.msra.mxu0 0
      %1171 = vmatprep.subr.bf16.mxu0 0
      %1172 = vmatpush1.bf16.msra.mxu0 0
      %1173 = vmatprep.subr.bf16.mxu0 0
      %1174 = vmatpush1.bf16.msra.mxu0 %v1157
      %1175 = vmatprep.subr.bf16.mxu0 0
      %1176 = vmatpush2.bf16.msra.mxu0 0
      %1177 = vmatprep.subr.bf16.mxu0 0
      %1178 = vmatpush2.bf16.msra.mxu0 0
      %1179 = vmatprep.subr.bf16.mxu0 0
      %1180 = vmatpush2.bf16.msra.mxu0 0
      %1181 = vmatprep.subr.bf16.mxu0 0
      %1182 = vmatpush2.bf16.msra.mxu0 0
      %1183 = vmatprep.subr.bf16.mxu0 0
      %1184 = vmatpush2.bf16.msra.mxu0 0
      %1185 = vmatprep.subr.bf16.mxu0 0
      %1186 = vmatpush2.bf16.msra.mxu0 0
      %1187 = vmatprep.subr.bf16.mxu0 0
      %1188 = vmatpush2.bf16.msra.mxu0 0
      %1189 = vmatprep.subr.bf16.mxu0 0
      %1190 = vmatpush2.bf16.msra.mxu0 0
      %1191 = vmatprep.mubr.bf16.mxu0 0
      %1192 = vmatmul.mubr.bf16.gmra.mxu0 %v633
      %v1193 = vpop.f32.mrf.mxu0
      %v1194 = vadd.f32 %v1094, %v1193
      %v1195 = vpop.f32.mrf.mxu0
      %v1196 = vpop.f32.mrf.mxu0
      %v1197 = vadd.f32 %v1097, %v1196
      %v1198 = vpop.f32.mrf.mxu0
      %1199 = vmatprep.mubr.bf16.mxu0 0
      %1200 = vmatmul.mubr.bf16.gmra.mxu0 %v636
      %v1201 = vpop.f32.mrf.mxu0
      %v1202 = vadd.f32 %v1102, %v1201
      %v1203 = vpop.f32.mrf.mxu0
      %v1204 = vpop.f32.mrf.mxu0
      %v1205 = vadd.f32 %v1105, %v1204
      %v1206 = vpop.f32.mrf.mxu0
      %1207 = vmatprep.mubr.bf16.mxu0 0
      %1208 = vmatmul.mubr.bf16.gmra.mxu0 %v639
      %v1209 = vpop.f32.mrf.mxu0
      %v1210 = vadd.f32 %v1110, %v1209
      %v1211 = vpop.f32.mrf.mxu0
      %v1212 = vpop.f32.mrf.mxu0
      %v1213 = vadd.f32 %v1113, %v1212
      %v1214 = vpop.f32.mrf.mxu0
      %1215 = vmatprep.mubr.bf16.mxu0 0
      %1216 = vmatmul.mubr.bf16.gmra.mxu0 %v642
      %v1217 = vpop.f32.mrf.mxu0
      %v1218 = vadd.f32 %v1118, %v1217
      %v1219 = vpop.f32.mrf.mxu0
      %v1220 = vpop.f32.mrf.mxu0
      %v1221 = vadd.f32 %v1121, %v1220
      %v1222 = vpop.f32.mrf.mxu0
      %1223 = vmatprep.mubr.bf16.mxu0 0
      %1224 = vmatmul.mubr.bf16.gmra.mxu0 %v645
      %v1225 = vpop.f32.mrf.mxu0
      %v1226 = vadd.f32 %v1126, %v1225
      %v1227 = vpop.f32.mrf.mxu0
      %v1228 = vpop.f32.mrf.mxu0
      %v1229 = vadd.f32 %v1129, %v1228
      %v1230 = vpop.f32.mrf.mxu0
      %1231 = vmatprep.mubr.bf16.mxu0 0
      %1232 = vmatmul.mubr.bf16.gmra.mxu0 %v648
      %v1233 = vpop.f32.mrf.mxu0
      %v1234 = vadd.f32 %v1134, %v1233
      %v1235 = vpop.f32.mrf.mxu0
      %v1236 = vpop.f32.mrf.mxu0
      %v1237 = vadd.f32 %v1137, %v1236
      %v1238 = vpop.f32.mrf.mxu0
      %1239 = vmatprep.mubr.bf16.mxu0 0
      %1240 = vmatmul.mubr.bf16.gmra.mxu0 %v651
      %v1241 = vpop.f32.mrf.mxu0
      %v1242 = vadd.f32 %v1142, %v1241
      %v1243 = vpop.f32.mrf.mxu0
      %v1244 = vpop.f32.mrf.mxu0
      %v1245 = vadd.f32 %v1145, %v1244
      %v1246 = vpop.f32.mrf.mxu0
      %1247 = vmatprep.mubr.bf16.mxu0 0
      %1248 = vmatmul.mubr.bf16.gmra.mxu0 %v654
      %v1249 = vpop.f32.mrf.mxu0
      %v1250 = vadd.f32 %v1150, %v1249
      %v1251 = vpop.f32.mrf.mxu0
      %v1252 = vpop.f32.mrf.mxu0
      %v1253 = vadd.f32 %v1153, %v1252
      %v1254 = vpop.f32.mrf.mxu0
      %1255 = vdwg.mxu0
      %s1256 = scalar_lea.vmem [#allocation2], 12
      %v1257 = vld [vmem:[%s1256] sm:$0xf]
      %v1258 = vld [vmem:[%s1256 + $0x4] sm:$0xf]
      %v1259 = vld [vmem:[%s1256 + $0xc] sm:$0xf]
      %v1260 = vld [vmem:[%s1256 + $0x10] sm:$0xf]
      %v1261 = vld [vmem:[%s1256 + $0x18] sm:$0xf]
      %v1262 = vld [vmem:[%s1256 + $0x1c] sm:$0xf]
      %v1263 = vld [vmem:[%s1256 + $0x24] sm:$0xf]
      %v1264 = vld [vmem:[%s1256 + $0x28] sm:$0xf]
      %v1265 = vld [vmem:[%s1256 + $0x30] sm:$0xf]
      %v1266 = vld [vmem:[%s1256 + $0x34] sm:$0xf]
      %v1267 = vld [vmem:[%s1256 + $0x3c] sm:$0xf]
      %v1268 = vld [vmem:[%s1256 + $0x40] sm:$0xf]
      %v1269 = vld [vmem:[%s1256 + $0x48] sm:$0xf]
      %v1270 = vld [vmem:[%s1256 + $0x4c] sm:$0xf]
      %v1271 = vld [vmem:[%s1256 + $0x54] sm:$0xf]
      %v1272 = vld [vmem:[%s1256 + $0x58] sm:$0xf]
      %s1273 = scalar_lea.vmem %s2, 2
      %v1274 = vld [vmem:[%s1273] sm:$0x3]
      %v1291 = vunpack.c.l.b16 %v1257
      %v1292 = vunpack.c.l.b16 %v1258
      %v1293 = vunpack.c.l.b16 %v1259
      %v1294 = vunpack.c.l.b16 %v1260
      %v1295 = vunpack.c.l.b16 %v1261
      %v1296 = vunpack.c.l.b16 %v1262
      %v1297 = vunpack.c.l.b16 %v1263
      %v1298 = vunpack.c.l.b16 %v1264
      %v1299 = vunpack.c.l.b16 %v1265
      %v1300 = vunpack.c.l.b16 %v1266
      %v1301 = vunpack.c.l.b16 %v1267
      %v1302 = vunpack.c.l.b16 %v1268
      %v1303 = vunpack.c.l.b16 %v1269
      %v1304 = vunpack.c.l.b16 %v1270
      %v1305 = vunpack.c.l.b16 %v1271
      %v1306 = vunpack.c.l.b16 %v1272
      %v1307 = vpack.c.b16 %v1292, %v1291
      %v1308 = vpack.c.b16 %v1294, %v1293
      %v1309 = vpack.c.b16 %v1296, %v1295
      %v1310 = vpack.c.b16 %v1298, %v1297
      %v1311 = vpack.c.b16 %v1300, %v1299
      %v1312 = vpack.c.b16 %v1302, %v1301
      %v1313 = vpack.c.b16 %v1304, %v1303
      %v1314 = vpack.c.b16 %v1306, %v1305
      %v1316 = vsel %vm631, %v1307, 0
      %v1319 = vsel %vm631, %v1308, 0
      %v1322 = vsel %vm631, %v1309, 0
      %v1325 = vsel %vm631, %v1310, 0
      %v1328 = vsel %vm631, %v1311, 0
      %v1331 = vsel %vm631, %v1312, 0
      %v1334 = vsel %vm631, %v1313, 0
      %v1337 = vsel %vm631, %v1314, 0
      %v1340 = vsel %vm656, %v1274, 0
      %1342 = vmatprep.subr.bf16.mxu0 0
      %1343 = vmatpush1.bf16.msra.mxu0 0
      %1344 = vmatprep.subr.bf16.mxu0 0
      %1345 = vmatpush1.bf16.msra.mxu0 0
      %1346 = vmatprep.subr.bf16.mxu0 0
      %1347 = vmatpush1.bf16.msra.mxu0 0
      %1348 = vmatprep.subr.bf16.mxu0 0
      %1349 = vmatpush1.bf16.msra.mxu0 0
      %1350 = vmatprep.subr.bf16.mxu0 0
      %1351 = vmatpush1.bf16.msra.mxu0 0
      %1352 = vmatprep.subr.bf16.mxu0 0
      %1353 = vmatpush1.bf16.msra.mxu0 0
      %1354 = vmatprep.subr.bf16.mxu0 0
      %1355 = vmatpush1.bf16.msra.mxu0 0
      %1356 = vmatprep.subr.bf16.mxu0 0
      %1357 = vmatpush1.bf16.msra.mxu0 %v1340
      %1358 = vmatprep.subr.bf16.mxu0 0
      %1359 = vmatpush2.bf16.msra.mxu0 0
      %1360 = vmatprep.subr.bf16.mxu0 0
      %1361 = vmatpush2.bf16.msra.mxu0 0
      %1362 = vmatprep.subr.bf16.mxu0 0
      %1363 = vmatpush2.bf16.msra.mxu0 0
      %1364 = vmatprep.subr.bf16.mxu0 0
      %1365 = vmatpush2.bf16.msra.mxu0 0
      %1366 = vmatprep.subr.bf16.mxu0 0
      %1367 = vmatpush2.bf16.msra.mxu0 0
      %1368 = vmatprep.subr.bf16.mxu0 0
      %1369 = vmatpush2.bf16.msra.mxu0 0
      %1370 = vmatprep.subr.bf16.mxu0 0
      %1371 = vmatpush2.bf16.msra.mxu0 0
      %1372 = vmatprep.subr.bf16.mxu0 0
      %1373 = vmatpush2.bf16.msra.mxu0 0
      %1374 = vmatprep.mubr.bf16.mxu0 0
      %1375 = vmatmul.mubr.bf16.gmra.mxu0 %v1316
      %v1376 = vpop.f32.mrf.mxu0
      %v1377 = vadd.f32 0.0, %v1376
      %v1378 = vpop.f32.mrf.mxu0
      %v1379 = vpop.f32.mrf.mxu0
      %v1380 = vadd.f32 0.0, %v1379
      %v1381 = vpop.f32.mrf.mxu0
      %1382 = vmatprep.mubr.bf16.mxu0 0
      %1383 = vmatmul.mubr.bf16.gmra.mxu0 %v1319
      %v1384 = vpop.f32.mrf.mxu0
      %v1385 = vadd.f32 0.0, %v1384
      %v1386 = vpop.f32.mrf.mxu0
      %v1387 = vpop.f32.mrf.mxu0
      %v1388 = vadd.f32 0.0, %v1387
      %v1389 = vpop.f32.mrf.mxu0
      %1390 = vmatprep.mubr.bf16.mxu0 0
      %1391 = vmatmul.mubr.bf16.gmra.mxu0 %v1322
      %v1392 = vpop.f32.mrf.mxu0
      %v1393 = vadd.f32 0.0, %v1392
      %v1394 = vpop.f32.mrf.mxu0
      %v1395 = vpop.f32.mrf.mxu0
      %v1396 = vadd.f32 0.0, %v1395
      %v1397 = vpop.f32.mrf.mxu0
      %1398 = vmatprep.mubr.bf16.mxu0 0
      %1399 = vmatmul.mubr.bf16.gmra.mxu0 %v1325
      %v1400 = vpop.f32.mrf.mxu0
      %v1401 = vadd.f32 0.0, %v1400
      %v1402 = vpop.f32.mrf.mxu0
      %v1403 = vpop.f32.mrf.mxu0
      %v1404 = vadd.f32 0.0, %v1403
      %v1405 = vpop.f32.mrf.mxu0
      %1406 = vmatprep.mubr.bf16.mxu0 0
      %1407 = vmatmul.mubr.bf16.gmra.mxu0 %v1328
      %v1408 = vpop.f32.mrf.mxu0
      %v1409 = vadd.f32 0.0, %v1408
      %v1410 = vpop.f32.mrf.mxu0
      %v1411 = vpop.f32.mrf.mxu0
      %v1412 = vadd.f32 0.0, %v1411
      %v1413 = vpop.f32.mrf.mxu0
      %1414 = vmatprep.mubr.bf16.mxu0 0
      %1415 = vmatmul.mubr.bf16.gmra.mxu0 %v1331
      %v1416 = vpop.f32.mrf.mxu0
      %v1417 = vadd.f32 0.0, %v1416
      %v1418 = vpop.f32.mrf.mxu0
      %v1419 = vpop.f32.mrf.mxu0
      %v1420 = vadd.f32 0.0, %v1419
      %v1421 = vpop.f32.mrf.mxu0
      %1422 = vmatprep.mubr.bf16.mxu0 0
      %1423 = vmatmul.mubr.bf16.gmra.mxu0 %v1334
      %v1424 = vpop.f32.mrf.mxu0
      %v1425 = vadd.f32 0.0, %v1424
      %v1426 = vpop.f32.mrf.mxu0
      %v1427 = vpop.f32.mrf.mxu0
      %v1428 = vadd.f32 0.0, %v1427
      %v1429 = vpop.f32.mrf.mxu0
      %1430 = vmatprep.mubr.bf16.mxu0 0
      %1431 = vmatmul.mubr.bf16.gmra.mxu0 %v1337
      %v1432 = vpop.f32.mrf.mxu0
      %v1433 = vadd.f32 0.0, %v1432
      %v1434 = vpop.f32.mrf.mxu0
      %v1435 = vpop.f32.mrf.mxu0
      %v1436 = vadd.f32 0.0, %v1435
      %v1437 = vpop.f32.mrf.mxu0
      %1438 = vdwg.mxu0
      %v1439 = vadd.f32 %v859, %v1377
      %v1440 = vadd.f32 %v862, %v1380
      %v1441 = vadd.f32 %v867, %v1385
      %v1442 = vadd.f32 %v870, %v1388
      %v1443 = vadd.f32 %v875, %v1393
      %v1444 = vadd.f32 %v878, %v1396
      %v1445 = vadd.f32 %v883, %v1401
      %v1446 = vadd.f32 %v886, %v1404
      %v1447 = vadd.f32 %v891, %v1409
      %v1448 = vadd.f32 %v894, %v1412
      %v1449 = vadd.f32 %v899, %v1417
      %v1450 = vadd.f32 %v902, %v1420
      %v1451 = vadd.f32 %v907, %v1425
      %v1452 = vadd.f32 %v910, %v1428
      %v1453 = vadd.f32 %v915, %v1433
      %v1454 = vadd.f32 %v918, %v1436
      %s1455 = scalar_lea.vmem %s2, 18
      %v1456 = vld [vmem:[%s1455] sm:$0x3]
      %v1457 = vld [vmem:[%s1256] sm:$0xf]
      %v1458 = vld [vmem:[%s1256 + $0x4] sm:$0xf]
      %v1459 = vld [vmem:[%s1256 + $0x8] sm:$0x1]
      %v1460 = vld [vmem:[%s1256 + $0xc] sm:$0xf]
      %v1461 = vld [vmem:[%s1256 + $0x10] sm:$0xf]
      %v1462 = vld [vmem:[%s1256 + $0x14] sm:$0x1]
      %v1463 = vld [vmem:[%s1256 + $0x18] sm:$0xf]
      %v1464 = vld [vmem:[%s1256 + $0x1c] sm:$0xf]
      %v1465 = vld [vmem:[%s1256 + $0x20] sm:$0x1]
      %v1466 = vld [vmem:[%s1256 + $0x24] sm:$0xf]
      %v1467 = vld [vmem:[%s1256 + $0x28] sm:$0xf]
      %v1468 = vld [vmem:[%s1256 + $0x2c] sm:$0x1]
      %v1469 = vld [vmem:[%s1256 + $0x30] sm:$0xf]
      %v1470 = vld [vmem:[%s1256 + $0x34] sm:$0xf]
      %v1471 = vld [vmem:[%s1256 + $0x38] sm:$0x1]
      %v1472 = vld [vmem:[%s1256 + $0x3c] sm:$0xf]
      %v1473 = vld [vmem:[%s1256 + $0x40] sm:$0xf]
      %v1474 = vld [vmem:[%s1256 + $0x44] sm:$0x1]
      %v1475 = vld [vmem:[%s1256 + $0x48] sm:$0xf]
      %v1476 = vld [vmem:[%s1256 + $0x4c] sm:$0xf]
      %v1477 = vld [vmem:[%s1256 + $0x50] sm:$0x1]
      %v1478 = vld [vmem:[%s1256 + $0x54] sm:$0xf]
      %v1479 = vld [vmem:[%s1256 + $0x58] sm:$0xf]
      %v1480 = vld [vmem:[%s1256 + $0x5c] sm:$0x1]
      %v1482 = vshrl.u32 %v1457, 16
      %v1484 = vrot.slane %v1482, 4
      %v1485 = vshll.u32 %v1457, 16
      %v1487 = vrot.slane %v1485, 5
      %v1488 = vor.u32 %v1484, %v1487
      %v1489 = vrot.slane %v1488, 4
      %v1491 = vshll.u32 %v1458, 16
      %v1493 = vrot.slane %v1491, 5
      %v1494 = vsel %vm412, %v1489, %v1493
      %v1495 = vshrl.u32 %v1458, 16
      %v1497 = vrot.slane %v1495, 4
      %v1498 = vor.u32 %v1497, %v1493
      %v1499 = vrot.slane %v1498, 4
      %v1501 = vshll.u32 %v1459, 16
      %v1503 = vrot.slane %v1501, 5
      %v1504 = vsel %vm412, %v1499, %v1503
      %v1506 = vshrl.u32 %v1460, 16
      %v1508 = vrot.slane %v1506, 4
      %v1509 = vshll.u32 %v1460, 16
      %v1511 = vrot.slane %v1509, 5
      %v1512 = vor.u32 %v1508, %v1511
      %v1513 = vrot.slane %v1512, 4
      %v1515 = vshll.u32 %v1461, 16
      %v1517 = vrot.slane %v1515, 5
      %v1518 = vsel %vm412, %v1513, %v1517
      %v1519 = vshrl.u32 %v1461, 16
      %v1521 = vrot.slane %v1519, 4
      %v1522 = vor.u32 %v1521, %v1517
      %v1523 = vrot.slane %v1522, 4
      %v1525 = vshll.u32 %v1462, 16
      %v1527 = vrot.slane %v1525, 5
      %v1528 = vsel %vm412, %v1523, %v1527
      %v1530 = vshrl.u32 %v1463, 16
      %v1532 = vrot.slane %v1530, 4
      %v1533 = vshll.u32 %v1463, 16
      %v1535 = vrot.slane %v1533, 5
      %v1536 = vor.u32 %v1532, %v1535
      %v1537 = vrot.slane %v1536, 4
      %v1539 = vshll.u32 %v1464, 16
      %v1541 = vrot.slane %v1539, 5
      %v1542 = vsel %vm412, %v1537, %v1541
      %v1543 = vshrl.u32 %v1464, 16
      %v1545 = vrot.slane %v1543, 4
      %v1546 = vor.u32 %v1545, %v1541
      %v1547 = vrot.slane %v1546, 4
      %v1549 = vshll.u32 %v1465, 16
      %v1551 = vrot.slane %v1549, 5
      %v1552 = vsel %vm412, %v1547, %v1551
      %v1554 = vshrl.u32 %v1466, 16
      %v1556 = vrot.slane %v1554, 4
      %v1557 = vshll.u32 %v1466, 16
      %v1559 = vrot.slane %v1557, 5
      %v1560 = vor.u32 %v1556, %v1559
      %v1561 = vrot.slane %v1560, 4
      %v1563 = vshll.u32 %v1467, 16
      %v1565 = vrot.slane %v1563, 5
      %v1566 = vsel %vm412, %v1561, %v1565
      %v1567 = vshrl.u32 %v1467, 16
      %v1569 = vrot.slane %v1567, 4
      %v1570 = vor.u32 %v1569, %v1565
      %v1571 = vrot.slane %v1570, 4
      %v1573 = vshll.u32 %v1468, 16
      %v1575 = vrot.slane %v1573, 5
      %v1576 = vsel %vm412, %v1571, %v1575
      %v1578 = vshrl.u32 %v1469, 16
      %v1580 = vrot.slane %v1578, 4
      %v1581 = vshll.u32 %v1469, 16
      %v1583 = vrot.slane %v1581, 5
      %v1584 = vor.u32 %v1580, %v1583
      %v1585 = vrot.slane %v1584, 4
      %v1587 = vshll.u32 %v1470, 16
      %v1589 = vrot.slane %v1587, 5
      %v1590 = vsel %vm412, %v1585, %v1589
      %v1591 = vshrl.u32 %v1470, 16
      %v1593 = vrot.slane %v1591, 4
      %v1594 = vor.u32 %v1593, %v1589
      %v1595 = vrot.slane %v1594, 4
      %v1597 = vshll.u32 %v1471, 16
      %v1599 = vrot.slane %v1597, 5
      %v1600 = vsel %vm412, %v1595, %v1599
      %v1602 = vshrl.u32 %v1472, 16
      %v1604 = vrot.slane %v1602, 4
      %v1605 = vshll.u32 %v1472, 16
      %v1607 = vrot.slane %v1605, 5
      %v1608 = vor.u32 %v1604, %v1607
      %v1609 = vrot.slane %v1608, 4
      %v1611 = vshll.u32 %v1473, 16
      %v1613 = vrot.slane %v1611, 5
      %v1614 = vsel %vm412, %v1609, %v1613
      %v1615 = vshrl.u32 %v1473, 16
      %v1617 = vrot.slane %v1615, 4
      %v1618 = vor.u32 %v1617, %v1613
      %v1619 = vrot.slane %v1618, 4
      %v1621 = vshll.u32 %v1474, 16
      %v1623 = vrot.slane %v1621, 5
      %v1624 = vsel %vm412, %v1619, %v1623
      %v1626 = vshrl.u32 %v1475, 16
      %v1628 = vrot.slane %v1626, 4
      %v1629 = vshll.u32 %v1475, 16
      %v1631 = vrot.slane %v1629, 5
      %v1632 = vor.u32 %v1628, %v1631
      %v1633 = vrot.slane %v1632, 4
      %v1635 = vshll.u32 %v1476, 16
      %v1637 = vrot.slane %v1635, 5
      %v1638 = vsel %vm412, %v1633, %v1637
      %v1639 = vshrl.u32 %v1476, 16
      %v1641 = vrot.slane %v1639, 4
      %v1642 = vor.u32 %v1641, %v1637
      %v1643 = vrot.slane %v1642, 4
      %v1645 = vshll.u32 %v1477, 16
      %v1647 = vrot.slane %v1645, 5
      %v1648 = vsel %vm412, %v1643, %v1647
      %v1650 = vshrl.u32 %v1478, 16
      %v1652 = vrot.slane %v1650, 4
      %v1653 = vshll.u32 %v1478, 16
      %v1655 = vrot.slane %v1653, 5
      %v1656 = vor.u32 %v1652, %v1655
      %v1657 = vrot.slane %v1656, 4
      %v1659 = vshll.u32 %v1479, 16
      %v1661 = vrot.slane %v1659, 5
      %v1662 = vsel %vm412, %v1657, %v1661
      %v1663 = vshrl.u32 %v1479, 16
      %v1665 = vrot.slane %v1663, 4
      %v1666 = vor.u32 %v1665, %v1661
      %v1667 = vrot.slane %v1666, 4
      %v1669 = vshll.u32 %v1480, 16
      %v1671 = vrot.slane %v1669, 5
      %v1672 = vsel %vm412, %v1667, %v1671
      %v1673 = vld [vmem:[%s2] sm:$0x3]
      %v1674 = vunpack.c.l.b16 %v1494
      %v1675 = vunpack.c.l.b16 %v1504
      %v1676 = vunpack.c.l.b16 %v1518
      %v1677 = vunpack.c.l.b16 %v1528
      %v1678 = vunpack.c.l.b16 %v1542
      %v1679 = vunpack.c.l.b16 %v1552
      %v1680 = vunpack.c.l.b16 %v1566
      %v1681 = vunpack.c.l.b16 %v1576
      %v1682 = vunpack.c.l.b16 %v1590
      %v1683 = vunpack.c.l.b16 %v1600
      %v1684 = vunpack.c.l.b16 %v1614
      %v1685 = vunpack.c.l.b16 %v1624
      %v1686 = vunpack.c.l.b16 %v1638
      %v1687 = vunpack.c.l.b16 %v1648
      %v1688 = vunpack.c.l.b16 %v1662
      %v1689 = vunpack.c.l.b16 %v1672
      %v1690 = vpack.c.b16 %v1675, %v1674
      %v1691 = vpack.c.b16 %v1677, %v1676
      %v1692 = vpack.c.b16 %v1679, %v1678
      %v1693 = vpack.c.b16 %v1681, %v1680
      %v1694 = vpack.c.b16 %v1683, %v1682
      %v1695 = vpack.c.b16 %v1685, %v1684
      %v1696 = vpack.c.b16 %v1687, %v1686
      %v1697 = vpack.c.b16 %v1689, %v1688
      %v1699 = vsel %vm631, %v1690, 0
      %v1702 = vsel %vm631, %v1691, 0
      %v1705 = vsel %vm631, %v1692, 0
      %v1708 = vsel %vm631, %v1693, 0
      %v1711 = vsel %vm631, %v1694, 0
      %v1714 = vsel %vm631, %v1695, 0
      %v1717 = vsel %vm631, %v1696, 0
      %v1720 = vsel %vm631, %v1697, 0
      %v1723 = vsel %vm656, %v1673, 0
      %1725 = vmatprep.subr.bf16.mxu0 0
      %1726 = vmatpush1.bf16.msra.mxu0 0
      %1727 = vmatprep.subr.bf16.mxu0 0
      %1728 = vmatpush1.bf16.msra.mxu0 0
      %1729 = vmatprep.subr.bf16.mxu0 0
      %1730 = vmatpush1.bf16.msra.mxu0 0
      %1731 = vmatprep.subr.bf16.mxu0 0
      %1732 = vmatpush1.bf16.msra.mxu0 0
      %1733 = vmatprep.subr.bf16.mxu0 0
      %1734 = vmatpush1.bf16.msra.mxu0 0
      %1735 = vmatprep.subr.bf16.mxu0 0
      %1736 = vmatpush1.bf16.msra.mxu0 0
      %1737 = vmatprep.subr.bf16.mxu0 0
      %1738 = vmatpush1.bf16.msra.mxu0 0
      %1739 = vmatprep.subr.bf16.mxu0 0
      %1740 = vmatpush1.bf16.msra.mxu0 %v1723
      %1741 = vmatprep.subr.bf16.mxu0 0
      %1742 = vmatpush2.bf16.msra.mxu0 0
      %1743 = vmatprep.subr.bf16.mxu0 0
      %1744 = vmatpush2.bf16.msra.mxu0 0
      %1745 = vmatprep.subr.bf16.mxu0 0
      %1746 = vmatpush2.bf16.msra.mxu0 0
      %1747 = vmatprep.subr.bf16.mxu0 0
      %1748 = vmatpush2.bf16.msra.mxu0 0
      %1749 = vmatprep.subr.bf16.mxu0 0
      %1750 = vmatpush2.bf16.msra.mxu0 0
      %1751 = vmatprep.subr.bf16.mxu0 0
      %1752 = vmatpush2.bf16.msra.mxu0 0
      %1753 = vmatprep.subr.bf16.mxu0 0
      %1754 = vmatpush2.bf16.msra.mxu0 0
      %1755 = vmatprep.subr.bf16.mxu0 0
      %1756 = vmatpush2.bf16.msra.mxu0 0
      %1757 = vmatprep.mubr.bf16.mxu0 0
      %1758 = vmatmul.mubr.bf16.gmra.mxu0 %v1699
      %v1759 = vpop.f32.mrf.mxu0
      %v1760 = vadd.f32 0.0, %v1759
      %v1761 = vpop.f32.mrf.mxu0
      %v1762 = vpop.f32.mrf.mxu0
      %v1763 = vadd.f32 0.0, %v1762
      %v1764 = vpop.f32.mrf.mxu0
      %1765 = vmatprep.mubr.bf16.mxu0 0
      %1766 = vmatmul.mubr.bf16.gmra.mxu0 %v1702
      %v1767 = vpop.f32.mrf.mxu0
      %v1768 = vadd.f32 0.0, %v1767
      %v1769 = vpop.f32.mrf.mxu0
      %v1770 = vpop.f32.mrf.mxu0
      %v1771 = vadd.f32 0.0, %v1770
      %v1772 = vpop.f32.mrf.mxu0
      %1773 = vmatprep.mubr.bf16.mxu0 0
      %1774 = vmatmul.mubr.bf16.gmra.mxu0 %v1705
      %v1775 = vpop.f32.mrf.mxu0
      %v1776 = vadd.f32 0.0, %v1775
      %v1777 = vpop.f32.mrf.mxu0
      %v1778 = vpop.f32.mrf.mxu0
      %v1779 = vadd.f32 0.0, %v1778
      %v1780 = vpop.f32.mrf.mxu0
      %1781 = vmatprep.mubr.bf16.mxu0 0
      %1782 = vmatmul.mubr.bf16.gmra.mxu0 %v1708
      %v1783 = vpop.f32.mrf.mxu0
      %v1784 = vadd.f32 0.0, %v1783
      %v1785 = vpop.f32.mrf.mxu0
      %v1786 = vpop.f32.mrf.mxu0
      %v1787 = vadd.f32 0.0, %v1786
      %v1788 = vpop.f32.mrf.mxu0
      %1789 = vmatprep.mubr.bf16.mxu0 0
      %1790 = vmatmul.mubr.bf16.gmra.mxu0 %v1711
      %v1791 = vpop.f32.mrf.mxu0
      %v1792 = vadd.f32 0.0, %v1791
      %v1793 = vpop.f32.mrf.mxu0
      %v1794 = vpop.f32.mrf.mxu0
      %v1795 = vadd.f32 0.0, %v1794
      %v1796 = vpop.f32.mrf.mxu0
      %1797 = vmatprep.mubr.bf16.mxu0 0
      %1798 = vmatmul.mubr.bf16.gmra.mxu0 %v1714
      %v1799 = vpop.f32.mrf.mxu0
      %v1800 = vadd.f32 0.0, %v1799
      %v1801 = vpop.f32.mrf.mxu0
      %v1802 = vpop.f32.mrf.mxu0
      %v1803 = vadd.f32 0.0, %v1802
      %v1804 = vpop.f32.mrf.mxu0
      %1805 = vmatprep.mubr.bf16.mxu0 0
      %1806 = vmatmul.mubr.bf16.gmra.mxu0 %v1717
      %v1807 = vpop.f32.mrf.mxu0
      %v1808 = vadd.f32 0.0, %v1807
      %v1809 = vpop.f32.mrf.mxu0
      %v1810 = vpop.f32.mrf.mxu0
      %v1811 = vadd.f32 0.0, %v1810
      %v1812 = vpop.f32.mrf.mxu0
      %1813 = vmatprep.mubr.bf16.mxu0 0
      %1814 = vmatmul.mubr.bf16.gmra.mxu0 %v1720
      %v1815 = vpop.f32.mrf.mxu0
      %v1816 = vadd.f32 0.0, %v1815
      %v1817 = vpop.f32.mrf.mxu0
      %v1818 = vpop.f32.mrf.mxu0
      %v1819 = vadd.f32 0.0, %v1818
      %v1820 = vpop.f32.mrf.mxu0
      %1821 = vdwg.mxu0
      %v1822 = vadd.f32 %v1439, %v1760
      %v1823 = vadd.f32 %v1440, %v1763
      %v1824 = vadd.f32 %v1441, %v1768
      %v1825 = vadd.f32 %v1442, %v1771
      %v1826 = vadd.f32 %v1443, %v1776
      %v1827 = vadd.f32 %v1444, %v1779
      %v1828 = vadd.f32 %v1445, %v1784
      %v1829 = vadd.f32 %v1446, %v1787
      %v1830 = vadd.f32 %v1447, %v1792
      %v1831 = vadd.f32 %v1448, %v1795
      %v1832 = vadd.f32 %v1449, %v1800
      %v1833 = vadd.f32 %v1450, %v1803
      %v1834 = vadd.f32 %v1451, %v1808
      %v1835 = vadd.f32 %v1452, %v1811
      %v1836 = vadd.f32 %v1453, %v1816
      %v1837 = vadd.f32 %v1454, %v1819
      %s1838 = scalar_lea.vmem %s2, 8
      %v1839 = vld [vmem:[%s1838] sm:$0x3]
      %v1841 = vsel %vm656, %v1839, 0
      %1843 = vmatprep.subr.bf16.mxu0 0
      %1844 = vmatpush1.bf16.msra.mxu0 0
      %1845 = vmatprep.subr.bf16.mxu0 0
      %1846 = vmatpush1.bf16.msra.mxu0 0
      %1847 = vmatprep.subr.bf16.mxu0 0
      %1848 = vmatpush1.bf16.msra.mxu0 0
      %1849 = vmatprep.subr.bf16.mxu0 0
      %1850 = vmatpush1.bf16.msra.mxu0 0
      %1851 = vmatprep.subr.bf16.mxu0 0
      %1852 = vmatpush1.bf16.msra.mxu0 0
      %1853 = vmatprep.subr.bf16.mxu0 0
      %1854 = vmatpush1.bf16.msra.mxu0 0
      %1855 = vmatprep.subr.bf16.mxu0 0
      %1856 = vmatpush1.bf16.msra.mxu0 0
      %1857 = vmatprep.subr.bf16.mxu0 0
      %1858 = vmatpush1.bf16.msra.mxu0 %v1841
      %1859 = vmatprep.subr.bf16.mxu0 0
      %1860 = vmatpush2.bf16.msra.mxu0 0
      %1861 = vmatprep.subr.bf16.mxu0 0
      %1862 = vmatpush2.bf16.msra.mxu0 0
      %1863 = vmatprep.subr.bf16.mxu0 0
      %1864 = vmatpush2.bf16.msra.mxu0 0
      %1865 = vmatprep.subr.bf16.mxu0 0
      %1866 = vmatpush2.bf16.msra.mxu0 0
      %1867 = vmatprep.subr.bf16.mxu0 0
      %1868 = vmatpush2.bf16.msra.mxu0 0
      %1869 = vmatprep.subr.bf16.mxu0 0
      %1870 = vmatpush2.bf16.msra.mxu0 0
      %1871 = vmatprep.subr.bf16.mxu0 0
      %1872 = vmatpush2.bf16.msra.mxu0 0
      %1873 = vmatprep.subr.bf16.mxu0 0
      %1874 = vmatpush2.bf16.msra.mxu0 0
      %1875 = vmatprep.mubr.bf16.mxu0 0
      %1876 = vmatmul.mubr.bf16.gmra.mxu0 %v1699
      %v1877 = vpop.f32.mrf.mxu0
      %v1878 = vadd.f32 0.0, %v1877
      %v1879 = vpop.f32.mrf.mxu0
      %v1880 = vpop.f32.mrf.mxu0
      %v1881 = vadd.f32 0.0, %v1880
      %v1882 = vpop.f32.mrf.mxu0
      %1883 = vmatprep.mubr.bf16.mxu0 0
      %1884 = vmatmul.mubr.bf16.gmra.mxu0 %v1702
      %v1885 = vpop.f32.mrf.mxu0
      %v1886 = vadd.f32 0.0, %v1885
      %v1887 = vpop.f32.mrf.mxu0
      %v1888 = vpop.f32.mrf.mxu0
      %v1889 = vadd.f32 0.0, %v1888
      %v1890 = vpop.f32.mrf.mxu0
      %1891 = vmatprep.mubr.bf16.mxu0 0
      %1892 = vmatmul.mubr.bf16.gmra.mxu0 %v1705
      %v1893 = vpop.f32.mrf.mxu0
      %v1894 = vadd.f32 0.0, %v1893
      %v1895 = vpop.f32.mrf.mxu0
      %v1896 = vpop.f32.mrf.mxu0
      %v1897 = vadd.f32 0.0, %v1896
      %v1898 = vpop.f32.mrf.mxu0
      %1899 = vmatprep.mubr.bf16.mxu0 0
      %1900 = vmatmul.mubr.bf16.gmra.mxu0 %v1708
      %v1901 = vpop.f32.mrf.mxu0
      %v1902 = vadd.f32 0.0, %v1901
      %v1903 = vpop.f32.mrf.mxu0
      %v1904 = vpop.f32.mrf.mxu0
      %v1905 = vadd.f32 0.0, %v1904
      %v1906 = vpop.f32.mrf.mxu0
      %1907 = vmatprep.mubr.bf16.mxu0 0
      %1908 = vmatmul.mubr.bf16.gmra.mxu0 %v1711
      %v1909 = vpop.f32.mrf.mxu0
      %v1910 = vadd.f32 0.0, %v1909
      %v1911 = vpop.f32.mrf.mxu0
      %v1912 = vpop.f32.mrf.mxu0
      %v1913 = vadd.f32 0.0, %v1912
      %v1914 = vpop.f32.mrf.mxu0
      %1915 = vmatprep.mubr.bf16.mxu0 0
      %1916 = vmatmul.mubr.bf16.gmra.mxu0 %v1714
      %v1917 = vpop.f32.mrf.mxu0
      %v1918 = vadd.f32 0.0, %v1917
      %v1919 = vpop.f32.mrf.mxu0
      %v1920 = vpop.f32.mrf.mxu0
      %v1921 = vadd.f32 0.0, %v1920
      %v1922 = vpop.f32.mrf.mxu0
      %1923 = vmatprep.mubr.bf16.mxu0 0
      %1924 = vmatmul.mubr.bf16.gmra.mxu0 %v1717
      %v1925 = vpop.f32.mrf.mxu0
      %v1926 = vadd.f32 0.0, %v1925
      %v1927 = vpop.f32.mrf.mxu0
      %v1928 = vpop.f32.mrf.mxu0
      %v1929 = vadd.f32 0.0, %v1928
      %v1930 = vpop.f32.mrf.mxu0
      %1931 = vmatprep.mubr.bf16.mxu0 0
      %1932 = vmatmul.mubr.bf16.gmra.mxu0 %v1720
      %v1933 = vpop.f32.mrf.mxu0
      %v1934 = vadd.f32 0.0, %v1933
      %v1935 = vpop.f32.mrf.mxu0
      %v1936 = vpop.f32.mrf.mxu0
      %v1937 = vadd.f32 0.0, %v1936
      %v1938 = vpop.f32.mrf.mxu0
      %1939 = vdwg.mxu0
      %v1940 = vadd.f32 %v1194, %v1878
      %v1941 = vadd.f32 %v1197, %v1881
      %v1942 = vadd.f32 %v1202, %v1886
      %v1943 = vadd.f32 %v1205, %v1889
      %v1944 = vadd.f32 %v1210, %v1894
      %v1945 = vadd.f32 %v1213, %v1897
      %v1946 = vadd.f32 %v1218, %v1902
      %v1947 = vadd.f32 %v1221, %v1905
      %v1948 = vadd.f32 %v1226, %v1910
      %v1949 = vadd.f32 %v1229, %v1913
      %v1950 = vadd.f32 %v1234, %v1918
      %v1951 = vadd.f32 %v1237, %v1921
      %v1952 = vadd.f32 %v1242, %v1926
      %v1953 = vadd.f32 %v1245, %v1929
      %v1954 = vadd.f32 %v1250, %v1934
      %v1955 = vadd.f32 %v1253, %v1937
      %s1956 = scalar_lea.vmem %s2, 16
      %v1957 = vld [vmem:[%s1956] sm:$0x3]
      %v1959 = vsel %vm656, %v1957, 0
      %1961 = vmatprep.subr.bf16.mxu0 0
      %1962 = vmatpush1.bf16.msra.mxu0 0
      %1963 = vmatprep.subr.bf16.mxu0 0
      %1964 = vmatpush1.bf16.msra.mxu0 0
      %1965 = vmatprep.subr.bf16.mxu0 0
      %1966 = vmatpush1.bf16.msra.mxu0 0
      %1967 = vmatprep.subr.bf16.mxu0 0
      %1968 = vmatpush1.bf16.msra.mxu0 0
      %1969 = vmatprep.subr.bf16.mxu0 0
      %1970 = vmatpush1.bf16.msra.mxu0 0
      %1971 = vmatprep.subr.bf16.mxu0 0
      %1972 = vmatpush1.bf16.msra.mxu0 0
      %1973 = vmatprep.subr.bf16.mxu0 0
      %1974 = vmatpush1.bf16.msra.mxu0 0
      %1975 = vmatprep.subr.bf16.mxu0 0
      %1976 = vmatpush1.bf16.msra.mxu0 %v1959
      %1977 = vmatprep.subr.bf16.mxu0 0
      %1978 = vmatpush2.bf16.msra.mxu0 0
      %1979 = vmatprep.subr.bf16.mxu0 0
      %1980 = vmatpush2.bf16.msra.mxu0 0
      %1981 = vmatprep.subr.bf16.mxu0 0
      %1982 = vmatpush2.bf16.msra.mxu0 0
      %1983 = vmatprep.subr.bf16.mxu0 0
      %1984 = vmatpush2.bf16.msra.mxu0 0
      %1985 = vmatprep.subr.bf16.mxu0 0
      %1986 = vmatpush2.bf16.msra.mxu0 0
      %1987 = vmatprep.subr.bf16.mxu0 0
      %1988 = vmatpush2.bf16.msra.mxu0 0
      %1989 = vmatprep.subr.bf16.mxu0 0
      %1990 = vmatpush2.bf16.msra.mxu0 0
      %1991 = vmatprep.subr.bf16.mxu0 0
      %1992 = vmatpush2.bf16.msra.mxu0 0
      %1993 = vmatprep.mubr.bf16.mxu0 0
      %1994 = vmatmul.mubr.bf16.gmra.mxu0 %v1699
      %v1995 = vpop.f32.mrf.mxu0
      %v1996 = vadd.f32 0.0, %v1995
      %v1997 = vpop.f32.mrf.mxu0
      %v1998 = vpop.f32.mrf.mxu0
      %v1999 = vadd.f32 0.0, %v1998
      %v2000 = vpop.f32.mrf.mxu0
      %2001 = vmatprep.mubr.bf16.mxu0 0
      %2002 = vmatmul.mubr.bf16.gmra.mxu0 %v1702
      %v2003 = vpop.f32.mrf.mxu0
      %v2004 = vadd.f32 0.0, %v2003
      %v2005 = vpop.f32.mrf.mxu0
      %v2006 = vpop.f32.mrf.mxu0
      %v2007 = vadd.f32 0.0, %v2006
      %v2008 = vpop.f32.mrf.mxu0
      %2009 = vmatprep.mubr.bf16.mxu0 0
      %2010 = vmatmul.mubr.bf16.gmra.mxu0 %v1705
      %v2011 = vpop.f32.mrf.mxu0
      %v2012 = vadd.f32 0.0, %v2011
      %v2013 = vpop.f32.mrf.mxu0
      %v2014 = vpop.f32.mrf.mxu0
      %v2015 = vadd.f32 0.0, %v2014
      %v2016 = vpop.f32.mrf.mxu0
      %2017 = vmatprep.mubr.bf16.mxu0 0
      %2018 = vmatmul.mubr.bf16.gmra.mxu0 %v1708
      %v2019 = vpop.f32.mrf.mxu0
      %v2020 = vadd.f32 0.0, %v2019
      %v2021 = vpop.f32.mrf.mxu0
      %v2022 = vpop.f32.mrf.mxu0
      %v2023 = vadd.f32 0.0, %v2022
      %v2024 = vpop.f32.mrf.mxu0
      %2025 = vmatprep.mubr.bf16.mxu0 0
      %2026 = vmatmul.mubr.bf16.gmra.mxu0 %v1711
      %v2027 = vpop.f32.mrf.mxu0
      %v2028 = vadd.f32 0.0, %v2027
      %v2029 = vpop.f32.mrf.mxu0
      %v2030 = vpop.f32.mrf.mxu0
      %v2031 = vadd.f32 0.0, %v2030
      %v2032 = vpop.f32.mrf.mxu0
      %2033 = vmatprep.mubr.bf16.mxu0 0
      %2034 = vmatmul.mubr.bf16.gmra.mxu0 %v1714
      %v2035 = vpop.f32.mrf.mxu0
      %v2036 = vadd.f32 0.0, %v2035
      %v2037 = vpop.f32.mrf.mxu0
      %v2038 = vpop.f32.mrf.mxu0
      %v2039 = vadd.f32 0.0, %v2038
      %v2040 = vpop.f32.mrf.mxu0
      %2041 = vmatprep.mubr.bf16.mxu0 0
      %2042 = vmatmul.mubr.bf16.gmra.mxu0 %v1717
      %v2043 = vpop.f32.mrf.mxu0
      %v2044 = vadd.f32 0.0, %v2043
      %v2045 = vpop.f32.mrf.mxu0
      %v2046 = vpop.f32.mrf.mxu0
      %v2047 = vadd.f32 0.0, %v2046
      %v2048 = vpop.f32.mrf.mxu0
      %2049 = vmatprep.mubr.bf16.mxu0 0
      %2050 = vmatmul.mubr.bf16.gmra.mxu0 %v1720
      %v2051 = vpop.f32.mrf.mxu0
      %v2052 = vadd.f32 0.0, %v2051
      %v2053 = vpop.f32.mrf.mxu0
      %v2054 = vpop.f32.mrf.mxu0
      %v2055 = vadd.f32 0.0, %v2054
      %v2056 = vpop.f32.mrf.mxu0
      %2057 = vdwg.mxu0
      %v2059 = vsel %vm656, %v1456, 0
      %2061 = vmatprep.subr.bf16.mxu0 0
      %2062 = vmatpush1.bf16.msra.mxu0 0
      %2063 = vmatprep.subr.bf16.mxu0 0
      %2064 = vmatpush1.bf16.msra.mxu0 0
      %2065 = vmatprep.subr.bf16.mxu0 0
      %2066 = vmatpush1.bf16.msra.mxu0 0
      %2067 = vmatprep.subr.bf16.mxu0 0
      %2068 = vmatpush1.bf16.msra.mxu0 0
      %2069 = vmatprep.subr.bf16.mxu0 0
      %2070 = vmatpush1.bf16.msra.mxu0 0
      %2071 = vmatprep.subr.bf16.mxu0 0
      %2072 = vmatpush1.bf16.msra.mxu0 0
      %2073 = vmatprep.subr.bf16.mxu0 0
      %2074 = vmatpush1.bf16.msra.mxu0 0
      %2075 = vmatprep.subr.bf16.mxu0 0
      %2076 = vmatpush1.bf16.msra.mxu0 %v2059
      %2077 = vmatprep.subr.bf16.mxu0 0
      %2078 = vmatpush2.bf16.msra.mxu0 0
      %2079 = vmatprep.subr.bf16.mxu0 0
      %2080 = vmatpush2.bf16.msra.mxu0 0
      %2081 = vmatprep.subr.bf16.mxu0 0
      %2082 = vmatpush2.bf16.msra.mxu0 0
      %2083 = vmatprep.subr.bf16.mxu0 0
      %2084 = vmatpush2.bf16.msra.mxu0 0
      %2085 = vmatprep.subr.bf16.mxu0 0
      %2086 = vmatpush2.bf16.msra.mxu0 0
      %2087 = vmatprep.subr.bf16.mxu0 0
      %2088 = vmatpush2.bf16.msra.mxu0 0
      %2089 = vmatprep.subr.bf16.mxu0 0
      %2090 = vmatpush2.bf16.msra.mxu0 0
      %2091 = vmatprep.subr.bf16.mxu0 0
      %2092 = vmatpush2.bf16.msra.mxu0 0
      %2093 = vmatprep.mubr.bf16.mxu0 0
      %2094 = vmatmul.mubr.bf16.gmra.mxu0 %v1316
      %v2095 = vpop.f32.mrf.mxu0
      %v2096 = vadd.f32 %v1996, %v2095
      %v2097 = vpop.f32.mrf.mxu0
      %v2098 = vpop.f32.mrf.mxu0
      %v2099 = vadd.f32 %v1999, %v2098
      %v2100 = vpop.f32.mrf.mxu0
      %2101 = vmatprep.mubr.bf16.mxu0 0
      %2102 = vmatmul.mubr.bf16.gmra.mxu0 %v1319
      %v2103 = vpop.f32.mrf.mxu0
      %v2104 = vadd.f32 %v2004, %v2103
      %v2105 = vpop.f32.mrf.mxu0
      %v2106 = vpop.f32.mrf.mxu0
      %v2107 = vadd.f32 %v2007, %v2106
      %v2108 = vpop.f32.mrf.mxu0
      %2109 = vmatprep.mubr.bf16.mxu0 0
      %2110 = vmatmul.mubr.bf16.gmra.mxu0 %v1322
      %v2111 = vpop.f32.mrf.mxu0
      %v2112 = vadd.f32 %v2012, %v2111
      %v2113 = vpop.f32.mrf.mxu0
      %v2114 = vpop.f32.mrf.mxu0
      %v2115 = vadd.f32 %v2015, %v2114
      %v2116 = vpop.f32.mrf.mxu0
      %2117 = vmatprep.mubr.bf16.mxu0 0
      %2118 = vmatmul.mubr.bf16.gmra.mxu0 %v1325
      %v2119 = vpop.f32.mrf.mxu0
      %v2120 = vadd.f32 %v2020, %v2119
      %v2121 = vpop.f32.mrf.mxu0
      %v2122 = vpop.f32.mrf.mxu0
      %v2123 = vadd.f32 %v2023, %v2122
      %v2124 = vpop.f32.mrf.mxu0
      %2125 = vmatprep.mubr.bf16.mxu0 0
      %2126 = vmatmul.mubr.bf16.gmra.mxu0 %v1328
      %v2127 = vpop.f32.mrf.mxu0
      %v2128 = vadd.f32 %v2028, %v2127
      %v2129 = vpop.f32.mrf.mxu0
      %v2130 = vpop.f32.mrf.mxu0
      %v2131 = vadd.f32 %v2031, %v2130
      %v2132 = vpop.f32.mrf.mxu0
      %2133 = vmatprep.mubr.bf16.mxu0 0
      %2134 = vmatmul.mubr.bf16.gmra.mxu0 %v1331
      %v2135 = vpop.f32.mrf.mxu0
      %v2136 = vadd.f32 %v2036, %v2135
      %v2137 = vpop.f32.mrf.mxu0
      %v2138 = vpop.f32.mrf.mxu0
      %v2139 = vadd.f32 %v2039, %v2138
      %v2140 = vpop.f32.mrf.mxu0
      %2141 = vmatprep.mubr.bf16.mxu0 0
      %2142 = vmatmul.mubr.bf16.gmra.mxu0 %v1334
      %v2143 = vpop.f32.mrf.mxu0
      %v2144 = vadd.f32 %v2044, %v2143
      %v2145 = vpop.f32.mrf.mxu0
      %v2146 = vpop.f32.mrf.mxu0
      %v2147 = vadd.f32 %v2047, %v2146
      %v2148 = vpop.f32.mrf.mxu0
      %2149 = vmatprep.mubr.bf16.mxu0 0
      %2150 = vmatmul.mubr.bf16.gmra.mxu0 %v1337
      %v2151 = vpop.f32.mrf.mxu0
      %v2152 = vadd.f32 %v2052, %v2151
      %v2153 = vpop.f32.mrf.mxu0
      %v2154 = vpop.f32.mrf.mxu0
      %v2155 = vadd.f32 %v2055, %v2154
      %v2156 = vpop.f32.mrf.mxu0
      %2157 = vdwg.mxu0
      %s2158 = scalar_lea.vmem %s2, 24
      %v2159 = vld [vmem:[%s2158] sm:$0x3]
      %v2160 = vld [vmem:[%s1256] sm:$0xe]
      %v2161 = vld [vmem:[%s1256 + $0xc] sm:$0xe]
      %v2162 = vld [vmem:[%s1256 + $0x18] sm:$0xe]
      %v2163 = vld [vmem:[%s1256 + $0x24] sm:$0xe]
      %v2164 = vld [vmem:[%s1256 + $0x30] sm:$0xe]
      %v2165 = vld [vmem:[%s1256 + $0x3c] sm:$0xe]
      %v2166 = vld [vmem:[%s1256 + $0x48] sm:$0xe]
      %v2167 = vld [vmem:[%s1256 + $0x54] sm:$0xe]
      %v2192 = vrot.slane %v2160, 5
      %v2193 = vrot.slane %v2192, 4
      %v2194 = vrot.slane %v1458, 5
      %v2195 = vsel %vm949, %v2193, %v2194
      %v2196 = vrot.slane %v2194, 4
      %v2197 = vrot.slane %v1459, 5
      %v2198 = vsel %vm949, %v2196, %v2197
      %v2199 = vrot.slane %v2161, 5
      %v2200 = vrot.slane %v2199, 4
      %v2201 = vrot.slane %v1461, 5
      %v2202 = vsel %vm949, %v2200, %v2201
      %v2203 = vrot.slane %v2201, 4
      %v2204 = vrot.slane %v1462, 5
      %v2205 = vsel %vm949, %v2203, %v2204
      %v2206 = vrot.slane %v2162, 5
      %v2207 = vrot.slane %v2206, 4
      %v2208 = vrot.slane %v1464, 5
      %v2209 = vsel %vm949, %v2207, %v2208
      %v2210 = vrot.slane %v2208, 4
      %v2211 = vrot.slane %v1465, 5
      %v2212 = vsel %vm949, %v2210, %v2211
      %v2213 = vrot.slane %v2163, 5
      %v2214 = vrot.slane %v2213, 4
      %v2215 = vrot.slane %v1467, 5
      %v2216 = vsel %vm949, %v2214, %v2215
      %v2217 = vrot.slane %v2215, 4
      %v2218 = vrot.slane %v1468, 5
      %v2219 = vsel %vm949, %v2217, %v2218
      %v2220 = vrot.slane %v2164, 5
      %v2221 = vrot.slane %v2220, 4
      %v2222 = vrot.slane %v1470, 5
      %v2223 = vsel %vm949, %v2221, %v2222
      %v2224 = vrot.slane %v2222, 4
      %v2225 = vrot.slane %v1471, 5
      %v2226 = vsel %vm949, %v2224, %v2225
      %v2227 = vrot.slane %v2165, 5
      %v2228 = vrot.slane %v2227, 4
      %v2229 = vrot.slane %v1473, 5
      %v2230 = vsel %vm949, %v2228, %v2229
      %v2231 = vrot.slane %v2229, 4
      %v2232 = vrot.slane %v1474, 5
      %v2233 = vsel %vm949, %v2231, %v2232
      %v2234 = vrot.slane %v2166, 5
      %v2235 = vrot.slane %v2234, 4
      %v2236 = vrot.slane %v1476, 5
      %v2237 = vsel %vm949, %v2235, %v2236
      %v2238 = vrot.slane %v2236, 4
      %v2239 = vrot.slane %v1477, 5
      %v2240 = vsel %vm949, %v2238, %v2239
      %v2241 = vrot.slane %v2167, 5
      %v2242 = vrot.slane %v2241, 4
      %v2243 = vrot.slane %v1479, 5
      %v2244 = vsel %vm949, %v2242, %v2243
      %v2245 = vrot.slane %v2243, 4
      %v2246 = vrot.slane %v1480, 5
      %v2247 = vsel %vm949, %v2245, %v2246
      %s2248 = scalar_lea.vmem %s2, 10
      %v2249 = vld [vmem:[%s2248] sm:$0x3]
      %v2250 = vunpack.c.l.b16 %v2195
      %v2251 = vunpack.c.l.b16 %v2198
      %v2252 = vunpack.c.l.b16 %v2202
      %v2253 = vunpack.c.l.b16 %v2205
      %v2254 = vunpack.c.l.b16 %v2209
      %v2255 = vunpack.c.l.b16 %v2212
      %v2256 = vunpack.c.l.b16 %v2216
      %v2257 = vunpack.c.l.b16 %v2219
      %v2258 = vunpack.c.l.b16 %v2223
      %v2259 = vunpack.c.l.b16 %v2226
      %v2260 = vunpack.c.l.b16 %v2230
      %v2261 = vunpack.c.l.b16 %v2233
      %v2262 = vunpack.c.l.b16 %v2237
      %v2263 = vunpack.c.l.b16 %v2240
      %v2264 = vunpack.c.l.b16 %v2244
      %v2265 = vunpack.c.l.b16 %v2247
      %v2266 = vpack.c.b16 %v2251, %v2250
      %v2267 = vpack.c.b16 %v2253, %v2252
      %v2268 = vpack.c.b16 %v2255, %v2254
      %v2269 = vpack.c.b16 %v2257, %v2256
      %v2270 = vpack.c.b16 %v2259, %v2258
      %v2271 = vpack.c.b16 %v2261, %v2260
      %v2272 = vpack.c.b16 %v2263, %v2262
      %v2273 = vpack.c.b16 %v2265, %v2264
      %v2275 = vsel %vm631, %v2266, 0
      %v2278 = vsel %vm631, %v2267, 0
      %v2281 = vsel %vm631, %v2268, 0
      %v2284 = vsel %vm631, %v2269, 0
      %v2287 = vsel %vm631, %v2270, 0
      %v2290 = vsel %vm631, %v2271, 0
      %v2293 = vsel %vm631, %v2272, 0
      %v2296 = vsel %vm631, %v2273, 0
      %v2299 = vsel %vm656, %v2249, 0
      %2301 = vmatprep.subr.bf16.mxu0 0
      %2302 = vmatpush1.bf16.msra.mxu0 0
      %2303 = vmatprep.subr.bf16.mxu0 0
      %2304 = vmatpush1.bf16.msra.mxu0 0
      %2305 = vmatprep.subr.bf16.mxu0 0
      %2306 = vmatpush1.bf16.msra.mxu0 0
      %2307 = vmatprep.subr.bf16.mxu0 0
      %2308 = vmatpush1.bf16.msra.mxu0 0
      %2309 = vmatprep.subr.bf16.mxu0 0
      %2310 = vmatpush1.bf16.msra.mxu0 0
      %2311 = vmatprep.subr.bf16.mxu0 0
      %2312 = vmatpush1.bf16.msra.mxu0 0
      %2313 = vmatprep.subr.bf16.mxu0 0
      %2314 = vmatpush1.bf16.msra.mxu0 0
      %2315 = vmatprep.subr.bf16.mxu0 0
      %2316 = vmatpush1.bf16.msra.mxu0 %v2299
      %2317 = vmatprep.subr.bf16.mxu0 0
      %2318 = vmatpush2.bf16.msra.mxu0 0
      %2319 = vmatprep.subr.bf16.mxu0 0
      %2320 = vmatpush2.bf16.msra.mxu0 0
      %2321 = vmatprep.subr.bf16.mxu0 0
      %2322 = vmatpush2.bf16.msra.mxu0 0
      %2323 = vmatprep.subr.bf16.mxu0 0
      %2324 = vmatpush2.bf16.msra.mxu0 0
      %2325 = vmatprep.subr.bf16.mxu0 0
      %2326 = vmatpush2.bf16.msra.mxu0 0
      %2327 = vmatprep.subr.bf16.mxu0 0
      %2328 = vmatpush2.bf16.msra.mxu0 0
      %2329 = vmatprep.subr.bf16.mxu0 0
      %2330 = vmatpush2.bf16.msra.mxu0 0
      %2331 = vmatprep.subr.bf16.mxu0 0
      %2332 = vmatpush2.bf16.msra.mxu0 0
      %2333 = vmatprep.mubr.bf16.mxu0 0
      %2334 = vmatmul.mubr.bf16.gmra.mxu0 %v2275
      %v2335 = vpop.f32.mrf.mxu0
      %v2336 = vadd.f32 0.0, %v2335
      %v2337 = vpop.f32.mrf.mxu0
      %v2338 = vpop.f32.mrf.mxu0
      %v2339 = vadd.f32 0.0, %v2338
      %v2340 = vpop.f32.mrf.mxu0
      %2341 = vmatprep.mubr.bf16.mxu0 0
      %2342 = vmatmul.mubr.bf16.gmra.mxu0 %v2278
      %v2343 = vpop.f32.mrf.mxu0
      %v2344 = vadd.f32 0.0, %v2343
      %v2345 = vpop.f32.mrf.mxu0
      %v2346 = vpop.f32.mrf.mxu0
      %v2347 = vadd.f32 0.0, %v2346
      %v2348 = vpop.f32.mrf.mxu0
      %2349 = vmatprep.mubr.bf16.mxu0 0
      %2350 = vmatmul.mubr.bf16.gmra.mxu0 %v2281
      %v2351 = vpop.f32.mrf.mxu0
      %v2352 = vadd.f32 0.0, %v2351
      %v2353 = vpop.f32.mrf.mxu0
      %v2354 = vpop.f32.mrf.mxu0
      %v2355 = vadd.f32 0.0, %v2354
      %v2356 = vpop.f32.mrf.mxu0
      %2357 = vmatprep.mubr.bf16.mxu0 0
      %2358 = vmatmul.mubr.bf16.gmra.mxu0 %v2284
      %v2359 = vpop.f32.mrf.mxu0
      %v2360 = vadd.f32 0.0, %v2359
      %v2361 = vpop.f32.mrf.mxu0
      %v2362 = vpop.f32.mrf.mxu0
      %v2363 = vadd.f32 0.0, %v2362
      %v2364 = vpop.f32.mrf.mxu0
      %2365 = vmatprep.mubr.bf16.mxu0 0
      %2366 = vmatmul.mubr.bf16.gmra.mxu0 %v2287
      %v2367 = vpop.f32.mrf.mxu0
      %v2368 = vadd.f32 0.0, %v2367
      %v2369 = vpop.f32.mrf.mxu0
      %v2370 = vpop.f32.mrf.mxu0
      %v2371 = vadd.f32 0.0, %v2370
      %v2372 = vpop.f32.mrf.mxu0
      %2373 = vmatprep.mubr.bf16.mxu0 0
      %2374 = vmatmul.mubr.bf16.gmra.mxu0 %v2290
      %v2375 = vpop.f32.mrf.mxu0
      %v2376 = vadd.f32 0.0, %v2375
      %v2377 = vpop.f32.mrf.mxu0
      %v2378 = vpop.f32.mrf.mxu0
      %v2379 = vadd.f32 0.0, %v2378
      %v2380 = vpop.f32.mrf.mxu0
      %2381 = vmatprep.mubr.bf16.mxu0 0
      %2382 = vmatmul.mubr.bf16.gmra.mxu0 %v2293
      %v2383 = vpop.f32.mrf.mxu0
      %v2384 = vadd.f32 0.0, %v2383
      %v2385 = vpop.f32.mrf.mxu0
      %v2386 = vpop.f32.mrf.mxu0
      %v2387 = vadd.f32 0.0, %v2386
      %v2388 = vpop.f32.mrf.mxu0
      %2389 = vmatprep.mubr.bf16.mxu0 0
      %2390 = vmatmul.mubr.bf16.gmra.mxu0 %v2296
      %v2391 = vpop.f32.mrf.mxu0
      %v2392 = vadd.f32 0.0, %v2391
      %v2393 = vpop.f32.mrf.mxu0
      %v2394 = vpop.f32.mrf.mxu0
      %v2395 = vadd.f32 0.0, %v2394
      %v2396 = vpop.f32.mrf.mxu0
      %2397 = vdwg.mxu0
      %v2398 = vadd.f32 %v1940, %v2336
      %v2399 = vadd.f32 %v1941, %v2339
      %v2400 = vadd.f32 %v1942, %v2344
      %v2401 = vadd.f32 %v1943, %v2347
      %v2402 = vadd.f32 %v1944, %v2352
      %v2403 = vadd.f32 %v1945, %v2355
      %v2404 = vadd.f32 %v1946, %v2360
      %v2405 = vadd.f32 %v1947, %v2363
      %v2406 = vadd.f32 %v1948, %v2368
      %v2407 = vadd.f32 %v1949, %v2371
      %v2408 = vadd.f32 %v1950, %v2376
      %v2409 = vadd.f32 %v1951, %v2379
      %v2410 = vadd.f32 %v1952, %v2384
      %v2411 = vadd.f32 %v1953, %v2387
      %v2412 = vadd.f32 %v1954, %v2392
      %v2413 = vadd.f32 %v1955, %v2395
      %s2414 = scalar_lea.vmem %s2, 26
      %v2415 = vld [vmem:[%s2414] sm:$0x3]
      %v2417 = vsel %vm656, %v2415, 0
      %2419 = vmatprep.subr.bf16.mxu0 0
      %2420 = vmatpush1.bf16.msra.mxu0 0
      %2421 = vmatprep.subr.bf16.mxu0 0
      %2422 = vmatpush1.bf16.msra.mxu0 0
      %2423 = vmatprep.subr.bf16.mxu0 0
      %2424 = vmatpush1.bf16.msra.mxu0 0
      %2425 = vmatprep.subr.bf16.mxu0 0
      %2426 = vmatpush1.bf16.msra.mxu0 0
      %2427 = vmatprep.subr.bf16.mxu0 0
      %2428 = vmatpush1.bf16.msra.mxu0 0
      %2429 = vmatprep.subr.bf16.mxu0 0
      %2430 = vmatpush1.bf16.msra.mxu0 0
      %2431 = vmatprep.subr.bf16.mxu0 0
      %2432 = vmatpush1.bf16.msra.mxu0 0
      %2433 = vmatprep.subr.bf16.mxu0 0
      %2434 = vmatpush1.bf16.msra.mxu0 %v2417
      %2435 = vmatprep.subr.bf16.mxu0 0
      %2436 = vmatpush2.bf16.msra.mxu0 0
      %2437 = vmatprep.subr.bf16.mxu0 0
      %2438 = vmatpush2.bf16.msra.mxu0 0
      %2439 = vmatprep.subr.bf16.mxu0 0
      %2440 = vmatpush2.bf16.msra.mxu0 0
      %2441 = vmatprep.subr.bf16.mxu0 0
      %2442 = vmatpush2.bf16.msra.mxu0 0
      %2443 = vmatprep.subr.bf16.mxu0 0
      %2444 = vmatpush2.bf16.msra.mxu0 0
      %2445 = vmatprep.subr.bf16.mxu0 0
      %2446 = vmatpush2.bf16.msra.mxu0 0
      %2447 = vmatprep.subr.bf16.mxu0 0
      %2448 = vmatpush2.bf16.msra.mxu0 0
      %2449 = vmatprep.subr.bf16.mxu0 0
      %2450 = vmatpush2.bf16.msra.mxu0 0
      %2451 = vmatprep.mubr.bf16.mxu0 0
      %2452 = vmatmul.mubr.bf16.gmra.mxu0 %v2275
      %v2453 = vpop.f32.mrf.mxu0
      %v2454 = vadd.f32 0.0, %v2453
      %v2455 = vpop.f32.mrf.mxu0
      %v2456 = vpop.f32.mrf.mxu0
      %v2457 = vadd.f32 0.0, %v2456
      %v2458 = vpop.f32.mrf.mxu0
      %2459 = vmatprep.mubr.bf16.mxu0 0
      %2460 = vmatmul.mubr.bf16.gmra.mxu0 %v2278
      %v2461 = vpop.f32.mrf.mxu0
      %v2462 = vadd.f32 0.0, %v2461
      %v2463 = vpop.f32.mrf.mxu0
      %v2464 = vpop.f32.mrf.mxu0
      %v2465 = vadd.f32 0.0, %v2464
      %v2466 = vpop.f32.mrf.mxu0
      %2467 = vmatprep.mubr.bf16.mxu0 0
      %2468 = vmatmul.mubr.bf16.gmra.mxu0 %v2281
      %v2469 = vpop.f32.mrf.mxu0
      %v2470 = vadd.f32 0.0, %v2469
      %v2471 = vpop.f32.mrf.mxu0
      %v2472 = vpop.f32.mrf.mxu0
      %v2473 = vadd.f32 0.0, %v2472
      %v2474 = vpop.f32.mrf.mxu0
      %2475 = vmatprep.mubr.bf16.mxu0 0
      %2476 = vmatmul.mubr.bf16.gmra.mxu0 %v2284
      %v2477 = vpop.f32.mrf.mxu0
      %v2478 = vadd.f32 0.0, %v2477
      %v2479 = vpop.f32.mrf.mxu0
      %v2480 = vpop.f32.mrf.mxu0
      %v2481 = vadd.f32 0.0, %v2480
      %v2482 = vpop.f32.mrf.mxu0
      %2483 = vmatprep.mubr.bf16.mxu0 0
      %2484 = vmatmul.mubr.bf16.gmra.mxu0 %v2287
      %v2485 = vpop.f32.mrf.mxu0
      %v2486 = vadd.f32 0.0, %v2485
      %v2487 = vpop.f32.mrf.mxu0
      %v2488 = vpop.f32.mrf.mxu0
      %v2489 = vadd.f32 0.0, %v2488
      %v2490 = vpop.f32.mrf.mxu0
      %2491 = vmatprep.mubr.bf16.mxu0 0
      %2492 = vmatmul.mubr.bf16.gmra.mxu0 %v2290
      %v2493 = vpop.f32.mrf.mxu0
      %v2494 = vadd.f32 0.0, %v2493
      %v2495 = vpop.f32.mrf.mxu0
      %v2496 = vpop.f32.mrf.mxu0
      %v2497 = vadd.f32 0.0, %v2496
      %v2498 = vpop.f32.mrf.mxu0
      %2499 = vmatprep.mubr.bf16.mxu0 0
      %2500 = vmatmul.mubr.bf16.gmra.mxu0 %v2293
      %v2501 = vpop.f32.mrf.mxu0
      %v2502 = vadd.f32 0.0, %v2501
      %v2503 = vpop.f32.mrf.mxu0
      %v2504 = vpop.f32.mrf.mxu0
      %v2505 = vadd.f32 0.0, %v2504
      %v2506 = vpop.f32.mrf.mxu0
      %2507 = vmatprep.mubr.bf16.mxu0 0
      %2508 = vmatmul.mubr.bf16.gmra.mxu0 %v2296
      %v2509 = vpop.f32.mrf.mxu0
      %v2510 = vadd.f32 0.0, %v2509
      %v2511 = vpop.f32.mrf.mxu0
      %v2512 = vpop.f32.mrf.mxu0
      %v2513 = vadd.f32 0.0, %v2512
      %v2514 = vpop.f32.mrf.mxu0
      %2515 = vdwg.mxu0
      %v2517 = vsel %vm656, %v2159, 0
      %2519 = vmatprep.subr.bf16.mxu0 0
      %2520 = vmatpush1.bf16.msra.mxu0 0
      %2521 = vmatprep.subr.bf16.mxu0 0
      %2522 = vmatpush1.bf16.msra.mxu0 0
      %2523 = vmatprep.subr.bf16.mxu0 0
      %2524 = vmatpush1.bf16.msra.mxu0 0
      %2525 = vmatprep.subr.bf16.mxu0 0
      %2526 = vmatpush1.bf16.msra.mxu0 0
      %2527 = vmatprep.subr.bf16.mxu0 0
      %2528 = vmatpush1.bf16.msra.mxu0 0
      %2529 = vmatprep.subr.bf16.mxu0 0
      %2530 = vmatpush1.bf16.msra.mxu0 0
      %2531 = vmatprep.subr.bf16.mxu0 0
      %2532 = vmatpush1.bf16.msra.mxu0 0
      %2533 = vmatprep.subr.bf16.mxu0 0
      %2534 = vmatpush1.bf16.msra.mxu0 %v2517
      %2535 = vmatprep.subr.bf16.mxu0 0
      %2536 = vmatpush2.bf16.msra.mxu0 0
      %2537 = vmatprep.subr.bf16.mxu0 0
      %2538 = vmatpush2.bf16.msra.mxu0 0
      %2539 = vmatprep.subr.bf16.mxu0 0
      %2540 = vmatpush2.bf16.msra.mxu0 0
      %2541 = vmatprep.subr.bf16.mxu0 0
      %2542 = vmatpush2.bf16.msra.mxu0 0
      %2543 = vmatprep.subr.bf16.mxu0 0
      %2544 = vmatpush2.bf16.msra.mxu0 0
      %2545 = vmatprep.subr.bf16.mxu0 0
      %2546 = vmatpush2.bf16.msra.mxu0 0
      %2547 = vmatprep.subr.bf16.mxu0 0
      %2548 = vmatpush2.bf16.msra.mxu0 0
      %2549 = vmatprep.subr.bf16.mxu0 0
      %2550 = vmatpush2.bf16.msra.mxu0 0
      %2551 = vmatprep.mubr.bf16.mxu0 0
      %2552 = vmatmul.mubr.bf16.gmra.mxu0 %v1699
      %v2553 = vpop.f32.mrf.mxu0
      %v2554 = vadd.f32 %v2454, %v2553
      %v2555 = vpop.f32.mrf.mxu0
      %v2556 = vpop.f32.mrf.mxu0
      %v2557 = vadd.f32 %v2457, %v2556
      %v2558 = vpop.f32.mrf.mxu0
      %2559 = vmatprep.mubr.bf16.mxu0 0
      %2560 = vmatmul.mubr.bf16.gmra.mxu0 %v1702
      %v2561 = vpop.f32.mrf.mxu0
      %v2562 = vadd.f32 %v2462, %v2561
      %v2563 = vpop.f32.mrf.mxu0
      %v2564 = vpop.f32.mrf.mxu0
      %v2565 = vadd.f32 %v2465, %v2564
      %v2566 = vpop.f32.mrf.mxu0
      %2567 = vmatprep.mubr.bf16.mxu0 0
      %2568 = vmatmul.mubr.bf16.gmra.mxu0 %v1705
      %v2569 = vpop.f32.mrf.mxu0
      %v2570 = vadd.f32 %v2470, %v2569
      %v2571 = vpop.f32.mrf.mxu0
      %v2572 = vpop.f32.mrf.mxu0
      %v2573 = vadd.f32 %v2473, %v2572
      %v2574 = vpop.f32.mrf.mxu0
      %2575 = vmatprep.mubr.bf16.mxu0 0
      %2576 = vmatmul.mubr.bf16.gmra.mxu0 %v1708
      %v2577 = vpop.f32.mrf.mxu0
      %v2578 = vadd.f32 %v2478, %v2577
      %v2579 = vpop.f32.mrf.mxu0
      %v2580 = vpop.f32.mrf.mxu0
      %v2581 = vadd.f32 %v2481, %v2580
      %v2582 = vpop.f32.mrf.mxu0
      %2583 = vmatprep.mubr.bf16.mxu0 0
      %2584 = vmatmul.mubr.bf16.gmra.mxu0 %v1711
      %v2585 = vpop.f32.mrf.mxu0
      %v2586 = vadd.f32 %v2486, %v2585
      %v2587 = vpop.f32.mrf.mxu0
      %v2588 = vpop.f32.mrf.mxu0
      %v2589 = vadd.f32 %v2489, %v2588
      %v2590 = vpop.f32.mrf.mxu0
      %2591 = vmatprep.mubr.bf16.mxu0 0
      %2592 = vmatmul.mubr.bf16.gmra.mxu0 %v1714
      %v2593 = vpop.f32.mrf.mxu0
      %v2594 = vadd.f32 %v2494, %v2593
      %v2595 = vpop.f32.mrf.mxu0
      %v2596 = vpop.f32.mrf.mxu0
      %v2597 = vadd.f32 %v2497, %v2596
      %v2598 = vpop.f32.mrf.mxu0
      %2599 = vmatprep.mubr.bf16.mxu0 0
      %2600 = vmatmul.mubr.bf16.gmra.mxu0 %v1717
      %v2601 = vpop.f32.mrf.mxu0
      %v2602 = vadd.f32 %v2502, %v2601
      %v2603 = vpop.f32.mrf.mxu0
      %v2604 = vpop.f32.mrf.mxu0
      %v2605 = vadd.f32 %v2505, %v2604
      %v2606 = vpop.f32.mrf.mxu0
      %2607 = vmatprep.mubr.bf16.mxu0 0
      %2608 = vmatmul.mubr.bf16.gmra.mxu0 %v1720
      %v2609 = vpop.f32.mrf.mxu0
      %v2610 = vadd.f32 %v2510, %v2609
      %v2611 = vpop.f32.mrf.mxu0
      %v2612 = vpop.f32.mrf.mxu0
      %v2613 = vadd.f32 %v2513, %v2612
      %v2614 = vpop.f32.mrf.mxu0
      %2615 = vdwg.mxu0
      %s2616 = scalar_lea.vmem [#allocation2], 24
      %v2617 = vld [vmem:[%s2616] sm:$0xf]
      %v2618 = vld [vmem:[%s2616 + $0x4] sm:$0xf]
      %v2619 = vld [vmem:[%s2616 + $0xc] sm:$0xf]
      %v2620 = vld [vmem:[%s2616 + $0x10] sm:$0xf]
      %v2621 = vld [vmem:[%s2616 + $0x18] sm:$0xf]
      %v2622 = vld [vmem:[%s2616 + $0x1c] sm:$0xf]
      %v2623 = vld [vmem:[%s2616 + $0x24] sm:$0xf]
      %v2624 = vld [vmem:[%s2616 + $0x28] sm:$0xf]
      %v2625 = vld [vmem:[%s2616 + $0x30] sm:$0xf]
      %v2626 = vld [vmem:[%s2616 + $0x34] sm:$0xf]
      %v2627 = vld [vmem:[%s2616 + $0x3c] sm:$0xf]
      %v2628 = vld [vmem:[%s2616 + $0x40] sm:$0xf]
      %v2629 = vld [vmem:[%s2616 + $0x48] sm:$0xf]
      %v2630 = vld [vmem:[%s2616 + $0x4c] sm:$0xf]
      %v2631 = vld [vmem:[%s2616 + $0x54] sm:$0xf]
      %v2632 = vld [vmem:[%s2616 + $0x58] sm:$0xf]
      %s2633 = scalar_lea.vmem %s2, 22
      %v2634 = vld [vmem:[%s2633] sm:$0x3]
      %v2651 = vunpack.c.l.b16 %v2617
      %v2652 = vunpack.c.l.b16 %v2618
      %v2653 = vunpack.c.l.b16 %v2619
      %v2654 = vunpack.c.l.b16 %v2620
      %v2655 = vunpack.c.l.b16 %v2621
      %v2656 = vunpack.c.l.b16 %v2622
      %v2657 = vunpack.c.l.b16 %v2623
      %v2658 = vunpack.c.l.b16 %v2624
      %v2659 = vunpack.c.l.b16 %v2625
      %v2660 = vunpack.c.l.b16 %v2626
      %v2661 = vunpack.c.l.b16 %v2627
      %v2662 = vunpack.c.l.b16 %v2628
      %v2663 = vunpack.c.l.b16 %v2629
      %v2664 = vunpack.c.l.b16 %v2630
      %v2665 = vunpack.c.l.b16 %v2631
      %v2666 = vunpack.c.l.b16 %v2632
      %v2667 = vpack.c.b16 %v2652, %v2651
      %v2668 = vpack.c.b16 %v2654, %v2653
      %v2669 = vpack.c.b16 %v2656, %v2655
      %v2670 = vpack.c.b16 %v2658, %v2657
      %v2671 = vpack.c.b16 %v2660, %v2659
      %v2672 = vpack.c.b16 %v2662, %v2661
      %v2673 = vpack.c.b16 %v2664, %v2663
      %v2674 = vpack.c.b16 %v2666, %v2665
      %v2676 = vsel %vm631, %v2667, 0
      %v2679 = vsel %vm631, %v2668, 0
      %v2682 = vsel %vm631, %v2669, 0
      %v2685 = vsel %vm631, %v2670, 0
      %v2688 = vsel %vm631, %v2671, 0
      %v2691 = vsel %vm631, %v2672, 0
      %v2694 = vsel %vm631, %v2673, 0
      %v2697 = vsel %vm631, %v2674, 0
      %v2700 = vsel %vm656, %v2634, 0
      %2702 = vmatprep.subr.bf16.mxu0 0
      %2703 = vmatpush1.bf16.msra.mxu0 0
      %2704 = vmatprep.subr.bf16.mxu0 0
      %2705 = vmatpush1.bf16.msra.mxu0 0
      %2706 = vmatprep.subr.bf16.mxu0 0
      %2707 = vmatpush1.bf16.msra.mxu0 0
      %2708 = vmatprep.subr.bf16.mxu0 0
      %2709 = vmatpush1.bf16.msra.mxu0 0
      %2710 = vmatprep.subr.bf16.mxu0 0
      %2711 = vmatpush1.bf16.msra.mxu0 0
      %2712 = vmatprep.subr.bf16.mxu0 0
      %2713 = vmatpush1.bf16.msra.mxu0 0
      %2714 = vmatprep.subr.bf16.mxu0 0
      %2715 = vmatpush1.bf16.msra.mxu0 0
      %2716 = vmatprep.subr.bf16.mxu0 0
      %2717 = vmatpush1.bf16.msra.mxu0 %v2700
      %2718 = vmatprep.subr.bf16.mxu0 0
      %2719 = vmatpush2.bf16.msra.mxu0 0
      %2720 = vmatprep.subr.bf16.mxu0 0
      %2721 = vmatpush2.bf16.msra.mxu0 0
      %2722 = vmatprep.subr.bf16.mxu0 0
      %2723 = vmatpush2.bf16.msra.mxu0 0
      %2724 = vmatprep.subr.bf16.mxu0 0
      %2725 = vmatpush2.bf16.msra.mxu0 0
      %2726 = vmatprep.subr.bf16.mxu0 0
      %2727 = vmatpush2.bf16.msra.mxu0 0
      %2728 = vmatprep.subr.bf16.mxu0 0
      %2729 = vmatpush2.bf16.msra.mxu0 0
      %2730 = vmatprep.subr.bf16.mxu0 0
      %2731 = vmatpush2.bf16.msra.mxu0 0
      %2732 = vmatprep.subr.bf16.mxu0 0
      %2733 = vmatpush2.bf16.msra.mxu0 0
      %2734 = vmatprep.mubr.bf16.mxu0 0
      %2735 = vmatmul.mubr.bf16.gmra.mxu0 %v2676
      %v2736 = vpop.f32.mrf.mxu0
      %v2737 = vadd.f32 0.0, %v2736
      %v2738 = vpop.f32.mrf.mxu0
      %v2739 = vpop.f32.mrf.mxu0
      %v2740 = vadd.f32 0.0, %v2739
      %v2741 = vpop.f32.mrf.mxu0
      %2742 = vmatprep.mubr.bf16.mxu0 0
      %2743 = vmatmul.mubr.bf16.gmra.mxu0 %v2679
      %v2744 = vpop.f32.mrf.mxu0
      %v2745 = vadd.f32 0.0, %v2744
      %v2746 = vpop.f32.mrf.mxu0
      %v2747 = vpop.f32.mrf.mxu0
      %v2748 = vadd.f32 0.0, %v2747
      %v2749 = vpop.f32.mrf.mxu0
      %2750 = vmatprep.mubr.bf16.mxu0 0
      %2751 = vmatmul.mubr.bf16.gmra.mxu0 %v2682
      %v2752 = vpop.f32.mrf.mxu0
      %v2753 = vadd.f32 0.0, %v2752
      %v2754 = vpop.f32.mrf.mxu0
      %v2755 = vpop.f32.mrf.mxu0
      %v2756 = vadd.f32 0.0, %v2755
      %v2757 = vpop.f32.mrf.mxu0
      %2758 = vmatprep.mubr.bf16.mxu0 0
      %2759 = vmatmul.mubr.bf16.gmra.mxu0 %v2685
      %v2760 = vpop.f32.mrf.mxu0
      %v2761 = vadd.f32 0.0, %v2760
      %v2762 = vpop.f32.mrf.mxu0
      %v2763 = vpop.f32.mrf.mxu0
      %v2764 = vadd.f32 0.0, %v2763
      %v2765 = vpop.f32.mrf.mxu0
      %2766 = vmatprep.mubr.bf16.mxu0 0
      %2767 = vmatmul.mubr.bf16.gmra.mxu0 %v2688
      %v2768 = vpop.f32.mrf.mxu0
      %v2769 = vadd.f32 0.0, %v2768
      %v2770 = vpop.f32.mrf.mxu0
      %v2771 = vpop.f32.mrf.mxu0
      %v2772 = vadd.f32 0.0, %v2771
      %v2773 = vpop.f32.mrf.mxu0
      %2774 = vmatprep.mubr.bf16.mxu0 0
      %2775 = vmatmul.mubr.bf16.gmra.mxu0 %v2691
      %v2776 = vpop.f32.mrf.mxu0
      %v2777 = vadd.f32 0.0, %v2776
      %v2778 = vpop.f32.mrf.mxu0
      %v2779 = vpop.f32.mrf.mxu0
      %v2780 = vadd.f32 0.0, %v2779
      %v2781 = vpop.f32.mrf.mxu0
      %2782 = vmatprep.mubr.bf16.mxu0 0
      %2783 = vmatmul.mubr.bf16.gmra.mxu0 %v2694
      %v2784 = vpop.f32.mrf.mxu0
      %v2785 = vadd.f32 0.0, %v2784
      %v2786 = vpop.f32.mrf.mxu0
      %v2787 = vpop.f32.mrf.mxu0
      %v2788 = vadd.f32 0.0, %v2787
      %v2789 = vpop.f32.mrf.mxu0
      %2790 = vmatprep.mubr.bf16.mxu0 0
      %2791 = vmatmul.mubr.bf16.gmra.mxu0 %v2697
      %v2792 = vpop.f32.mrf.mxu0
      %v2793 = vadd.f32 0.0, %v2792
      %v2794 = vpop.f32.mrf.mxu0
      %v2795 = vpop.f32.mrf.mxu0
      %v2796 = vadd.f32 0.0, %v2795
      %v2797 = vpop.f32.mrf.mxu0
      %2798 = vdwg.mxu0
      %v2799 = vadd.f32 %v2096, %v2737
      %v2800 = vadd.f32 %v2099, %v2740
      %v2801 = vadd.f32 %v2104, %v2745
      %v2802 = vadd.f32 %v2107, %v2748
      %v2803 = vadd.f32 %v2112, %v2753
      %v2804 = vadd.f32 %v2115, %v2756
      %v2805 = vadd.f32 %v2120, %v2761
      %v2806 = vadd.f32 %v2123, %v2764
      %v2807 = vadd.f32 %v2128, %v2769
      %v2808 = vadd.f32 %v2131, %v2772
      %v2809 = vadd.f32 %v2136, %v2777
      %v2810 = vadd.f32 %v2139, %v2780
      %v2811 = vadd.f32 %v2144, %v2785
      %v2812 = vadd.f32 %v2147, %v2788
      %v2813 = vadd.f32 %v2152, %v2793
      %v2814 = vadd.f32 %v2155, %v2796
      %v2815 = vld [vmem:[%s2616] sm:$0xf]
      %v2816 = vld [vmem:[%s2616 + $0x4] sm:$0xf]
      %v2817 = vld [vmem:[%s2616 + $0x8] sm:$0x1]
      %v2818 = vld [vmem:[%s2616 + $0xc] sm:$0xf]
      %v2819 = vld [vmem:[%s2616 + $0x10] sm:$0xf]
      %v2820 = vld [vmem:[%s2616 + $0x14] sm:$0x1]
      %v2821 = vld [vmem:[%s2616 + $0x18] sm:$0xf]
      %v2822 = vld [vmem:[%s2616 + $0x1c] sm:$0xf]
      %v2823 = vld [vmem:[%s2616 + $0x20] sm:$0x1]
      %v2824 = vld [vmem:[%s2616 + $0x24] sm:$0xf]
      %v2825 = vld [vmem:[%s2616 + $0x28] sm:$0xf]
      %v2826 = vld [vmem:[%s2616 + $0x2c] sm:$0x1]
      %v2827 = vld [vmem:[%s2616 + $0x30] sm:$0xf]
      %v2828 = vld [vmem:[%s2616 + $0x34] sm:$0xf]
      %v2829 = vld [vmem:[%s2616 + $0x38] sm:$0x1]
      %v2830 = vld [vmem:[%s2616 + $0x3c] sm:$0xf]
      %v2831 = vld [vmem:[%s2616 + $0x40] sm:$0xf]
      %v2832 = vld [vmem:[%s2616 + $0x44] sm:$0x1]
      %v2833 = vld [vmem:[%s2616 + $0x48] sm:$0xf]
      %v2834 = vld [vmem:[%s2616 + $0x4c] sm:$0xf]
      %v2835 = vld [vmem:[%s2616 + $0x50] sm:$0x1]
      %v2836 = vld [vmem:[%s2616 + $0x54] sm:$0xf]
      %v2837 = vld [vmem:[%s2616 + $0x58] sm:$0xf]
      %v2838 = vld [vmem:[%s2616 + $0x5c] sm:$0x1]
      %v2840 = vshrl.u32 %v2815, 16
      %v2842 = vrot.slane %v2840, 4
      %v2843 = vshll.u32 %v2815, 16
      %v2845 = vrot.slane %v2843, 5
      %v2846 = vor.u32 %v2842, %v2845
      %v2847 = vrot.slane %v2846, 4
      %v2849 = vshll.u32 %v2816, 16
      %v2851 = vrot.slane %v2849, 5
      %v2852 = vsel %vm412, %v2847, %v2851
      %v2853 = vshrl.u32 %v2816, 16
      %v2855 = vrot.slane %v2853, 4
      %v2856 = vor.u32 %v2855, %v2851
      %v2857 = vrot.slane %v2856, 4
      %v2859 = vshll.u32 %v2817, 16
      %v2861 = vrot.slane %v2859, 5
      %v2862 = vsel %vm412, %v2857, %v2861
      %v2864 = vshrl.u32 %v2818, 16
      %v2866 = vrot.slane %v2864, 4
      %v2867 = vshll.u32 %v2818, 16
      %v2869 = vrot.slane %v2867, 5
      %v2870 = vor.u32 %v2866, %v2869
      %v2871 = vrot.slane %v2870, 4
      %v2873 = vshll.u32 %v2819, 16
      %v2875 = vrot.slane %v2873, 5
      %v2876 = vsel %vm412, %v2871, %v2875
      %v2877 = vshrl.u32 %v2819, 16
      %v2879 = vrot.slane %v2877, 4
      %v2880 = vor.u32 %v2879, %v2875
      %v2881 = vrot.slane %v2880, 4
      %v2883 = vshll.u32 %v2820, 16
      %v2885 = vrot.slane %v2883, 5
      %v2886 = vsel %vm412, %v2881, %v2885
      %v2888 = vshrl.u32 %v2821, 16
      %v2890 = vrot.slane %v2888, 4
      %v2891 = vshll.u32 %v2821, 16
      %v2893 = vrot.slane %v2891, 5
      %v2894 = vor.u32 %v2890, %v2893
      %v2895 = vrot.slane %v2894, 4
      %v2897 = vshll.u32 %v2822, 16
      %v2899 = vrot.slane %v2897, 5
      %v2900 = vsel %vm412, %v2895, %v2899
      %v2901 = vshrl.u32 %v2822, 16
      %v2903 = vrot.slane %v2901, 4
      %v2904 = vor.u32 %v2903, %v2899
      %v2905 = vrot.slane %v2904, 4
      %v2907 = vshll.u32 %v2823, 16
      %v2909 = vrot.slane %v2907, 5
      %v2910 = vsel %vm412, %v2905, %v2909
      %v2912 = vshrl.u32 %v2824, 16
      %v2914 = vrot.slane %v2912, 4
      %v2915 = vshll.u32 %v2824, 16
      %v2917 = vrot.slane %v2915, 5
      %v2918 = vor.u32 %v2914, %v2917
      %v2919 = vrot.slane %v2918, 4
      %v2921 = vshll.u32 %v2825, 16
      %v2923 = vrot.slane %v2921, 5
      %v2924 = vsel %vm412, %v2919, %v2923
      %v2925 = vshrl.u32 %v2825, 16
      %v2927 = vrot.slane %v2925, 4
      %v2928 = vor.u32 %v2927, %v2923
      %v2929 = vrot.slane %v2928, 4
      %v2931 = vshll.u32 %v2826, 16
      %v2933 = vrot.slane %v2931, 5
      %v2934 = vsel %vm412, %v2929, %v2933
      %v2936 = vshrl.u32 %v2827, 16
      %v2938 = vrot.slane %v2936, 4
      %v2939 = vshll.u32 %v2827, 16
      %v2941 = vrot.slane %v2939, 5
      %v2942 = vor.u32 %v2938, %v2941
      %v2943 = vrot.slane %v2942, 4
      %v2945 = vshll.u32 %v2828, 16
      %v2947 = vrot.slane %v2945, 5
      %v2948 = vsel %vm412, %v2943, %v2947
      %v2949 = vshrl.u32 %v2828, 16
      %v2951 = vrot.slane %v2949, 4
      %v2952 = vor.u32 %v2951, %v2947
      %v2953 = vrot.slane %v2952, 4
      %v2955 = vshll.u32 %v2829, 16
      %v2957 = vrot.slane %v2955, 5
      %v2958 = vsel %vm412, %v2953, %v2957
      %v2960 = vshrl.u32 %v2830, 16
      %v2962 = vrot.slane %v2960, 4
      %v2963 = vshll.u32 %v2830, 16
      %v2965 = vrot.slane %v2963, 5
      %v2966 = vor.u32 %v2962, %v2965
      %v2967 = vrot.slane %v2966, 4
      %v2969 = vshll.u32 %v2831, 16
      %v2971 = vrot.slane %v2969, 5
      %v2972 = vsel %vm412, %v2967, %v2971
      %v2973 = vshrl.u32 %v2831, 16
      %v2975 = vrot.slane %v2973, 4
      %v2976 = vor.u32 %v2975, %v2971
      %v2977 = vrot.slane %v2976, 4
      %v2979 = vshll.u32 %v2832, 16
      %v2981 = vrot.slane %v2979, 5
      %v2982 = vsel %vm412, %v2977, %v2981
      %v2984 = vshrl.u32 %v2833, 16
      %v2986 = vrot.slane %v2984, 4
      %v2987 = vshll.u32 %v2833, 16
      %v2989 = vrot.slane %v2987, 5
      %v2990 = vor.u32 %v2986, %v2989
      %v2991 = vrot.slane %v2990, 4
      %v2993 = vshll.u32 %v2834, 16
      %v2995 = vrot.slane %v2993, 5
      %v2996 = vsel %vm412, %v2991, %v2995
      %v2997 = vshrl.u32 %v2834, 16
      %v2999 = vrot.slane %v2997, 4
      %v3000 = vor.u32 %v2999, %v2995
      %v3001 = vrot.slane %v3000, 4
      %v3003 = vshll.u32 %v2835, 16
      %v3005 = vrot.slane %v3003, 5
      %v3006 = vsel %vm412, %v3001, %v3005
      %v3008 = vshrl.u32 %v2836, 16
      %v3010 = vrot.slane %v3008, 4
      %v3011 = vshll.u32 %v2836, 16
      %v3013 = vrot.slane %v3011, 5
      %v3014 = vor.u32 %v3010, %v3013
      %v3015 = vrot.slane %v3014, 4
      %v3017 = vshll.u32 %v2837, 16
      %v3019 = vrot.slane %v3017, 5
      %v3020 = vsel %vm412, %v3015, %v3019
      %v3021 = vshrl.u32 %v2837, 16
      %v3023 = vrot.slane %v3021, 4
      %v3024 = vor.u32 %v3023, %v3019
      %v3025 = vrot.slane %v3024, 4
      %v3027 = vshll.u32 %v2838, 16
      %v3029 = vrot.slane %v3027, 5
      %v3030 = vsel %vm412, %v3025, %v3029
      %s3031 = scalar_lea.vmem %s2, 20
      %v3032 = vld [vmem:[%s3031] sm:$0x3]
      %v3033 = vunpack.c.l.b16 %v2852
      %v3034 = vunpack.c.l.b16 %v2862
      %v3035 = vunpack.c.l.b16 %v2876
      %v3036 = vunpack.c.l.b16 %v2886
      %v3037 = vunpack.c.l.b16 %v2900
      %v3038 = vunpack.c.l.b16 %v2910
      %v3039 = vunpack.c.l.b16 %v2924
      %v3040 = vunpack.c.l.b16 %v2934
      %v3041 = vunpack.c.l.b16 %v2948
      %v3042 = vunpack.c.l.b16 %v2958
      %v3043 = vunpack.c.l.b16 %v2972
      %v3044 = vunpack.c.l.b16 %v2982
      %v3045 = vunpack.c.l.b16 %v2996
      %v3046 = vunpack.c.l.b16 %v3006
      %v3047 = vunpack.c.l.b16 %v3020
      %v3048 = vunpack.c.l.b16 %v3030
      %v3049 = vpack.c.b16 %v3034, %v3033
      %v3050 = vpack.c.b16 %v3036, %v3035
      %v3051 = vpack.c.b16 %v3038, %v3037
      %v3052 = vpack.c.b16 %v3040, %v3039
      %v3053 = vpack.c.b16 %v3042, %v3041
      %v3054 = vpack.c.b16 %v3044, %v3043
      %v3055 = vpack.c.b16 %v3046, %v3045
      %v3056 = vpack.c.b16 %v3048, %v3047
      %v3058 = vsel %vm631, %v3049, 0
      %v3061 = vsel %vm631, %v3050, 0
      %v3064 = vsel %vm631, %v3051, 0
      %v3067 = vsel %vm631, %v3052, 0
      %v3070 = vsel %vm631, %v3053, 0
      %v3073 = vsel %vm631, %v3054, 0
      %v3076 = vsel %vm631, %v3055, 0
      %v3079 = vsel %vm631, %v3056, 0
      %v3082 = vsel %vm656, %v3032, 0
      %3084 = vmatprep.subr.bf16.mxu0 0
      %3085 = vmatpush1.bf16.msra.mxu0 0
      %3086 = vmatprep.subr.bf16.mxu0 0
      %3087 = vmatpush1.bf16.msra.mxu0 0
      %3088 = vmatprep.subr.bf16.mxu0 0
      %3089 = vmatpush1.bf16.msra.mxu0 0
      %3090 = vmatprep.subr.bf16.mxu0 0
      %3091 = vmatpush1.bf16.msra.mxu0 0
      %3092 = vmatprep.subr.bf16.mxu0 0
      %3093 = vmatpush1.bf16.msra.mxu0 0
      %3094 = vmatprep.subr.bf16.mxu0 0
      %3095 = vmatpush1.bf16.msra.mxu0 0
      %3096 = vmatprep.subr.bf16.mxu0 0
      %3097 = vmatpush1.bf16.msra.mxu0 0
      %3098 = vmatprep.subr.bf16.mxu0 0
      %3099 = vmatpush1.bf16.msra.mxu0 %v3082
      %3100 = vmatprep.subr.bf16.mxu0 0
      %3101 = vmatpush2.bf16.msra.mxu0 0
      %3102 = vmatprep.subr.bf16.mxu0 0
      %3103 = vmatpush2.bf16.msra.mxu0 0
      %3104 = vmatprep.subr.bf16.mxu0 0
      %3105 = vmatpush2.bf16.msra.mxu0 0
      %3106 = vmatprep.subr.bf16.mxu0 0
      %3107 = vmatpush2.bf16.msra.mxu0 0
      %3108 = vmatprep.subr.bf16.mxu0 0
      %3109 = vmatpush2.bf16.msra.mxu0 0
      %3110 = vmatprep.subr.bf16.mxu0 0
      %3111 = vmatpush2.bf16.msra.mxu0 0
      %3112 = vmatprep.subr.bf16.mxu0 0
      %3113 = vmatpush2.bf16.msra.mxu0 0
      %3114 = vmatprep.subr.bf16.mxu0 0
      %3115 = vmatpush2.bf16.msra.mxu0 0
      %3116 = vmatprep.mubr.bf16.mxu0 0
      %3117 = vmatmul.mubr.bf16.gmra.mxu0 %v3058
      %v3118 = vpop.f32.mrf.mxu0
      %v3119 = vadd.f32 0.0, %v3118
      %v3120 = vpop.f32.mrf.mxu0
      %v3121 = vpop.f32.mrf.mxu0
      %v3122 = vadd.f32 0.0, %v3121
      %v3123 = vpop.f32.mrf.mxu0
      %3124 = vmatprep.mubr.bf16.mxu0 0
      %3125 = vmatmul.mubr.bf16.gmra.mxu0 %v3061
      %v3126 = vpop.f32.mrf.mxu0
      %v3127 = vadd.f32 0.0, %v3126
      %v3128 = vpop.f32.mrf.mxu0
      %v3129 = vpop.f32.mrf.mxu0
      %v3130 = vadd.f32 0.0, %v3129
      %v3131 = vpop.f32.mrf.mxu0
      %3132 = vmatprep.mubr.bf16.mxu0 0
      %3133 = vmatmul.mubr.bf16.gmra.mxu0 %v3064
      %v3134 = vpop.f32.mrf.mxu0
      %v3135 = vadd.f32 0.0, %v3134
      %v3136 = vpop.f32.mrf.mxu0
      %v3137 = vpop.f32.mrf.mxu0
      %v3138 = vadd.f32 0.0, %v3137
      %v3139 = vpop.f32.mrf.mxu0
      %3140 = vmatprep.mubr.bf16.mxu0 0
      %3141 = vmatmul.mubr.bf16.gmra.mxu0 %v3067
      %v3142 = vpop.f32.mrf.mxu0
      %v3143 = vadd.f32 0.0, %v3142
      %v3144 = vpop.f32.mrf.mxu0
      %v3145 = vpop.f32.mrf.mxu0
      %v3146 = vadd.f32 0.0, %v3145
      %v3147 = vpop.f32.mrf.mxu0
      %3148 = vmatprep.mubr.bf16.mxu0 0
      %3149 = vmatmul.mubr.bf16.gmra.mxu0 %v3070
      %v3150 = vpop.f32.mrf.mxu0
      %v3151 = vadd.f32 0.0, %v3150
      %v3152 = vpop.f32.mrf.mxu0
      %v3153 = vpop.f32.mrf.mxu0
      %v3154 = vadd.f32 0.0, %v3153
      %v3155 = vpop.f32.mrf.mxu0
      %3156 = vmatprep.mubr.bf16.mxu0 0
      %3157 = vmatmul.mubr.bf16.gmra.mxu0 %v3073
      %v3158 = vpop.f32.mrf.mxu0
      %v3159 = vadd.f32 0.0, %v3158
      %v3160 = vpop.f32.mrf.mxu0
      %v3161 = vpop.f32.mrf.mxu0
      %v3162 = vadd.f32 0.0, %v3161
      %v3163 = vpop.f32.mrf.mxu0
      %3164 = vmatprep.mubr.bf16.mxu0 0
      %3165 = vmatmul.mubr.bf16.gmra.mxu0 %v3076
      %v3166 = vpop.f32.mrf.mxu0
      %v3167 = vadd.f32 0.0, %v3166
      %v3168 = vpop.f32.mrf.mxu0
      %v3169 = vpop.f32.mrf.mxu0
      %v3170 = vadd.f32 0.0, %v3169
      %v3171 = vpop.f32.mrf.mxu0
      %3172 = vmatprep.mubr.bf16.mxu0 0
      %3173 = vmatmul.mubr.bf16.gmra.mxu0 %v3079
      %v3174 = vpop.f32.mrf.mxu0
      %v3175 = vadd.f32 0.0, %v3174
      %v3176 = vpop.f32.mrf.mxu0
      %v3177 = vpop.f32.mrf.mxu0
      %v3178 = vadd.f32 0.0, %v3177
      %v3179 = vpop.f32.mrf.mxu0
      %3180 = vdwg.mxu0
      %v3181 = vadd.f32 %v2799, %v3119
      %v3182 = vadd.f32 %v2800, %v3122
      %v3183 = vadd.f32 %v2801, %v3127
      %v3184 = vadd.f32 %v2802, %v3130
      %v3185 = vadd.f32 %v2803, %v3135
      %v3186 = vadd.f32 %v2804, %v3138
      %v3187 = vadd.f32 %v2805, %v3143
      %v3188 = vadd.f32 %v2806, %v3146
      %v3189 = vadd.f32 %v2807, %v3151
      %v3190 = vadd.f32 %v2808, %v3154
      %v3191 = vadd.f32 %v2809, %v3159
      %v3192 = vadd.f32 %v2810, %v3162
      %v3193 = vadd.f32 %v2811, %v3167
      %v3194 = vadd.f32 %v2812, %v3170
      %v3195 = vadd.f32 %v2813, %v3175
      %v3196 = vadd.f32 %v2814, %v3178
      %s3197 = scalar_lea.vmem %s2, 28
      %v3198 = vld [vmem:[%s3197] sm:$0x3]
      %v3200 = vsel %vm656, %v3198, 0
      %3202 = vmatprep.subr.bf16.mxu0 0
      %3203 = vmatpush1.bf16.msra.mxu0 0
      %3204 = vmatprep.subr.bf16.mxu0 0
      %3205 = vmatpush1.bf16.msra.mxu0 0
      %3206 = vmatprep.subr.bf16.mxu0 0
      %3207 = vmatpush1.bf16.msra.mxu0 0
      %3208 = vmatprep.subr.bf16.mxu0 0
      %3209 = vmatpush1.bf16.msra.mxu0 0
      %3210 = vmatprep.subr.bf16.mxu0 0
      %3211 = vmatpush1.bf16.msra.mxu0 0
      %3212 = vmatprep.subr.bf16.mxu0 0
      %3213 = vmatpush1.bf16.msra.mxu0 0
      %3214 = vmatprep.subr.bf16.mxu0 0
      %3215 = vmatpush1.bf16.msra.mxu0 0
      %3216 = vmatprep.subr.bf16.mxu0 0
      %3217 = vmatpush1.bf16.msra.mxu0 %v3200
      %3218 = vmatprep.subr.bf16.mxu0 0
      %3219 = vmatpush2.bf16.msra.mxu0 0
      %3220 = vmatprep.subr.bf16.mxu0 0
      %3221 = vmatpush2.bf16.msra.mxu0 0
      %3222 = vmatprep.subr.bf16.mxu0 0
      %3223 = vmatpush2.bf16.msra.mxu0 0
      %3224 = vmatprep.subr.bf16.mxu0 0
      %3225 = vmatpush2.bf16.msra.mxu0 0
      %3226 = vmatprep.subr.bf16.mxu0 0
      %3227 = vmatpush2.bf16.msra.mxu0 0
      %3228 = vmatprep.subr.bf16.mxu0 0
      %3229 = vmatpush2.bf16.msra.mxu0 0
      %3230 = vmatprep.subr.bf16.mxu0 0
      %3231 = vmatpush2.bf16.msra.mxu0 0
      %3232 = vmatprep.subr.bf16.mxu0 0
      %3233 = vmatpush2.bf16.msra.mxu0 0
      %3234 = vmatprep.mubr.bf16.mxu0 0
      %3235 = vmatmul.mubr.bf16.gmra.mxu0 %v3058
      %v3236 = vpop.f32.mrf.mxu0
      %v3237 = vadd.f32 0.0, %v3236
      %v3238 = vpop.f32.mrf.mxu0
      %v3239 = vpop.f32.mrf.mxu0
      %v3240 = vadd.f32 0.0, %v3239
      %v3241 = vpop.f32.mrf.mxu0
      %3242 = vmatprep.mubr.bf16.mxu0 0
      %3243 = vmatmul.mubr.bf16.gmra.mxu0 %v3061
      %v3244 = vpop.f32.mrf.mxu0
      %v3245 = vadd.f32 0.0, %v3244
      %v3246 = vpop.f32.mrf.mxu0
      %v3247 = vpop.f32.mrf.mxu0
      %v3248 = vadd.f32 0.0, %v3247
      %v3249 = vpop.f32.mrf.mxu0
      %3250 = vmatprep.mubr.bf16.mxu0 0
      %3251 = vmatmul.mubr.bf16.gmra.mxu0 %v3064
      %v3252 = vpop.f32.mrf.mxu0
      %v3253 = vadd.f32 0.0, %v3252
      %v3254 = vpop.f32.mrf.mxu0
      %v3255 = vpop.f32.mrf.mxu0
      %v3256 = vadd.f32 0.0, %v3255
      %v3257 = vpop.f32.mrf.mxu0
      %3258 = vmatprep.mubr.bf16.mxu0 0
      %3259 = vmatmul.mubr.bf16.gmra.mxu0 %v3067
      %v3260 = vpop.f32.mrf.mxu0
      %v3261 = vadd.f32 0.0, %v3260
      %v3262 = vpop.f32.mrf.mxu0
      %v3263 = vpop.f32.mrf.mxu0
      %v3264 = vadd.f32 0.0, %v3263
      %v3265 = vpop.f32.mrf.mxu0
      %3266 = vmatprep.mubr.bf16.mxu0 0
      %3267 = vmatmul.mubr.bf16.gmra.mxu0 %v3070
      %v3268 = vpop.f32.mrf.mxu0
      %v3269 = vadd.f32 0.0, %v3268
      %v3270 = vpop.f32.mrf.mxu0
      %v3271 = vpop.f32.mrf.mxu0
      %v3272 = vadd.f32 0.0, %v3271
      %v3273 = vpop.f32.mrf.mxu0
      %3274 = vmatprep.mubr.bf16.mxu0 0
      %3275 = vmatmul.mubr.bf16.gmra.mxu0 %v3073
      %v3276 = vpop.f32.mrf.mxu0
      %v3277 = vadd.f32 0.0, %v3276
      %v3278 = vpop.f32.mrf.mxu0
      %v3279 = vpop.f32.mrf.mxu0
      %v3280 = vadd.f32 0.0, %v3279
      %v3281 = vpop.f32.mrf.mxu0
      %3282 = vmatprep.mubr.bf16.mxu0 0
      %3283 = vmatmul.mubr.bf16.gmra.mxu0 %v3076
      %v3284 = vpop.f32.mrf.mxu0
      %v3285 = vadd.f32 0.0, %v3284
      %v3286 = vpop.f32.mrf.mxu0
      %v3287 = vpop.f32.mrf.mxu0
      %v3288 = vadd.f32 0.0, %v3287
      %v3289 = vpop.f32.mrf.mxu0
      %3290 = vmatprep.mubr.bf16.mxu0 0
      %3291 = vmatmul.mubr.bf16.gmra.mxu0 %v3079
      %v3292 = vpop.f32.mrf.mxu0
      %v3293 = vadd.f32 0.0, %v3292
      %v3294 = vpop.f32.mrf.mxu0
      %v3295 = vpop.f32.mrf.mxu0
      %v3296 = vadd.f32 0.0, %v3295
      %v3297 = vpop.f32.mrf.mxu0
      %3298 = vdwg.mxu0
      %v3299 = vadd.f32 %v2554, %v3237
      %v3300 = vadd.f32 %v2557, %v3240
      %v3301 = vadd.f32 %v2562, %v3245
      %v3302 = vadd.f32 %v2565, %v3248
      %v3303 = vadd.f32 %v2570, %v3253
      %v3304 = vadd.f32 %v2573, %v3256
      %v3305 = vadd.f32 %v2578, %v3261
      %v3306 = vadd.f32 %v2581, %v3264
      %v3307 = vadd.f32 %v2586, %v3269
      %v3308 = vadd.f32 %v2589, %v3272
      %v3309 = vadd.f32 %v2594, %v3277
      %v3310 = vadd.f32 %v2597, %v3280
      %v3311 = vadd.f32 %v2602, %v3285
      %v3312 = vadd.f32 %v2605, %v3288
      %v3313 = vadd.f32 %v2610, %v3293
      %v3314 = vadd.f32 %v2613, %v3296
      %v3315 = vld [vmem:[%s2616] sm:$0xe]
      %v3316 = vld [vmem:[%s2616 + $0xc] sm:$0xe]
      %v3317 = vld [vmem:[%s2616 + $0x18] sm:$0xe]
      %v3318 = vld [vmem:[%s2616 + $0x24] sm:$0xe]
      %v3319 = vld [vmem:[%s2616 + $0x30] sm:$0xe]
      %v3320 = vld [vmem:[%s2616 + $0x3c] sm:$0xe]
      %v3321 = vld [vmem:[%s2616 + $0x48] sm:$0xe]
      %v3322 = vld [vmem:[%s2616 + $0x54] sm:$0xe]
      %v3347 = vrot.slane %v3315, 5
      %v3348 = vrot.slane %v3347, 4
      %v3349 = vrot.slane %v2816, 5
      %v3350 = vsel %vm949, %v3348, %v3349
      %v3351 = vrot.slane %v3349, 4
      %v3352 = vrot.slane %v2817, 5
      %v3353 = vsel %vm949, %v3351, %v3352
      %v3354 = vrot.slane %v3316, 5
      %v3355 = vrot.slane %v3354, 4
      %v3356 = vrot.slane %v2819, 5
      %v3357 = vsel %vm949, %v3355, %v3356
      %v3358 = vrot.slane %v3356, 4
      %v3359 = vrot.slane %v2820, 5
      %v3360 = vsel %vm949, %v3358, %v3359
      %v3361 = vrot.slane %v3317, 5
      %v3362 = vrot.slane %v3361, 4
      %v3363 = vrot.slane %v2822, 5
      %v3364 = vsel %vm949, %v3362, %v3363
      %v3365 = vrot.slane %v3363, 4
      %v3366 = vrot.slane %v2823, 5
      %v3367 = vsel %vm949, %v3365, %v3366
      %v3368 = vrot.slane %v3318, 5
      %v3369 = vrot.slane %v3368, 4
      %v3370 = vrot.slane %v2825, 5
      %v3371 = vsel %vm949, %v3369, %v3370
      %v3372 = vrot.slane %v3370, 4
      %v3373 = vrot.slane %v2826, 5
      %v3374 = vsel %vm949, %v3372, %v3373
      %v3375 = vrot.slane %v3319, 5
      %v3376 = vrot.slane %v3375, 4
      %v3377 = vrot.slane %v2828, 5
      %v3378 = vsel %vm949, %v3376, %v3377
      %v3379 = vrot.slane %v3377, 4
      %v3380 = vrot.slane %v2829, 5
      %v3381 = vsel %vm949, %v3379, %v3380
      %v3382 = vrot.slane %v3320, 5
      %v3383 = vrot.slane %v3382, 4
      %v3384 = vrot.slane %v2831, 5
      %v3385 = vsel %vm949, %v3383, %v3384
      %v3386 = vrot.slane %v3384, 4
      %v3387 = vrot.slane %v2832, 5
      %v3388 = vsel %vm949, %v3386, %v3387
      %v3389 = vrot.slane %v3321, 5
      %v3390 = vrot.slane %v3389, 4
      %v3391 = vrot.slane %v2834, 5
      %v3392 = vsel %vm949, %v3390, %v3391
      %v3393 = vrot.slane %v3391, 4
      %v3394 = vrot.slane %v2835, 5
      %v3395 = vsel %vm949, %v3393, %v3394
      %v3396 = vrot.slane %v3322, 5
      %v3397 = vrot.slane %v3396, 4
      %v3398 = vrot.slane %v2837, 5
      %v3399 = vsel %vm949, %v3397, %v3398
      %v3400 = vrot.slane %v3398, 4
      %v3401 = vrot.slane %v2838, 5
      %v3402 = vsel %vm949, %v3400, %v3401
      %s3403 = scalar_lea.vmem %s2, 30
      %v3404 = vld [vmem:[%s3403] sm:$0x3]
      %v3405 = vunpack.c.l.b16 %v3350
      %v3406 = vunpack.c.l.b16 %v3353
      %v3407 = vunpack.c.l.b16 %v3357
      %v3408 = vunpack.c.l.b16 %v3360
      %v3409 = vunpack.c.l.b16 %v3364
      %v3410 = vunpack.c.l.b16 %v3367
      %v3411 = vunpack.c.l.b16 %v3371
      %v3412 = vunpack.c.l.b16 %v3374
      %v3413 = vunpack.c.l.b16 %v3378
      %v3414 = vunpack.c.l.b16 %v3381
      %v3415 = vunpack.c.l.b16 %v3385
      %v3416 = vunpack.c.l.b16 %v3388
      %v3417 = vunpack.c.l.b16 %v3392
      %v3418 = vunpack.c.l.b16 %v3395
      %v3419 = vunpack.c.l.b16 %v3399
      %v3420 = vunpack.c.l.b16 %v3402
      %v3421 = vpack.c.b16 %v3406, %v3405
      %v3422 = vpack.c.b16 %v3408, %v3407
      %v3423 = vpack.c.b16 %v3410, %v3409
      %v3424 = vpack.c.b16 %v3412, %v3411
      %v3425 = vpack.c.b16 %v3414, %v3413
      %v3426 = vpack.c.b16 %v3416, %v3415
      %v3427 = vpack.c.b16 %v3418, %v3417
      %v3428 = vpack.c.b16 %v3420, %v3419
      %v3430 = vsel %vm631, %v3421, 0
      %v3433 = vsel %vm631, %v3422, 0
      %v3436 = vsel %vm631, %v3423, 0
      %v3439 = vsel %vm631, %v3424, 0
      %v3442 = vsel %vm631, %v3425, 0
      %v3445 = vsel %vm631, %v3426, 0
      %v3448 = vsel %vm631, %v3427, 0
      %v3451 = vsel %vm631, %v3428, 0
      %v3454 = vsel %vm656, %v3404, 0
      %3456 = vmatprep.subr.bf16.mxu0 0
      %3457 = vmatpush1.bf16.msra.mxu0 0
      %3458 = vmatprep.subr.bf16.mxu0 0
      %3459 = vmatpush1.bf16.msra.mxu0 0
      %3460 = vmatprep.subr.bf16.mxu0 0
      %3461 = vmatpush1.bf16.msra.mxu0 0
      %3462 = vmatprep.subr.bf16.mxu0 0
      %3463 = vmatpush1.bf16.msra.mxu0 0
      %3464 = vmatprep.subr.bf16.mxu0 0
      %3465 = vmatpush1.bf16.msra.mxu0 0
      %3466 = vmatprep.subr.bf16.mxu0 0
      %3467 = vmatpush1.bf16.msra.mxu0 0
      %3468 = vmatprep.subr.bf16.mxu0 0
      %3469 = vmatpush1.bf16.msra.mxu0 0
      %3470 = vmatprep.subr.bf16.mxu0 0
      %3471 = vmatpush1.bf16.msra.mxu0 %v3454
      %3472 = vmatprep.subr.bf16.mxu0 0
      %3473 = vmatpush2.bf16.msra.mxu0 0
      %3474 = vmatprep.subr.bf16.mxu0 0
      %3475 = vmatpush2.bf16.msra.mxu0 0
      %3476 = vmatprep.subr.bf16.mxu0 0
      %3477 = vmatpush2.bf16.msra.mxu0 0
      %3478 = vmatprep.subr.bf16.mxu0 0
      %3479 = vmatpush2.bf16.msra.mxu0 0
      %3480 = vmatprep.subr.bf16.mxu0 0
      %3481 = vmatpush2.bf16.msra.mxu0 0
      %3482 = vmatprep.subr.bf16.mxu0 0
      %3483 = vmatpush2.bf16.msra.mxu0 0
      %3484 = vmatprep.subr.bf16.mxu0 0
      %3485 = vmatpush2.bf16.msra.mxu0 0
      %3486 = vmatprep.subr.bf16.mxu0 0
      %3487 = vmatpush2.bf16.msra.mxu0 0
      %3488 = vmatprep.mubr.bf16.mxu0 0
      %3489 = vmatmul.mubr.bf16.gmra.mxu0 %v3430
      %v3490 = vpop.f32.mrf.mxu0
      %v3491 = vadd.f32 0.0, %v3490
      %v3492 = vpop.f32.mrf.mxu0
      %v3493 = vpop.f32.mrf.mxu0
      %v3494 = vadd.f32 0.0, %v3493
      %v3495 = vpop.f32.mrf.mxu0
      %3496 = vmatprep.mubr.bf16.mxu0 0
      %3497 = vmatmul.mubr.bf16.gmra.mxu0 %v3433
      %v3498 = vpop.f32.mrf.mxu0
      %v3499 = vadd.f32 0.0, %v3498
      %v3500 = vpop.f32.mrf.mxu0
      %v3501 = vpop.f32.mrf.mxu0
      %v3502 = vadd.f32 0.0, %v3501
      %v3503 = vpop.f32.mrf.mxu0
      %3504 = vmatprep.mubr.bf16.mxu0 0
      %3505 = vmatmul.mubr.bf16.gmra.mxu0 %v3436
      %v3506 = vpop.f32.mrf.mxu0
      %v3507 = vadd.f32 0.0, %v3506
      %v3508 = vpop.f32.mrf.mxu0
      %v3509 = vpop.f32.mrf.mxu0
      %v3510 = vadd.f32 0.0, %v3509
      %v3511 = vpop.f32.mrf.mxu0
      %3512 = vmatprep.mubr.bf16.mxu0 0
      %3513 = vmatmul.mubr.bf16.gmra.mxu0 %v3439
      %v3514 = vpop.f32.mrf.mxu0
      %v3515 = vadd.f32 0.0, %v3514
      %v3516 = vpop.f32.mrf.mxu0
      %v3517 = vpop.f32.mrf.mxu0
      %v3518 = vadd.f32 0.0, %v3517
      %v3519 = vpop.f32.mrf.mxu0
      %3520 = vmatprep.mubr.bf16.mxu0 0
      %3521 = vmatmul.mubr.bf16.gmra.mxu0 %v3442
      %v3522 = vpop.f32.mrf.mxu0
      %v3523 = vadd.f32 0.0, %v3522
      %v3524 = vpop.f32.mrf.mxu0
      %v3525 = vpop.f32.mrf.mxu0
      %v3526 = vadd.f32 0.0, %v3525
      %v3527 = vpop.f32.mrf.mxu0
      %3528 = vmatprep.mubr.bf16.mxu0 0
      %3529 = vmatmul.mubr.bf16.gmra.mxu0 %v3445
      %v3530 = vpop.f32.mrf.mxu0
      %v3531 = vadd.f32 0.0, %v3530
      %v3532 = vpop.f32.mrf.mxu0
      %v3533 = vpop.f32.mrf.mxu0
      %v3534 = vadd.f32 0.0, %v3533
      %v3535 = vpop.f32.mrf.mxu0
      %3536 = vmatprep.mubr.bf16.mxu0 0
      %3537 = vmatmul.mubr.bf16.gmra.mxu0 %v3448
      %v3538 = vpop.f32.mrf.mxu0
      %v3539 = vadd.f32 0.0, %v3538
      %v3540 = vpop.f32.mrf.mxu0
      %v3541 = vpop.f32.mrf.mxu0
      %v3542 = vadd.f32 0.0, %v3541
      %v3543 = vpop.f32.mrf.mxu0
      %3544 = vmatprep.mubr.bf16.mxu0 0
      %3545 = vmatmul.mubr.bf16.gmra.mxu0 %v3451
      %v3546 = vpop.f32.mrf.mxu0
      %v3547 = vadd.f32 0.0, %v3546
      %v3548 = vpop.f32.mrf.mxu0
      %v3549 = vpop.f32.mrf.mxu0
      %v3550 = vadd.f32 0.0, %v3549
      %v3551 = vpop.f32.mrf.mxu0
      %3552 = vdwg.mxu0
      %v3553 = vadd.f32 %v3299, %v3491
      %v3554 = vadd.f32 %v3300, %v3494
      %v3555 = vadd.f32 %v3301, %v3499
      %v3556 = vadd.f32 %v3302, %v3502
      %v3557 = vadd.f32 %v3303, %v3507
      %v3558 = vadd.f32 %v3304, %v3510
      %v3559 = vadd.f32 %v3305, %v3515
      %v3560 = vadd.f32 %v3306, %v3518
      %v3561 = vadd.f32 %v3307, %v3523
      %v3562 = vadd.f32 %v3308, %v3526
      %v3563 = vadd.f32 %v3309, %v3531
      %v3564 = vadd.f32 %v3310, %v3534
      %v3565 = vadd.f32 %v3311, %v3539
      %v3566 = vadd.f32 %v3312, %v3542
      %v3567 = vadd.f32 %v3313, %v3547
      %v3568 = vadd.f32 %v3314, %v3550
      %3585 = vrot.lane.b32.xlu0 %v2398, 96
      %v3586 = vpop.permute.xlu0 %3585
      %3587 = vrot.lane.b32.xlu0 %v2399, 96
      %v3588 = vpop.permute.xlu0 %3587
      %3589 = vrot.lane.b32.xlu0 %v2400, 96
      %v3590 = vpop.permute.xlu0 %3589
      %3591 = vrot.lane.b32.xlu0 %v2401, 96
      %v3592 = vpop.permute.xlu0 %3591
      %3593 = vrot.lane.b32.xlu0 %v2402, 96
      %v3594 = vpop.permute.xlu0 %3593
      %3595 = vrot.lane.b32.xlu0 %v2403, 96
      %v3596 = vpop.permute.xlu0 %3595
      %3597 = vrot.lane.b32.xlu0 %v2404, 96
      %v3598 = vpop.permute.xlu0 %3597
      %3599 = vrot.lane.b32.xlu0 %v2405, 96
      %v3600 = vpop.permute.xlu0 %3599
      %3601 = vrot.lane.b32.xlu0 %v2406, 96
      %v3602 = vpop.permute.xlu0 %3601
      %3603 = vrot.lane.b32.xlu0 %v2407, 96
      %v3604 = vpop.permute.xlu0 %3603
      %3605 = vrot.lane.b32.xlu0 %v2408, 96
      %v3606 = vpop.permute.xlu0 %3605
      %3607 = vrot.lane.b32.xlu0 %v2409, 96
      %v3608 = vpop.permute.xlu0 %3607
      %3609 = vrot.lane.b32.xlu0 %v2410, 96
      %v3610 = vpop.permute.xlu0 %3609
      %3611 = vrot.lane.b32.xlu0 %v2411, 96
      %v3612 = vpop.permute.xlu0 %3611
      %3613 = vrot.lane.b32.xlu0 %v2412, 96
      %v3614 = vpop.permute.xlu0 %3613
      %3615 = vrot.lane.b32.xlu0 %v2413, 96
      %v3616 = vpop.permute.xlu0 %3615
      %3649 = vrot.lane.b32.xlu0 %v3181, 64
      %v3650 = vpop.permute.xlu0 %3649
      %3651 = vrot.lane.b32.xlu0 %v3182, 64
      %v3652 = vpop.permute.xlu0 %3651
      %3653 = vrot.lane.b32.xlu0 %v3183, 64
      %v3654 = vpop.permute.xlu0 %3653
      %3655 = vrot.lane.b32.xlu0 %v3184, 64
      %v3656 = vpop.permute.xlu0 %3655
      %3657 = vrot.lane.b32.xlu0 %v3185, 64
      %v3658 = vpop.permute.xlu0 %3657
      %3659 = vrot.lane.b32.xlu0 %v3186, 64
      %v3660 = vpop.permute.xlu0 %3659
      %3661 = vrot.lane.b32.xlu0 %v3187, 64
      %v3662 = vpop.permute.xlu0 %3661
      %3663 = vrot.lane.b32.xlu0 %v3188, 64
      %v3664 = vpop.permute.xlu0 %3663
      %3665 = vrot.lane.b32.xlu0 %v3189, 64
      %v3666 = vpop.permute.xlu0 %3665
      %3667 = vrot.lane.b32.xlu0 %v3190, 64
      %v3668 = vpop.permute.xlu0 %3667
      %3669 = vrot.lane.b32.xlu0 %v3191, 64
      %v3670 = vpop.permute.xlu0 %3669
      %3671 = vrot.lane.b32.xlu0 %v3192, 64
      %v3672 = vpop.permute.xlu0 %3671
      %3673 = vrot.lane.b32.xlu0 %v3193, 64
      %v3674 = vpop.permute.xlu0 %3673
      %3675 = vrot.lane.b32.xlu0 %v3194, 64
      %v3676 = vpop.permute.xlu0 %3675
      %3677 = vrot.lane.b32.xlu0 %v3195, 64
      %v3678 = vpop.permute.xlu0 %3677
      %3679 = vrot.lane.b32.xlu0 %v3196, 64
      %v3680 = vpop.permute.xlu0 %3679
      %3713 = vrot.lane.b32.xlu0 %v3553, 32
      %v3714 = vpop.permute.xlu0 %3713
      %3715 = vrot.lane.b32.xlu0 %v3554, 32
      %v3716 = vpop.permute.xlu0 %3715
      %3717 = vrot.lane.b32.xlu0 %v3555, 32
      %v3718 = vpop.permute.xlu0 %3717
      %3719 = vrot.lane.b32.xlu0 %v3556, 32
      %v3720 = vpop.permute.xlu0 %3719
      %3721 = vrot.lane.b32.xlu0 %v3557, 32
      %v3722 = vpop.permute.xlu0 %3721
      %3723 = vrot.lane.b32.xlu0 %v3558, 32
      %v3724 = vpop.permute.xlu0 %3723
      %3725 = vrot.lane.b32.xlu0 %v3559, 32
      %v3726 = vpop.permute.xlu0 %3725
      %3727 = vrot.lane.b32.xlu0 %v3560, 32
      %v3728 = vpop.permute.xlu0 %3727
      %3729 = vrot.lane.b32.xlu0 %v3561, 32
      %v3730 = vpop.permute.xlu0 %3729
      %3731 = vrot.lane.b32.xlu0 %v3562, 32
      %v3732 = vpop.permute.xlu0 %3731
      %3733 = vrot.lane.b32.xlu0 %v3563, 32
      %v3734 = vpop.permute.xlu0 %3733
      %3735 = vrot.lane.b32.xlu0 %v3564, 32
      %v3736 = vpop.permute.xlu0 %3735
      %3737 = vrot.lane.b32.xlu0 %v3565, 32
      %v3738 = vpop.permute.xlu0 %3737
      %3739 = vrot.lane.b32.xlu0 %v3566, 32
      %v3740 = vpop.permute.xlu0 %3739
      %3741 = vrot.lane.b32.xlu0 %v3567, 32
      %v3742 = vpop.permute.xlu0 %3741
      %3743 = vrot.lane.b32.xlu0 %v3568, 32
      %v3744 = vpop.permute.xlu0 %3743
      %vm3761 = vcmask 785408
      %v3762 = vsel %vm3761, %v1822, %v3586
      %v3763 = vsel %vm3761, %v1823, %v3588
      %v3764 = vsel %vm3761, %v1824, %v3590
      %v3765 = vsel %vm3761, %v1825, %v3592
      %v3766 = vsel %vm3761, %v1826, %v3594
      %v3767 = vsel %vm3761, %v1827, %v3596
      %v3768 = vsel %vm3761, %v1828, %v3598
      %v3769 = vsel %vm3761, %v1829, %v3600
      %v3770 = vsel %vm3761, %v1830, %v3602
      %v3771 = vsel %vm3761, %v1831, %v3604
      %v3772 = vsel %vm3761, %v1832, %v3606
      %v3773 = vsel %vm3761, %v1833, %v3608
      %v3774 = vsel %vm3761, %v1834, %v3610
      %v3775 = vsel %vm3761, %v1835, %v3612
      %v3776 = vsel %vm3761, %v1836, %v3614
      %v3777 = vsel %vm3761, %v1837, %v3616
      %vm3778 = vcmask 523264
      %v3779 = vsel %vm3778, %v3586, %v3650
      %v3780 = vsel %vm3778, %v3588, %v3652
      %v3781 = vsel %vm3778, %v3590, %v3654
      %v3782 = vsel %vm3778, %v3592, %v3656
      %v3783 = vsel %vm3778, %v3594, %v3658
      %v3784 = vsel %vm3778, %v3596, %v3660
      %v3785 = vsel %vm3778, %v3598, %v3662
      %v3786 = vsel %vm3778, %v3600, %v3664
      %v3787 = vsel %vm3778, %v3602, %v3666
      %v3788 = vsel %vm3778, %v3604, %v3668
      %v3789 = vsel %vm3778, %v3606, %v3670
      %v3790 = vsel %vm3778, %v3608, %v3672
      %v3791 = vsel %vm3778, %v3610, %v3674
      %v3792 = vsel %vm3778, %v3612, %v3676
      %v3793 = vsel %vm3778, %v3614, %v3678
      %v3794 = vsel %vm3778, %v3616, %v3680
      %vm3795 = vcmask 261120
      %v3796 = vsel %vm3795, %v3650, %v3714
      %v3797 = vsel %vm3795, %v3652, %v3716
      %v3798 = vsel %vm3795, %v3654, %v3718
      %v3799 = vsel %vm3795, %v3656, %v3720
      %v3800 = vsel %vm3795, %v3658, %v3722
      %v3801 = vsel %vm3795, %v3660, %v3724
      %v3802 = vsel %vm3795, %v3662, %v3726
      %v3803 = vsel %vm3795, %v3664, %v3728
      %v3804 = vsel %vm3795, %v3666, %v3730
      %v3805 = vsel %vm3795, %v3668, %v3732
      %v3806 = vsel %vm3795, %v3670, %v3734
      %v3807 = vsel %vm3795, %v3672, %v3736
      %v3808 = vsel %vm3795, %v3674, %v3738
      %v3809 = vsel %vm3795, %v3676, %v3740
      %v3810 = vsel %vm3795, %v3678, %v3742
      %v3811 = vsel %vm3795, %v3680, %v3744
      %v3812 = vld [vmem:[%s3] sm:$0x7]
      %v3814 = vlaneseq
      %v3815 = vshrl.u32 %v3814, 7
      %v3816 = vsub.s32 0, %v3815
      %v3817 = vrot.slane %v3812, %v3816
      %v3818 = vlaneseq
      %v3819 = vshrl.u32 %v3818, 7
      %v3820 = vsub.s32 1, %v3819
      %v3821 = vrot.slane %v3812, %v3820
      %v3822 = vlaneseq
      %v3823 = vshrl.u32 %v3822, 7
      %v3824 = vsub.s32 2, %v3823
      %v3825 = vrot.slane %v3812, %v3824
      %v3829 = vadd.f32 %v3762, %v3817
      %v3830 = vadd.f32 %v3779, %v3821
      %v3831 = vadd.f32 %v3796, %v3825
      %v3832 = vadd.f32 %v3763, %v3817
      %v3833 = vadd.f32 %v3780, %v3821
      %v3834 = vadd.f32 %v3797, %v3825
      %v3835 = vadd.f32 %v3764, %v3817
      %v3836 = vadd.f32 %v3781, %v3821
      %v3837 = vadd.f32 %v3798, %v3825
      %v3838 = vadd.f32 %v3765, %v3817
      %v3839 = vadd.f32 %v3782, %v3821
      %v3840 = vadd.f32 %v3799, %v3825
      %v3841 = vadd.f32 %v3766, %v3817
      %v3842 = vadd.f32 %v3783, %v3821
      %v3843 = vadd.f32 %v3800, %v3825
      %v3844 = vadd.f32 %v3767, %v3817
      %v3845 = vadd.f32 %v3784, %v3821
      %v3846 = vadd.f32 %v3801, %v3825
      %v3847 = vadd.f32 %v3768, %v3817
      %v3848 = vadd.f32 %v3785, %v3821
      %v3849 = vadd.f32 %v3802, %v3825
      %v3850 = vadd.f32 %v3769, %v3817
      %v3851 = vadd.f32 %v3786, %v3821
      %v3852 = vadd.f32 %v3803, %v3825
      %v3853 = vadd.f32 %v3770, %v3817
      %v3854 = vadd.f32 %v3787, %v3821
      %v3855 = vadd.f32 %v3804, %v3825
      %v3856 = vadd.f32 %v3771, %v3817
      %v3857 = vadd.f32 %v3788, %v3821
      %v3858 = vadd.f32 %v3805, %v3825
      %v3859 = vadd.f32 %v3772, %v3817
      %v3860 = vadd.f32 %v3789, %v3821
      %v3861 = vadd.f32 %v3806, %v3825
      %v3862 = vadd.f32 %v3773, %v3817
      %v3863 = vadd.f32 %v3790, %v3821
      %v3864 = vadd.f32 %v3807, %v3825
      %v3865 = vadd.f32 %v3774, %v3817
      %v3866 = vadd.f32 %v3791, %v3821
      %v3867 = vadd.f32 %v3808, %v3825
      %v3868 = vadd.f32 %v3775, %v3817
      %v3869 = vadd.f32 %v3792, %v3821
      %v3870 = vadd.f32 %v3809, %v3825
      %v3871 = vadd.f32 %v3776, %v3817
      %v3872 = vadd.f32 %v3793, %v3821
      %v3873 = vadd.f32 %v3810, %v3825
      %v3874 = vadd.f32 %v3777, %v3817
      %v3875 = vadd.f32 %v3794, %v3821
      %v3876 = vadd.f32 %v3811, %v3825
      %3877 = vst [vmem:[%s318] sm:$0xff] %v3829
      %3878 = vst [vmem:[%s318 + $0x8] sm:$0xff] %v3830
      %3879 = vst [vmem:[%s318 + $0x10] sm:$0xff] %v3831
      %3880 = vst [vmem:[%s318 + $0x18] sm:$0xff] %v3832
      %3881 = vst [vmem:[%s318 + $0x20] sm:$0xff] %v3833
      %3882 = vst [vmem:[%s318 + $0x28] sm:$0xff] %v3834
      %3883 = vst [vmem:[%s318 + $0x30] sm:$0xff] %v3835
      %3884 = vst [vmem:[%s318 + $0x38] sm:$0xff] %v3836
      %3885 = vst [vmem:[%s318 + $0x40] sm:$0xff] %v3837
      %3886 = vst [vmem:[%s318 + $0x48] sm:$0xff] %v3838
      %3887 = vst [vmem:[%s318 + $0x50] sm:$0xff] %v3839
      %3888 = vst [vmem:[%s318 + $0x58] sm:$0xff] %v3840
      %3889 = vst [vmem:[%s318 + $0x60] sm:$0xff] %v3841
      %3890 = vst [vmem:[%s318 + $0x68] sm:$0xff] %v3842
      %3891 = vst [vmem:[%s318 + $0x70] sm:$0xff] %v3843
      %3892 = vst [vmem:[%s318 + $0x78] sm:$0xff] %v3844
      %3893 = vst [vmem:[%s318 + $0x80] sm:$0xff] %v3845
      %3894 = vst [vmem:[%s318 + $0x88] sm:$0xff] %v3846
      %3895 = vst [vmem:[%s318 + $0x90] sm:$0xff] %v3847
      %3896 = vst [vmem:[%s318 + $0x98] sm:$0xff] %v3848
      %3897 = vst [vmem:[%s318 + $0xa0] sm:$0xff] %v3849
      %3898 = vst [vmem:[%s318 + $0xa8] sm:$0xff] %v3850
      %3899 = vst [vmem:[%s318 + $0xb0] sm:$0xff] %v3851
      %3900 = vst [vmem:[%s318 + $0xb8] sm:$0xff] %v3852
      %3901 = vst [vmem:[%s318 + $0xc0] sm:$0xff] %v3853
      %3902 = vst [vmem:[%s318 + $0xc8] sm:$0xff] %v3854
      %3903 = vst [vmem:[%s318 + $0xd0] sm:$0xff] %v3855
      %3904 = vst [vmem:[%s318 + $0xd8] sm:$0xff] %v3856
      %3905 = vst [vmem:[%s318 + $0xe0] sm:$0xff] %v3857
      %3906 = vst [vmem:[%s318 + $0xe8] sm:$0xff] %v3858
      %3907 = vst [vmem:[%s318 + $0xf0] sm:$0xff] %v3859
      %3908 = vst [vmem:[%s318 + $0xf8] sm:$0xff] %v3860
      %3909 = vst [vmem:[%s318 + $0x100] sm:$0xff] %v3861
      %3910 = vst [vmem:[%s318 + $0x108] sm:$0xff] %v3862
      %3911 = vst [vmem:[%s318 + $0x110] sm:$0xff] %v3863
      %3912 = vst [vmem:[%s318 + $0x118] sm:$0xff] %v3864
      %3913 = vst [vmem:[%s318 + $0x120] sm:$0xff] %v3865
      %3914 = vst [vmem:[%s318 + $0x128] sm:$0xff] %v3866
      %3915 = vst [vmem:[%s318 + $0x130] sm:$0xff] %v3867
      %3916 = vst [vmem:[%s318 + $0x138] sm:$0xff] %v3868
      %3917 = vst [vmem:[%s318 + $0x140] sm:$0xff] %v3869
      %3918 = vst [vmem:[%s318 + $0x148] sm:$0xff] %v3870
      %3919 = vst [vmem:[%s318 + $0x150] sm:$0xff] %v3871
      %3920 = vst [vmem:[%s318 + $0x158] sm:$0xff] %v3872
      %3921 = vst [vmem:[%s318 + $0x160] sm:$0xff] %v3873
      %3922 = vst [vmem:[%s318 + $0x168] sm:$0xff] %v3874
      %3923 = vst [vmem:[%s318 + $0x170] sm:$0xff] %v3875
      %3924 = vst [vmem:[%s318 + $0x178] sm:$0xff] %v3876
      %s3925 = smul.u32 16, %s20
      %p3926 = scmp.lt.s32.totalorder %s19, 1
      %s3927 = scalar_select %p3926, %s19, 1
      %p3928 = scmp.lt.s32.totalorder %s3925, 31
      %s3929 = scalar_select %p3928, %s3925, 31
      %s3930 = smul.addr %s3929, 3
      %s3931 = smul.addr %s3927, 96
      %s3932 = sadd.s32 %s3930, %s3931
      %s3933 = smul.addr %s3932, 8
      %s3934 = scalar_lea.vmem %s4, %s3933
      // Predicated region
      $region37: #{densepose_predictor.1} parent=35 // pred_check
        %p3935 = pneg %p149
      $region38: #{densepose_predictor.1} parent=35 // pred_check_branch
        %3937 = sbr.rel (%p3935) target = $region40
      $region39: #{densepose_predictor.1} parent=35 // pred_region
        %s3938 = smul.u32 16, %s20
      $region40: #{densepose_predictor.1} parent=35 // pred_fallthru
        _
    $region36: #{densepose_predictor.1} parent=5 // pred_fallthru
      _
    %p3939 = scmp.le.s32.totalorder 2, %s10
    // Predicated region
    $region41: #{densepose_predictor.1} parent=5 // pred_check
      %p3940 = pneg %p3939
    $region42: #{densepose_predictor.1} parent=5 // pred_check_branch
      %3942 = sbr.rel (%p3940) target = $region44
    $region43: #{densepose_predictor.1} parent=5 // pred_region
      %s3943 = ssub.s32 %s10, 2
      // Predicated region
      $region45: #{densepose_predictor.1} parent=43 // pred_check
        %p3944 = pneg %p155
      $region46: #{densepose_predictor.1} parent=43 // pred_check_branch
        %3946 = sbr.rel (%p3944) target = $region48
      $region47: #{densepose_predictor.1} parent=43 // pred_region
        %s3947 = smul.u32 16, %s22
        %p3948 = scmp.lt.s32.totalorder %s21, 1
        %s3949 = scalar_select %p3948, %s21, 1
        %p3950 = scmp.lt.s32.totalorder %s3947, 31
        %s3951 = scalar_select %p3950, %s3947, 31
        %s3952 = smul.addr %s3951, 3
        %s3953 = smul.addr %s3949, 96
        %s3954 = sadd.s32 %s3952, %s3953
        %s3955 = smul.addr %s3954, 8
        %s3956 = scalar_lea.vmem %s4, %s3955
      $region48: #{densepose_predictor.1} parent=43 // pred_fallthru
        _
    $region44: #{densepose_predictor.1} parent=5 // pred_fallthru
      _
  $region6: #{densepose_predictor.1} parent=0 // loop_footer
    %s14 = sadd.s32 1, %s10
  $region7: #{densepose_predictor.1} parent=0 // loop_footer_branch
    %9 = sbr.rel target = $region3
  $region8: #{densepose_predictor.1} parent=0 // loop_exit
    _

</llo_original>
